<compile_context>
chip_gen: v5e
topology: v5e:2x2
jax: 0.10.0
libtpu: 0.0.40
codegen_flags: <defaults>
</compile_context>

<pallas_src>
import functools

import jax
import jax.numpy as jnp
from jax.experimental import pallas as pl
from jax.experimental.pallas import tpu as pltpu


# --------------------------------------------------------------------------
# sizing helpers
# --------------------------------------------------------------------------
def _tpu_vmem_bytes():
    try:
        cap = getattr(pltpu.get_tpu_info(), "vmem_capacity_bytes", None)
        if cap:
            return int(cap)
    except Exception:
        pass
    return 64 * 1024 * 1024                      # conservative (v7x-sized) fallback


def _reduction_chunk(dim, max_chunk=512):
    """Chunk of the contraction dim: full dim if small/not 128-aligned, else a
    256/512-friendly multiple of 128 (v6e/v7x MXU is 2x256^2)."""
    if dim % 128 != 0 or dim <= max_chunk:
        return dim
    for c in (512, 256, 128):
        if dim % c == 0:
            return c
    return dim


def _pick_row_tile(ho, per_row_bytes, budget, need_align=None):
    """Largest divisor of ho whose per-step footprint fits the budget."""
    divisors = [t for t in range(1, ho + 1) if ho % t == 0]
    ok = [t for t in divisors if t == ho or need_align is None or need_align(t)]
    fit = [t for t in ok if t * per_row_bytes <= budget]
    return max(fit) if fit else min(ok)


def _row_tile_1d(m, cap=2048):
    for t in range(min(cap, m), 0, -1):
        if m % t == 0 and (t % 8 == 0 or t == m):
            return t
    return m


# --------------------------------------------------------------------------
# K1: LeakyReLU(0.2) + Conv2d(k=4, s=2, p=1), ReLU folded into the store
#     grid = (batch, row_tile, k_chunk); column taps folded into K (= 8*Cin)
# --------------------------------------------------------------------------
def _down_conv_kernel(y_ref, w_ref, b_ref, d_ref, acc_ref, *, rows_out, Wo, kd):
    k = pl.program_id(2)

    @pl.when(k == 0)
    def _():
        acc_ref[...] = jnp.zeros_like(acc_ref)

    y = y_ref[0, 0]                                    # ((TU1+1)*Wo, ck) bf16
    y = jnp.where(y > 0, y, 0.2 * y)                   # LeakyReLU(0.2)
    acc = acc_ref[...]
    for a in range(2):                                 # the two row taps
        widx = a if kd == 1 else k * 2 + a             # weights resident; chunk along axis 0
        acc = acc + jnp.dot(y[a * Wo:a * Wo + rows_out, :], w_ref[widx],
                            preferred_element_type=jnp.float32)
    acc_ref[...] = acc

    @pl.when(k == pl.num_programs(2) - 1)
    def _():
        # bias + the ReLU that starts the up path, fused into the bf16 store.
        d_ref[0] = jnp.maximum(acc_ref[...] + b_ref[...], 0.0).astype(d_ref.dtype)


# --------------------------------------------------------------------------
# K2: ConvTranspose2d(k=4, s=2, p=1) via 4 phases x 4 taps + BN partial stats
#     Input: row-haloed, column-padded flat slab of d (no dstack duplication).
#     Each tap:  t = slab @ W[kh,kw];  acc[phase] += t[off : off + L]   (static slice)
#     with off = rs*(Wo+2) + cs.  Junk columns (the 2 pad columns per row) are
#     masked out of the BN statistics and dropped by the wrapper.
# --------------------------------------------------------------------------
_TAPS = (((0, 3), (1, 1)), ((1, 2), (2, 0)))           # (row/col shift, kernel index)


def _up_conv_bnstat_kernel(g_ref, w_ref, b_ref, m_ref, u_ref, stat_ref, acc_ref,
                           *, L, Wp, ku):
    k = pl.program_id(2)

    @pl.when(k == 0)
    def _():
        acc_ref[...] = jnp.zeros_like(acc_ref)

    g = g_ref[0, 0]                                    # (Lp, ck) bf16, dense slab
    for ph in range(2):
        for pw in range(2):
            p = 2 * ph + pw
            acc = acc_ref[p]
            for rs, kh in _TAPS[ph]:
                for cs, kw in _TAPS[pw]:
                    widx = (kh * 4 + kw) if ku == 1 else k * 16 + kh * 4 + kw
                    t = jnp.dot(g, w_ref[widx], preferred_element_type=jnp.float32)
                    off = rs * Wp + cs
                    acc = acc + t[off:off + L, :]
            acc_ref[p] = acc

    @pl.when(k == pl.num_programs(2) - 1)
    def _():
        bias = b_ref[...]                              # (1, outer) f32
        mask = m_ref[...]                              # (L, outer) 1.0 valid / 0.0 junk col
        s = jnp.zeros_like(bias)
        ss = jnp.zeros_like(bias)
        for p in range(4):
            r = acc_ref[p] + bias
            u_ref[0, p] = r.astype(u_ref.dtype)        # bf16 writeback (stats come from f32)
            rv = r * mask
            s = s + jnp.sum(rv, axis=0, keepdims=True)
            ss = ss + jnp.sum(rv * r, axis=0, keepdims=True)
        stat_ref[0, 0, 0:1, :] = s                     # per-(image, row-tile) partial sums
        stat_ref[0, 0, 1:2, :] = ss


# --------------------------------------------------------------------------
# K3: BatchNorm apply (normalise u with the batch statistics)
# --------------------------------------------------------------------------
def _bn_apply_kernel(u_ref, sc_ref, sh_ref, o_ref):
    o_ref[...] = u_ref[...].astype(jnp.float32) * sc_ref[...] + sh_ref[...]


# --------------------------------------------------------------------------
# wrapper (innermost forward, NCHW in / NCHW out like PyTorch)
# --------------------------------------------------------------------------
def patch_soft_unet_innermost_forward(x_nchw, params):
    x_nchw = x_nchw.astype(jnp.float32)
    N, Cin, H, W = x_nchw.shape
    assert H % 2 == 0 and W % 2 == 0
    Ho, Wo = H // 2, W // 2
    assert Wo % 8 == 0, "Wo must be a multiple of 8 (pad W otherwise)"

    wd = params["down_w"]                              # (inner, Cin, 4, 4)
    wu = params["up_w"]                                # (inner, outer, 4, 4)
    inner = wd.shape[0]
    outer = wu.shape[1]

    vmem_cap = _tpu_vmem_bytes()                       # per-generation VMEM (v7x < v6e/v5e)
    vmem_limit = int(min(0.85 * vmem_cap, 120 * 1024 * 1024))
    budget = vmem_cap // 3                             # headroom for double-buffering/weights

    # ------------------------------------------------------------------ K1 prep
    # space-to-depth of the zero-padded input; fold the 2 column taps into K = 8*Cin
    x_nhwc = jnp.transpose(x_nchw, (0, 2, 3, 1))
    xp = jnp.pad(x_nhwc, ((0, 0), (1, 1), (1, 1), (0, 0)))
    y = xp.reshape(N, Ho + 1, 2, Wo + 1, 2, Cin)
    y = y.transpose(0, 1, 3, 2, 4, 5).reshape(N, Ho + 1, Wo + 1, 4 * Cin)
    y8 = jnp.concatenate([y[:, :, :Wo, :], y[:, :, 1:Wo + 1, :]], axis=-1)  # (N,Ho+1,Wo,8Cin)

    K1 = 8 * Cin
    ck_d = _reduction_chunk(K1)
    kd = K1 // ck_d

    row_bytes_k1 = Wo * (K1 * 2 * 2 + inner * (2 * 2 + 4))
    TU1 = _pick_row_tile(Ho, row_bytes_k1, budget)
    R1 = Ho // TU1

    # row-haloed tiles (1-row halo instead of whole-slab residency)
    y8t = jnp.stack([y8[:, r * TU1:r * TU1 + TU1 + 1] for r in range(R1)], axis=1)
    y8t = y8t.reshape(N, R1, (TU1 + 1) * Wo, K1).astype(jnp.bfloat16)

    # packed down weights, chunk-major: row = k_chunk*2 + row_tap
    wd6 = wd.reshape(inner, Cin, 2, 2, 2, 2)           # (co, ci, a, pa, b, pb)
    wd_pack = wd6.transpose(2, 4, 3, 5, 1, 0).reshape(2, K1, inner)        # (a, (b,pa,pb,ci), co)
    wd_pack = wd_pack.reshape(2, kd, ck_d, inner).transpose(1, 0, 2, 3)
    wd_pack = wd_pack.reshape(kd * 2, ck_d, inner).astype(jnp.bfloat16)
    down_b = params["down_b"].reshape(1, inner).astype(jnp.float32)

    d = pl.pallas_call(
        functools.partial(_down_conv_kernel, rows_out=TU1 * Wo, Wo=Wo, kd=kd),
        out_shape=jax.ShapeDtypeStruct((N, Ho * Wo, inner), jnp.bfloat16),
        grid_spec=pltpu.PrefetchScalarGridSpec(
            num_scalar_prefetch=0,
            grid=(N, R1, kd),
            in_specs=[
                pl.BlockSpec((1, 1, (TU1 + 1) * Wo, ck_d), lambda n, r, k: (n, r, 0, k)),
                pl.BlockSpec((kd * 2, ck_d, inner), lambda n, r, k: (0, 0, 0)),   # resident
                pl.BlockSpec((1, inner), lambda n, r, k: (0, 0)),
            ],
            out_specs=pl.BlockSpec((1, TU1 * Wo, inner), lambda n, r, k: (n, r, 0)),
            scratch_shapes=[pltpu.VMEM((TU1 * Wo, inner), jnp.float32)],
        ),
        compiler_params=pltpu.CompilerParams(
            dimension_semantics=("parallel", "parallel", "arbitrary"),
            vmem_limit_bytes=vmem_limit),
    )(y8t, wd_pack, down_b)

    # ------------------------------------------------------------------ K2 prep
    ck_u = _reduction_chunk(inner)
    ku = inner // ck_u

    Wp = Wo + 2
    row_bytes_k2 = Wp * (inner * 2 * 2 + outer * (4 * 4 + 4 * 2 * 2))
    TU2 = _pick_row_tile(Ho, row_bytes_k2, budget,
                         need_align=lambda t: (t * Wp) % 8 == 0)
    R2 = Ho // TU2
    L = TU2 * Wp                                       # accumulator rows (incl. 2 junk cols/row)
    PAD = 8
    Lp = (TU2 + 2) * Wp + PAD                          # slab rows (2-row halo + tail pad)

    d3 = d.reshape(N, Ho, Wo, inner)
    dp = jnp.pad(d3, ((0, 0), (1, 1), (1, 1), (0, 0)))               # (N, Ho+2, Wo+2, inner)
    g = jnp.stack([dp[:, r * TU2:r * TU2 + TU2 + 2] for r in range(R2)], axis=1)
    g = g.reshape(N, R2, (TU2 + 2) * Wp, inner)
    g = jnp.pad(g, ((0, 0), (0, 0), (0, PAD), (0, 0)))               # (N, R2, Lp, inner) bf16

    # validity mask for the BN statistics (junk pad columns excluded)
    col = jnp.arange(L) % Wp
    mask = jnp.broadcast_to((col < Wo).astype(jnp.float32)[:, None], (L, outer))

    # packed up weights, chunk-major: row = k_chunk*16 + kh*4 + kw   (resident, DMAed once)
    wu_perm = jnp.transpose(wu, (2, 3, 0, 1))                         # (kh, kw, inner, outer)
    wu_pack = wu_perm.reshape(4, 4, ku, ck_u, outer).transpose(2, 0, 1, 3, 4)
    wu_pack = wu_pack.reshape(ku * 16, ck_u, outer).astype(jnp.bfloat16)
    up_b = params["up_b"].reshape(1, outer).astype(jnp.float32)

    u, stats = pl.pallas_call(
        functools.partial(_up_conv_bnstat_kernel, L=L, Wp=Wp, ku=ku),
        out_shape=(
            jax.ShapeDtypeStruct((N, 4, Ho * Wp, outer), jnp.bfloat16),   # bf16 writeback
            jax.ShapeDtypeStruct((N, R2, 2, outer), jnp.float32),
        ),
        grid_spec=pltpu.PrefetchScalarGridSpec(
            num_scalar_prefetch=0,
            grid=(N, R2, ku),
            in_specs=[
                pl.BlockSpec((1, 1, Lp, ck_u), lambda n, r, k: (n, r, 0, k)),
                pl.BlockSpec((ku * 16, ck_u, outer), lambda n, r, k: (0, 0, 0)),  # resident
                pl.BlockSpec((1, outer), lambda n, r, k: (0, 0)),
                pl.BlockSpec((L, outer), lambda n, r, k: (0, 0)),
            ],
            out_specs=[
                pl.BlockSpec((1, 4, L, outer), lambda n, r, k: (n, 0, r, 0)),
                pl.BlockSpec((1, 1, 2, outer), lambda n, r, k: (n, r, 0, 0)),
            ],
            scratch_shapes=[pltpu.VMEM((4, L, outer), jnp.float32)],
        ),
        compiler_params=pltpu.CompilerParams(
            dimension_semantics=("parallel", "parallel", "arbitrary"),
            vmem_limit_bytes=vmem_limit),
    )(g, wu_pack, up_b, mask)

    # ---------------- BatchNorm affine parameters from the fused partial sums ----------
    tot = jnp.sum(stats, axis=(0, 1))                  # (2, outer): row0 sum, row1 sum-of-squares
    cnt = jnp.float32(N * H * W)
    mean = tot[0] / cnt
    # NOTE: E[x^2]-E[x]^2 in f32 (clamped); fine for forward benchmarking.
    var = jnp.maximum(tot[1] / cnt - mean * mean, 0.0)
    scale_v = params["bn_gamma"].astype(jnp.float32) * jax.lax.rsqrt(var + 1e-5)
    shift_v = params["bn_beta"].astype(jnp.float32) - mean * scale_v
    scale2d = scale_v.reshape(1, outer)
    shift2d = shift_v.reshape(1, outer)

    # ------------------------------------------------------------------ K3: BN apply
    M3 = N * 4 * Ho * Wp
    u2 = u.reshape(M3, outer)
    tm = _row_tile_1d(M3)

    xl2 = pl.pallas_call(
        _bn_apply_kernel,
        out_shape=jax.ShapeDtypeStruct((M3, outer), jnp.float32),
        grid_spec=pltpu.PrefetchScalarGridSpec(
            num_scalar_prefetch=0,
            grid=(M3 // tm,),
            in_specs=[
                pl.BlockSpec((tm, outer), lambda i: (i, 0)),
                pl.BlockSpec((1, outer), lambda i: (0, 0)),
                pl.BlockSpec((1, outer), lambda i: (0, 0)),
            ],
            out_specs=pl.BlockSpec((tm, outer), lambda i: (i, 0)),
        ),
        compiler_params=pltpu.CompilerParams(
            dimension_semantics=("parallel",),
            vmem_limit_bytes=vmem_limit),
    )(u2, scale2d, shift2d)

    # phase layout -> NCHW for the BN half only; skip half is the original x (no round trip)
    xl = xl2.reshape(N, 2, 2, Ho, Wp, outer)[:, :, :, :, :Wo, :]      # drop junk columns
    xl = xl.transpose(0, 5, 3, 1, 4, 2).reshape(N, outer, H, W)
    return jnp.concatenate([xl, x_nchw], axis=1)


# --------------------------------------------------------------------------
# Deterministic parameter construction (spectral_norm(use=False) == identity)
# --------------------------------------------------------------------------
def make_params(key, input_nc, inner_nc, outer_nc, K=4):
    k = jax.random.split(key, 6)
    return {
        "down_w": 0.1 * jax.random.normal(k[0], (inner_nc, input_nc, K, K), jnp.float32),
        "down_b": 0.1 * jax.random.normal(k[1], (inner_nc,), jnp.float32),
        "up_w": 0.1 * jax.random.normal(k[2], (inner_nc, outer_nc, K, K), jnp.float32),
        "up_b": 0.1 * jax.random.normal(k[3], (outer_nc,), jnp.float32),
        "bn_gamma": 1.0 + 0.1 * jax.random.normal(k[4], (outer_nc,), jnp.float32),
        "bn_beta": 0.1 * jax.random.normal(k[5], (outer_nc,), jnp.float32),
    }


if __name__ == "__main__":
    key = jax.random.PRNGKey(0)
    kx, kp = jax.random.split(key)

    N, input_nc, H, W = 2, 4, 16, 16
    inner_nc, outer_nc = 8, 4

    x = jax.random.normal(kx, (N, input_nc, H, W), jnp.float32)       # NCHW like PyTorch
    params = make_params(kp, input_nc, inner_nc, outer_nc)

    fwd = jax.jit(patch_soft_unet_innermost_forward)
    out = fwd(x, params)
    jax.block_until_ready(out)

    assert out.shape == (N, outer_nc + input_nc, H, W), out.shape
    assert bool(jnp.all(jnp.isfinite(out)))
    print("KERNEL_OK")
</pallas_src>

<mosaic_0001>
module attributes {stable_mosaic.version = 11 : i64} {
  func.func @_down_conv_kernel(%arg0: i32, %arg1: i32, %arg2: i32, %arg3: memref<1x1x72x32xbf16, #tpu.memory_space<vmem>>, %arg4: memref<2x32x8xbf16, #tpu.memory_space<vmem>>, %arg5: memref<1x8xf32, #tpu.memory_space<vmem>>, %arg6: memref<1x64x8xbf16, #tpu.memory_space<vmem>>, %arg7: memref<64x8xf32, #tpu.memory_space<vmem>>) attributes {dimension_semantics = [#tpu.dimension_semantics<parallel>, #tpu.dimension_semantics<parallel>, #tpu.dimension_semantics<arbitrary>], iteration_bounds = array<i64: 2, 1, 1>, scalar_prefetch = 0 : i64, scratch_operands = 1 : i64, tpu.core_type = #tpu.core_type<tc>, window_params = [{transform_indices = @transform_0, window_bounds = array<i64: 1, 1, 72, 32>}, {pipeline_mode = #tpu.pipeline_mode<synchronous>, transform_indices = @transform_1, window_bounds = array<i64: 2, 32, 8>}, {pipeline_mode = #tpu.pipeline_mode<synchronous>, transform_indices = @transform_2, window_bounds = array<i64: 1, 8>}, {transform_indices = @transform_3, window_bounds = array<i64: 1, 64, 8>}]} {
    %c0_i32 = arith.constant 0 : i32
    %0 = arith.cmpi eq, %arg2, %c0_i32 : i32
    %1 = arith.extui %0 : i1 to i32
    %c0_i32_0 = arith.constant 0 : i32
    %2 = arith.cmpi ne, %1, %c0_i32_0 : i32
    scf.if %2 {
      %cst_18 = arith.constant 0.000000e+00 : f32
      %25 = vector.broadcast %cst_18 : f32 to vector<64x8xf32>
      %c0_19 = arith.constant 0 : index
      %c0_20 = arith.constant 0 : index
      %26 = vector.load %arg7[%c0_19, %c0_20] : memref<64x8xf32, #tpu.memory_space<vmem>>, vector<64x8xf32>
      tpu.vector_store %arg7[%c0_19, %c0_20], %25 {strides = array<i32>} : memref<64x8xf32, #tpu.memory_space<vmem>>, vector<64x8xf32>,
    } else {
    }
    %c0 = arith.constant 0 : index
    %c0_1 = arith.constant 0 : index
    %c0_2 = arith.constant 0 : index
    %c0_3 = arith.constant 0 : index
    %3 = vector.load %arg3[%c0, %c0_1, %c0_2, %c0_3] : memref<1x1x72x32xbf16, #tpu.memory_space<vmem>>, vector<1x1x72x32xbf16>
    %4 = vector.shape_cast %3 : vector<1x1x72x32xbf16> to vector<72x32xbf16>
    %cst = arith.constant 0.000000e+00 : bf16
    %5 = vector.broadcast %cst : bf16 to vector<72x32xbf16>
    %6 = arith.cmpf ogt, %4, %5 : vector<72x32xbf16>
    %cst_4 = arith.constant 2.001950e-01 : bf16
    %7 = vector.broadcast %cst_4 : bf16 to vector<72x32xbf16>
    %8 = arith.mulf %7, %4 : vector<72x32xbf16>
    %9 = arith.select %6, %4, %8 : vector<72x32xi1>, vector<72x32xbf16>
    %c0_5 = arith.constant 0 : index
    %c0_6 = arith.constant 0 : index
    %10 = vector.load %arg7[%c0_5, %c0_6] : memref<64x8xf32, #tpu.memory_space<vmem>>, vector<64x8xf32>
    %11 = vector.extract_strided_slice %9 {offsets = [0, 0], sizes = [64, 32], strides = [1, 1]} : vector<72x32xbf16> to vector<64x32xbf16>
    %c0_7 = arith.constant 0 : index
    %c0_8 = arith.constant 0 : index
    %c0_9 = arith.constant 0 : index
    %12 = vector.load %arg4[%c0_7, %c0_8, %c0_9] : memref<2x32x8xbf16, #tpu.memory_space<vmem>>, vector<1x32x8xbf16>
    %13 = vector.shape_cast %12 : vector<1x32x8xbf16> to vector<32x8xbf16>
    %cst_10 = arith.constant dense<0.000000e+00> : vector<64x8xf32>
    %14 = tpu.matmul %11, %13, %cst_10 {dimension_numbers = #tpu.dot_dimension_numbers<[1], [0], [0], [1], [0, 0, 1, 1], [], []>} : vector<64x32xbf16>, vector<32x8xbf16>, vector<64x8xf32> -> vector<64x8xf32>
    %15 = arith.addf %10, %14 : vector<64x8xf32>
    %16 = vector.extract_strided_slice %9 {offsets = [8, 0], sizes = [64, 32], strides = [1, 1]} : vector<72x32xbf16> to vector<64x32xbf16>
    %c1 = arith.constant 1 : index
    %c0_11 = arith.constant 0 : index
    %c0_12 = arith.constant 0 : index
    %17 = vector.load %arg4[%c1, %c0_11, %c0_12] : memref<2x32x8xbf16, #tpu.memory_space<vmem>>, vector<1x32x8xbf16>
    %18 = vector.shape_cast %17 : vector<1x32x8xbf16> to vector<32x8xbf16>
    %cst_13 = arith.constant dense<0.000000e+00> : vector<64x8xf32>
    %19 = tpu.matmul %16, %18, %cst_13 {dimension_numbers = #tpu.dot_dimension_numbers<[1], [0], [0], [1], [0, 0, 1, 1], [], []>} : vector<64x32xbf16>, vector<32x8xbf16>, vector<64x8xf32> -> vector<64x8xf32>
    %20 = arith.addf %15, %19 : vector<64x8xf32>
    %c0_14 = arith.constant 0 : index
    %c0_15 = arith.constant 0 : index
    %21 = vector.load %arg7[%c0_14, %c0_15] : memref<64x8xf32, #tpu.memory_space<vmem>>, vector<64x8xf32>
    tpu.vector_store %arg7[%c0_14, %c0_15], %20 {strides = array<i32>} : memref<64x8xf32, #tpu.memory_space<vmem>>, vector<64x8xf32>,
    %c0_i32_16 = arith.constant 0 : i32
    %22 = arith.cmpi eq, %arg2, %c0_i32_16 : i32
    %23 = arith.extui %22 : i1 to i32
    %c0_i32_17 = arith.constant 0 : i32
    %24 = arith.cmpi ne, %23, %c0_i32_17 : i32
    scf.if %24 {
      %c0_18 = arith.constant 0 : index
      %c0_19 = arith.constant 0 : index
      %25 = vector.load %arg7[%c0_18, %c0_19] : memref<64x8xf32, #tpu.memory_space<vmem>>, vector<64x8xf32>
      %c0_20 = arith.constant 0 : index
      %c0_21 = arith.constant 0 : index
      %26 = vector.load %arg5[%c0_20, %c0_21] : memref<1x8xf32, #tpu.memory_space<vmem>>, vector<1x8xf32>
      %27 = vector.broadcast %26 : vector<1x8xf32> to vector<64x8xf32>
      %28 = arith.addf %25, %27 : vector<64x8xf32>
      %cst_22 = arith.constant 0.000000e+00 : f32
      %29 = vector.broadcast %cst_22 : f32 to vector<64x8xf32>
      %30 = arith.maximumf %28, %29 : vector<64x8xf32>
      %31 = arith.truncf %30 : vector<64x8xf32> to vector<64x8xbf16>
      %c0_23 = arith.constant 0 : index
      %c0_24 = arith.constant 0 : index
      %c0_25 = arith.constant 0 : index
      %32 = vector.load %arg6[%c0_23, %c0_24, %c0_25] : memref<1x64x8xbf16, #tpu.memory_space<vmem>>, vector<1x64x8xbf16>
      %33 = vector.shape_cast %32 : vector<1x64x8xbf16> to vector<64x8xbf16>
      %34 = vector.shape_cast %31 : vector<64x8xbf16> to vector<1x64x8xbf16>
      tpu.vector_store %arg6[%c0_23, %c0_24, %c0_25], %34 {strides = array<i32>} : memref<1x64x8xbf16, #tpu.memory_space<vmem>>, vector<1x64x8xbf16>,
    } else {
    }
    return
  }
  func.func @transform_0(%arg0: i32, %arg1: i32, %arg2: i32) -> (i32, i32, i32, i32) {
    %c0_i32 = arith.constant 0 : i32
    %c0_i32_0 = arith.constant 0 : i32
    return %arg0, %arg1, %c0_i32, %arg2 : i32, i32, i32, i32
  }
  func.func @transform_1(%arg0: i32, %arg1: i32, %arg2: i32) -> (i32, i32, i32) {
    %c0_i32 = arith.constant 0 : i32
    %c0_i32_0 = arith.constant 0 : i32
    %c0_i32_1 = arith.constant 0 : i32
    %c0_i32_2 = arith.constant 0 : i32
    return %c0_i32, %c0_i32_0, %c0_i32_1 : i32, i32, i32
  }
  func.func @transform_2(%arg0: i32, %arg1: i32, %arg2: i32) -> (i32, i32) {
    %c0_i32 = arith.constant 0 : i32
    %c0_i32_0 = arith.constant 0 : i32
    %c0_i32_1 = arith.constant 0 : i32
    return %c0_i32, %c0_i32_0 : i32, i32
  }
  func.func @transform_3(%arg0: i32, %arg1: i32, %arg2: i32) -> (i32, i32, i32) {
    %c0_i32 = arith.constant 0 : i32
    %c0_i32_0 = arith.constant 0 : i32
    return %arg0, %arg1, %c0_i32 : i32, i32, i32
  }
}

module attributes {stable_mosaic.version = 11 : i64} {
  func.func @_up_conv_bnstat_kernel(%arg0: i32, %arg1: i32, %arg2: i32, %arg3: memref<1x1x108x8xbf16, #tpu.memory_space<vmem>>, %arg4: memref<16x8x4xbf16, #tpu.memory_space<vmem>>, %arg5: memref<1x4xf32, #tpu.memory_space<vmem>>, %arg6: memref<80x4xf32, #tpu.memory_space<vmem>>, %arg7: memref<1x4x80x4xbf16, #tpu.memory_space<vmem>>, %arg8: memref<1x1x2x4xf32, #tpu.memory_space<vmem>>, %arg9: memref<4x80x4xf32, #tpu.memory_space<vmem>>) attributes {dimension_semantics = [#tpu.dimension_semantics<parallel>, #tpu.dimension_semantics<parallel>, #tpu.dimension_semantics<arbitrary>], iteration_bounds = array<i64: 2, 1, 1>, scalar_prefetch = 0 : i64, scratch_operands = 1 : i64, tpu.core_type = #tpu.core_type<tc>, window_params = [{transform_indices = @transform_0, window_bounds = array<i64: 1, 1, 108, 8>}, {pipeline_mode = #tpu.pipeline_mode<synchronous>, transform_indices = @transform_1, window_bounds = array<i64: 16, 8, 4>}, {pipeline_mode = #tpu.pipeline_mode<synchronous>, transform_indices = @transform_2, window_bounds = array<i64: 1, 4>}, {pipeline_mode = #tpu.pipeline_mode<synchronous>, transform_indices = @transform_3, window_bounds = array<i64: 80, 4>}, {transform_indices = @transform_4, window_bounds = array<i64: 1, 4, 80, 4>}, {transform_indices = @transform_5, window_bounds = array<i64: 1, 1, 2, 4>}]} {
    %c0_i32 = arith.constant 0 : i32
    %0 = arith.cmpi eq, %arg2, %c0_i32 : i32
    %1 = arith.extui %0 : i1 to i32
    %c0_i32_0 = arith.constant 0 : i32
    %2 = arith.cmpi ne, %1, %c0_i32_0 : i32
    scf.if %2 {
      %cst_78 = arith.constant 0.000000e+00 : f32
      %108 = vector.broadcast %cst_78 : f32 to vector<4x80x4xf32>
      %c0_79 = arith.constant 0 : index
      %c0_80 = arith.constant 0 : index
      %c0_81 = arith.constant 0 : index
      %109 = vector.load %arg9[%c0_79, %c0_80, %c0_81] : memref<4x80x4xf32, #tpu.memory_space<vmem>>, vector<4x80x4xf32>
      tpu.vector_store %arg9[%c0_79, %c0_80, %c0_81], %108 {strides = array<i32>} : memref<4x80x4xf32, #tpu.memory_space<vmem>>, vector<4x80x4xf32>,
    } else {
    }
    %c0 = arith.constant 0 : index
    %c0_1 = arith.constant 0 : index
    %c0_2 = arith.constant 0 : index
    %c0_3 = arith.constant 0 : index
    %3 = vector.load %arg3[%c0, %c0_1, %c0_2, %c0_3] : memref<1x1x108x8xbf16, #tpu.memory_space<vmem>>, vector<1x1x108x8xbf16>
    %4 = vector.shape_cast %3 : vector<1x1x108x8xbf16> to vector<108x8xbf16>
    %c0_4 = arith.constant 0 : index
    %c0_5 = arith.constant 0 : index
    %c0_6 = arith.constant 0 : index
    %5 = vector.load %arg9[%c0_4, %c0_5, %c0_6] : memref<4x80x4xf32, #tpu.memory_space<vmem>>, vector<1x80x4xf32>
    %6 = vector.shape_cast %5 : vector<1x80x4xf32> to vector<80x4xf32>
    %c15 = arith.constant 15 : index
    %c0_7 = arith.constant 0 : index
    %c0_8 = arith.constant 0 : index
    %7 = vector.load %arg4[%c15, %c0_7, %c0_8] : memref<16x8x4xbf16, #tpu.memory_space<vmem>>, vector<1x8x4xbf16>
    %8 = vector.shape_cast %7 : vector<1x8x4xbf16> to vector<8x4xbf16>
    %cst = arith.constant dense<0.000000e+00> : vector<108x4xf32>
    %9 = tpu.matmul %4, %8, %cst {dimension_numbers = #tpu.dot_dimension_numbers<[1], [0], [0], [1], [0, 0, 1, 1], [], []>} : vector<108x8xbf16>, vector<8x4xbf16>, vector<108x4xf32> -> vector<108x4xf32>
    %10 = vector.extract_strided_slice %9 {offsets = [0, 0], sizes = [80, 4], strides = [1, 1]} : vector<108x4xf32> to vector<80x4xf32>
    %11 = arith.addf %6, %10 : vector<80x4xf32>
    %c13 = arith.constant 13 : index
    %c0_9 = arith.constant 0 : index
    %c0_10 = arith.constant 0 : index
    %12 = vector.load %arg4[%c13, %c0_9, %c0_10] : memref<16x8x4xbf16, #tpu.memory_space<vmem>>, vector<1x8x4xbf16>
    %13 = vector.shape_cast %12 : vector<1x8x4xbf16> to vector<8x4xbf16>
    %cst_11 = arith.constant dense<0.000000e+00> : vector<108x4xf32>
    %14 = tpu.matmul %4, %13, %cst_11 {dimension_numbers = #tpu.dot_dimension_numbers<[1], [0], [0], [1], [0, 0, 1, 1], [], []>} : vector<108x8xbf16>, vector<8x4xbf16>, vector<108x4xf32> -> vector<108x4xf32>
    %15 = vector.extract_strided_slice %14 {offsets = [1, 0], sizes = [80, 4], strides = [1, 1]} : vector<108x4xf32> to vector<80x4xf32>
    %16 = arith.addf %11, %15 : vector<80x4xf32>
    %c7 = arith.constant 7 : index
    %c0_12 = arith.constant 0 : index
    %c0_13 = arith.constant 0 : index
    %17 = vector.load %arg4[%c7, %c0_12, %c0_13] : memref<16x8x4xbf16, #tpu.memory_space<vmem>>, vector<1x8x4xbf16>
    %18 = vector.shape_cast %17 : vector<1x8x4xbf16> to vector<8x4xbf16>
    %cst_14 = arith.constant dense<0.000000e+00> : vector<108x4xf32>
    %19 = tpu.matmul %4, %18, %cst_14 {dimension_numbers = #tpu.dot_dimension_numbers<[1], [0], [0], [1], [0, 0, 1, 1], [], []>} : vector<108x8xbf16>, vector<8x4xbf16>, vector<108x4xf32> -> vector<108x4xf32>
    %20 = vector.extract_strided_slice %19 {offsets = [10, 0], sizes = [80, 4], strides = [1, 1]} : vector<108x4xf32> to vector<80x4xf32>
    %21 = arith.addf %16, %20 : vector<80x4xf32>
    %c5 = arith.constant 5 : index
    %c0_15 = arith.constant 0 : index
    %c0_16 = arith.constant 0 : index
    %22 = vector.load %arg4[%c5, %c0_15, %c0_16] : memref<16x8x4xbf16, #tpu.memory_space<vmem>>, vector<1x8x4xbf16>
    %23 = vector.shape_cast %22 : vector<1x8x4xbf16> to vector<8x4xbf16>
    %cst_17 = arith.constant dense<0.000000e+00> : vector<108x4xf32>
    %24 = tpu.matmul %4, %23, %cst_17 {dimension_numbers = #tpu.dot_dimension_numbers<[1], [0], [0], [1], [0, 0, 1, 1], [], []>} : vector<108x8xbf16>, vector<8x4xbf16>, vector<108x4xf32> -> vector<108x4xf32>
    %25 = vector.extract_strided_slice %24 {offsets = [11, 0], sizes = [80, 4], strides = [1, 1]} : vector<108x4xf32> to vector<80x4xf32>
    %26 = arith.addf %21, %25 : vector<80x4xf32>
    %c0_18 = arith.constant 0 : index
    %c0_19 = arith.constant 0 : index
    %c0_20 = arith.constant 0 : index
    %27 = vector.load %arg9[%c0_18, %c0_19, %c0_20] : memref<4x80x4xf32, #tpu.memory_space<vmem>>, vector<1x80x4xf32>
    %28 = vector.shape_cast %27 : vector<1x80x4xf32> to vector<80x4xf32>
    %29 = vector.shape_cast %26 : vector<80x4xf32> to vector<1x80x4xf32>
    tpu.vector_store %arg9[%c0_18, %c0_19, %c0_20], %29 {strides = array<i32>} : memref<4x80x4xf32, #tpu.memory_space<vmem>>, vector<1x80x4xf32>,
    %c1 = arith.constant 1 : index
    %c0_21 = arith.constant 0 : index
    %c0_22 = arith.constant 0 : index
    %30 = vector.load %arg9[%c1, %c0_21, %c0_22] : memref<4x80x4xf32, #tpu.memory_space<vmem>>, vector<1x80x4xf32>
    %31 = vector.shape_cast %30 : vector<1x80x4xf32> to vector<80x4xf32>
    %c14 = arith.constant 14 : index
    %c0_23 = arith.constant 0 : index
    %c0_24 = arith.constant 0 : index
    %32 = vector.load %arg4[%c14, %c0_23, %c0_24] : memref<16x8x4xbf16, #tpu.memory_space<vmem>>, vector<1x8x4xbf16>
    %33 = vector.shape_cast %32 : vector<1x8x4xbf16> to vector<8x4xbf16>
    %cst_25 = arith.constant dense<0.000000e+00> : vector<108x4xf32>
    %34 = tpu.matmul %4, %33, %cst_25 {dimension_numbers = #tpu.dot_dimension_numbers<[1], [0], [0], [1], [0, 0, 1, 1], [], []>} : vector<108x8xbf16>, vector<8x4xbf16>, vector<108x4xf32> -> vector<108x4xf32>
    %35 = vector.extract_strided_slice %34 {offsets = [1, 0], sizes = [80, 4], strides = [1, 1]} : vector<108x4xf32> to vector<80x4xf32>
    %36 = arith.addf %31, %35 : vector<80x4xf32>
    %c12 = arith.constant 12 : index
    %c0_26 = arith.constant 0 : index
    %c0_27 = arith.constant 0 : index
    %37 = vector.load %arg4[%c12, %c0_26, %c0_27] : memref<16x8x4xbf16, #tpu.memory_space<vmem>>, vector<1x8x4xbf16>
    %38 = vector.shape_cast %37 : vector<1x8x4xbf16> to vector<8x4xbf16>
    %cst_28 = arith.constant dense<0.000000e+00> : vector<108x4xf32>
    %39 = tpu.matmul %4, %38, %cst_28 {dimension_numbers = #tpu.dot_dimension_numbers<[1], [0], [0], [1], [0, 0, 1, 1], [], []>} : vector<108x8xbf16>, vector<8x4xbf16>, vector<108x4xf32> -> vector<108x4xf32>
    %40 = vector.extract_strided_slice %39 {offsets = [2, 0], sizes = [80, 4], strides = [1, 1]} : vector<108x4xf32> to vector<80x4xf32>
    %41 = arith.addf %36, %40 : vector<80x4xf32>
    %c6 = arith.constant 6 : index
    %c0_29 = arith.constant 0 : index
    %c0_30 = arith.constant 0 : index
    %42 = vector.load %arg4[%c6, %c0_29, %c0_30] : memref<16x8x4xbf16, #tpu.memory_space<vmem>>, vector<1x8x4xbf16>
    %43 = vector.shape_cast %42 : vector<1x8x4xbf16> to vector<8x4xbf16>
    %cst_31 = arith.constant dense<0.000000e+00> : vector<108x4xf32>
    %44 = tpu.matmul %4, %43, %cst_31 {dimension_numbers = #tpu.dot_dimension_numbers<[1], [0], [0], [1], [0, 0, 1, 1], [], []>} : vector<108x8xbf16>, vector<8x4xbf16>, vector<108x4xf32> -> vector<108x4xf32>
    %45 = vector.extract_strided_slice %44 {offsets = [11, 0], sizes = [80, 4], strides = [1, 1]} : vector<108x4xf32> to vector<80x4xf32>
    %46 = arith.addf %41, %45 : vector<80x4xf32>
    %c4 = arith.constant 4 : index
    %c0_32 = arith.constant 0 : index
    %c0_33 = arith.constant 0 : index
    %47 = vector.load %arg4[%c4, %c0_32, %c0_33] : memref<16x8x4xbf16, #tpu.memory_space<vmem>>, vector<1x8x4xbf16>
    %48 = vector.shape_cast %47 : vector<1x8x4xbf16> to vector<8x4xbf16>
    %cst_34 = arith.constant dense<0.000000e+00> : vector<108x4xf32>
    %49 = tpu.matmul %4, %48, %cst_34 {dimension_numbers = #tpu.dot_dimension_numbers<[1], [0], [0], [1], [0, 0, 1, 1], [], []>} : vector<108x8xbf16>, vector<8x4xbf16>, vector<108x4xf32> -> vector<108x4xf32>
    %50 = vector.extract_strided_slice %49 {offsets = [12, 0], sizes = [80, 4], strides = [1, 1]} : vector<108x4xf32> to vector<80x4xf32>
    %51 = arith.addf %46, %50 : vector<80x4xf32>
    %c1_35 = arith.constant 1 : index
    %c0_36 = arith.constant 0 : index
    %c0_37 = arith.constant 0 : index
    %52 = vector.load %arg9[%c1_35, %c0_36, %c0_37] : memref<4x80x4xf32, #tpu.memory_space<vmem>>, vector<1x80x4xf32>
    %53 = vector.shape_cast %52 : vector<1x80x4xf32> to vector<80x4xf32>
    %54 = vector.shape_cast %51 : vector<80x4xf32> to vector<1x80x4xf32>
    tpu.vector_store %arg9[%c1_35, %c0_36, %c0_37], %54 {strides = array<i32>} : memref<4x80x4xf32, #tpu.memory_space<vmem>>, vector<1x80x4xf32>,
    %c2 = arith.constant 2 : index
    %c0_38 = arith.constant 0 : index
    %c0_39 = arith.constant 0 : index
    %55 = vector.load %arg9[%c2, %c0_38, %c0_39] : memref<4x80x4xf32, #tpu.memory_space<vmem>>, vector<1x80x4xf32>
    %56 = vector.shape_cast %55 : vector<1x80x4xf32> to vector<80x4xf32>
    %c11 = arith.constant 11 : index
    %c0_40 = arith.constant 0 : index
    %c0_41 = arith.constant 0 : index
    %57 = vector.load %arg4[%c11, %c0_40, %c0_41] : memref<16x8x4xbf16, #tpu.memory_space<vmem>>, vector<1x8x4xbf16>
    %58 = vector.shape_cast %57 : vector<1x8x4xbf16> to vector<8x4xbf16>
    %cst_42 = arith.constant dense<0.000000e+00> : vector<108x4xf32>
    %59 = tpu.matmul %4, %58, %cst_42 {dimension_numbers = #tpu.dot_dimension_numbers<[1], [0], [0], [1], [0, 0, 1, 1], [], []>} : vector<108x8xbf16>, vector<8x4xbf16>, vector<108x4xf32> -> vector<108x4xf32>
    %60 = vector.extract_strided_slice %59 {offsets = [10, 0], sizes = [80, 4], strides = [1, 1]} : vector<108x4xf32> to vector<80x4xf32>
    %61 = arith.addf %56, %60 : vector<80x4xf32>
    %c9 = arith.constant 9 : index
    %c0_43 = arith.constant 0 : index
    %c0_44 = arith.constant 0 : index
    %62 = vector.load %arg4[%c9, %c0_43, %c0_44] : memref<16x8x4xbf16, #tpu.memory_space<vmem>>, vector<1x8x4xbf16>
    %63 = vector.shape_cast %62 : vector<1x8x4xbf16> to vector<8x4xbf16>
    %cst_45 = arith.constant dense<0.000000e+00> : vector<108x4xf32>
    %64 = tpu.matmul %4, %63, %cst_45 {dimension_numbers = #tpu.dot_dimension_numbers<[1], [0], [0], [1], [0, 0, 1, 1], [], []>} : vector<108x8xbf16>, vector<8x4xbf16>, vector<108x4xf32> -> vector<108x4xf32>
    %65 = vector.extract_strided_slice %64 {offsets = [11, 0], sizes = [80, 4], strides = [1, 1]} : vector<108x4xf32> to vector<80x4xf32>
    %66 = arith.addf %61, %65 : vector<80x4xf32>
    %c3 = arith.constant 3 : index
    %c0_46 = arith.constant 0 : index
    %c0_47 = arith.constant 0 : index
    %67 = vector.load %arg4[%c3, %c0_46, %c0_47] : memref<16x8x4xbf16, #tpu.memory_space<vmem>>, vector<1x8x4xbf16>
    %68 = vector.shape_cast %67 : vector<1x8x4xbf16> to vector<8x4xbf16>
    %cst_48 = arith.constant dense<0.000000e+00> : vector<108x4xf32>
    %69 = tpu.matmul %4, %68, %cst_48 {dimension_numbers = #tpu.dot_dimension_numbers<[1], [0], [0], [1], [0, 0, 1, 1], [], []>} : vector<108x8xbf16>, vector<8x4xbf16>, vector<108x4xf32> -> vector<108x4xf32>
    %70 = vector.extract_strided_slice %69 {offsets = [20, 0], sizes = [80, 4], strides = [1, 1]} : vector<108x4xf32> to vector<80x4xf32>
    %71 = arith.addf %66, %70 : vector<80x4xf32>
    %c1_49 = arith.constant 1 : index
    %c0_50 = arith.constant 0 : index
    %c0_51 = arith.constant 0 : index
    %72 = vector.load %arg4[%c1_49, %c0_50, %c0_51] : memref<16x8x4xbf16, #tpu.memory_space<vmem>>, vector<1x8x4xbf16>
    %73 = vector.shape_cast %72 : vector<1x8x4xbf16> to vector<8x4xbf16>
    %cst_52 = arith.constant dense<0.000000e+00> : vector<108x4xf32>
    %74 = tpu.matmul %4, %73, %cst_52 {dimension_numbers = #tpu.dot_dimension_numbers<[1], [0], [0], [1], [0, 0, 1, 1], [], []>} : vector<108x8xbf16>, vector<8x4xbf16>, vector<108x4xf32> -> vector<108x4xf32>
    %75 = vector.extract_strided_slice %74 {offsets = [21, 0], sizes = [80, 4], strides = [1, 1]} : vector<108x4xf32> to vector<80x4xf32>
    %76 = arith.addf %71, %75 : vector<80x4xf32>
    %c2_53 = arith.constant 2 : index
    %c0_54 = arith.constant 0 : index
    %c0_55 = arith.constant 0 : index
    %77 = vector.load %arg9[%c2_53, %c0_54, %c0_55] : memref<4x80x4xf32, #tpu.memory_space<vmem>>, vector<1x80x4xf32>
    %78 = vector.shape_cast %77 : vector<1x80x4xf32> to vector<80x4xf32>
    %79 = vector.shape_cast %76 : vector<80x4xf32> to vector<1x80x4xf32>
    tpu.vector_store %arg9[%c2_53, %c0_54, %c0_55], %79 {strides = array<i32>} : memref<4x80x4xf32, #tpu.memory_space<vmem>>, vector<1x80x4xf32>,
    %c3_56 = arith.constant 3 : index
    %c0_57 = arith.constant 0 : index
    %c0_58 = arith.constant 0 : index
    %80 = vector.load %arg9[%c3_56, %c0_57, %c0_58] : memref<4x80x4xf32, #tpu.memory_space<vmem>>, vector<1x80x4xf32>
    %81 = vector.shape_cast %80 : vector<1x80x4xf32> to vector<80x4xf32>
    %c10 = arith.constant 10 : index
    %c0_59 = arith.constant 0 : index
    %c0_60 = arith.constant 0 : index
    %82 = vector.load %arg4[%c10, %c0_59, %c0_60] : memref<16x8x4xbf16, #tpu.memory_space<vmem>>, vector<1x8x4xbf16>
    %83 = vector.shape_cast %82 : vector<1x8x4xbf16> to vector<8x4xbf16>
    %cst_61 = arith.constant dense<0.000000e+00> : vector<108x4xf32>
    %84 = tpu.matmul %4, %83, %cst_61 {dimension_numbers = #tpu.dot_dimension_numbers<[1], [0], [0], [1], [0, 0, 1, 1], [], []>} : vector<108x8xbf16>, vector<8x4xbf16>, vector<108x4xf32> -> vector<108x4xf32>
    %85 = vector.extract_strided_slice %84 {offsets = [11, 0], sizes = [80, 4], strides = [1, 1]} : vector<108x4xf32> to vector<80x4xf32>
    %86 = arith.addf %81, %85 : vector<80x4xf32>
    %c8 = arith.constant 8 : index
    %c0_62 = arith.constant 0 : index
    %c0_63 = arith.constant 0 : index
    %87 = vector.load %arg4[%c8, %c0_62, %c0_63] : memref<16x8x4xbf16, #tpu.memory_space<vmem>>, vector<1x8x4xbf16>
    %88 = vector.shape_cast %87 : vector<1x8x4xbf16> to vector<8x4xbf16>
    %cst_64 = arith.constant dense<0.000000e+00> : vector<108x4xf32>
    %89 = tpu.matmul %4, %88, %cst_64 {dimension_numbers = #tpu.dot_dimension_numbers<[1], [0], [0], [1], [0, 0, 1, 1], [], []>} : vector<108x8xbf16>, vector<8x4xbf16>, vector<108x4xf32> -> vector<108x4xf32>
    %90 = vector.extract_strided_slice %89 {offsets = [12, 0], sizes = [80, 4], strides = [1, 1]} : vector<108x4xf32> to vector<80x4xf32>
    %91 = arith.addf %86, %90 : vector<80x4xf32>
    %c2_65 = arith.constant 2 : index
    %c0_66 = arith.constant 0 : index
    %c0_67 = arith.constant 0 : index
    %92 = vector.load %arg4[%c2_65, %c0_66, %c0_67] : memref<16x8x4xbf16, #tpu.memory_space<vmem>>, vector<1x8x4xbf16>
    %93 = vector.shape_cast %92 : vector<1x8x4xbf16> to vector<8x4xbf16>
    %cst_68 = arith.constant dense<0.000000e+00> : vector<108x4xf32>
    %94 = tpu.matmul %4, %93, %cst_68 {dimension_numbers = #tpu.dot_dimension_numbers<[1], [0], [0], [1], [0, 0, 1, 1], [], []>} : vector<108x8xbf16>, vector<8x4xbf16>, vector<108x4xf32> -> vector<108x4xf32>
    %95 = vector.extract_strided_slice %94 {offsets = [21, 0], sizes = [80, 4], strides = [1, 1]} : vector<108x4xf32> to vector<80x4xf32>
    %96 = arith.addf %91, %95 : vector<80x4xf32>
    %c0_69 = arith.constant 0 : index
    %c0_70 = arith.constant 0 : index
    %c0_71 = arith.constant 0 : index
    %97 = vector.load %arg4[%c0_69, %c0_70, %c0_71] : memref<16x8x4xbf16, #tpu.memory_space<vmem>>, vector<1x8x4xbf16>
    %98 = vector.shape_cast %97 : vector<1x8x4xbf16> to vector<8x4xbf16>
    %cst_72 = arith.constant dense<0.000000e+00> : vector<108x4xf32>
    %99 = tpu.matmul %4, %98, %cst_72 {dimension_numbers = #tpu.dot_dimension_numbers<[1], [0], [0], [1], [0, 0, 1, 1], [], []>} : vector<108x8xbf16>, vector<8x4xbf16>, vector<108x4xf32> -> vector<108x4xf32>
    %100 = vector.extract_strided_slice %99 {offsets = [22, 0], sizes = [80, 4], strides = [1, 1]} : vector<108x4xf32> to vector<80x4xf32>
    %101 = arith.addf %96, %100 : vector<80x4xf32>
    %c3_73 = arith.constant 3 : index
    %c0_74 = arith.constant 0 : index
    %c0_75 = arith.constant 0 : index
    %102 = vector.load %arg9[%c3_73, %c0_74, %c0_75] : memref<4x80x4xf32, #tpu.memory_space<vmem>>, vector<1x80x4xf32>
    %103 = vector.shape_cast %102 : vector<1x80x4xf32> to vector<80x4xf32>
    %104 = vector.shape_cast %101 : vector<80x4xf32> to vector<1x80x4xf32>
    tpu.vector_store %arg9[%c3_73, %c0_74, %c0_75], %104 {strides = array<i32>} : memref<4x80x4xf32, #tpu.memory_space<vmem>>, vector<1x80x4xf32>,
    %c0_i32_76 = arith.constant 0 : i32
    %105 = arith.cmpi eq, %arg2, %c0_i32_76 : i32
    %106 = arith.extui %105 : i1 to i32
    %c0_i32_77 = arith.constant 0 : i32
    %107 = arith.cmpi ne, %106, %c0_i32_77 : i32
    scf.if %107 {
      %c0_78 = arith.constant 0 : index
      %c0_79 = arith.constant 0 : index
      %108 = vector.load %arg5[%c0_78, %c0_79] : memref<1x4xf32, #tpu.memory_space<vmem>>, vector<1x4xf32>
      %c0_80 = arith.constant 0 : index
      %c0_81 = arith.constant 0 : index
      %109 = vector.load %arg6[%c0_80, %c0_81] : memref<80x4xf32, #tpu.memory_space<vmem>>, vector<80x4xf32>
      %cst_82 = arith.constant 0.000000e+00 : f32
      %110 = vector.broadcast %cst_82 : f32 to vector<1x4xf32>
      %cst_83 = arith.constant 0.000000e+00 : f32
      %111 = vector.broadcast %cst_83 : f32 to vector<1x4xf32>
      %c0_84 = arith.constant 0 : index
      %c0_85 = arith.constant 0 : index
      %c0_86 = arith.constant 0 : index
      %112 = vector.load %arg9[%c0_84, %c0_85, %c0_86] : memref<4x80x4xf32, #tpu.memory_space<vmem>>, vector<1x80x4xf32>
      %113 = vector.shape_cast %112 : vector<1x80x4xf32> to vector<80x4xf32>
      %114 = vector.broadcast %108 : vector<1x4xf32> to vector<80x4xf32>
      %115 = arith.addf %113, %114 : vector<80x4xf32>
      %116 = arith.truncf %115 : vector<80x4xf32> to vector<80x4xbf16>
      %c0_87 = arith.constant 0 : index
      %c0_88 = arith.constant 0 : index
      %c0_89 = arith.constant 0 : index
      %c0_90 = arith.constant 0 : index
      %117 = vector.load %arg7[%c0_87, %c0_88, %c0_89, %c0_90] : memref<1x4x80x4xbf16, #tpu.memory_space<vmem>>, vector<1x1x80x4xbf16>
      %118 = vector.shape_cast %117 : vector<1x1x80x4xbf16> to vector<80x4xbf16>
      %119 = vector.shape_cast %116 : vector<80x4xbf16> to vector<1x1x80x4xbf16>
      tpu.vector_store %arg7[%c0_87, %c0_88, %c0_89, %c0_90], %119 {strides = array<i32>} : memref<1x4x80x4xbf16, #tpu.memory_space<vmem>>, vector<1x1x80x4xbf16>,
      %120 = arith.mulf %115, %109 : vector<80x4xf32>
      %cst_91 = arith.constant dense<0.000000e+00> : vector<4xf32>
      %121 = vector.multi_reduction <add>, %120, %cst_91 [0] : vector<80x4xf32> to vector<4xf32>
      %122 = vector.shape_cast %121 : vector<4xf32> to vector<1x4xf32>
      %123 = arith.addf %110, %122 : vector<1x4xf32>
      %124 = arith.mulf %120, %115 : vector<80x4xf32>
      %cst_92 = arith.constant dense<0.000000e+00> : vector<4xf32>
      %125 = vector.multi_reduction <add>, %124, %cst_92 [0] : vector<80x4xf32> to vector<4xf32>
      %126 = vector.shape_cast %125 : vector<4xf32> to vector<1x4xf32>
      %127 = arith.addf %111, %126 : vector<1x4xf32>
      %c1_93 = arith.constant 1 : index
      %c0_94 = arith.constant 0 : index
      %c0_95 = arith.constant 0 : index
      %128 = vector.load %arg9[%c1_93, %c0_94, %c0_95] : memref<4x80x4xf32, #tpu.memory_space<vmem>>, vector<1x80x4xf32>
      %129 = vector.shape_cast %128 : vector<1x80x4xf32> to vector<80x4xf32>
      %130 = vector.broadcast %108 : vector<1x4xf32> to vector<80x4xf32>
      %131 = arith.addf %129, %130 : vector<80x4xf32>
      %132 = arith.truncf %131 : vector<80x4xf32> to vector<80x4xbf16>
      %c0_96 = arith.constant 0 : index
      %c1_97 = arith.constant 1 : index
      %c0_98 = arith.constant 0 : index
      %c0_99 = arith.constant 0 : index
      %133 = vector.load %arg7[%c0_96, %c1_97, %c0_98, %c0_99] : memref<1x4x80x4xbf16, #tpu.memory_space<vmem>>, vector<1x1x80x4xbf16>
      %134 = vector.shape_cast %133 : vector<1x1x80x4xbf16> to vector<80x4xbf16>
      %135 = vector.shape_cast %132 : vector<80x4xbf16> to vector<1x1x80x4xbf16>
      tpu.vector_store %arg7[%c0_96, %c1_97, %c0_98, %c0_99], %135 {strides = array<i32>} : memref<1x4x80x4xbf16, #tpu.memory_space<vmem>>, vector<1x1x80x4xbf16>,
      %136 = arith.mulf %131, %109 : vector<80x4xf32>
      %cst_100 = arith.constant dense<0.000000e+00> : vector<4xf32>
      %137 = vector.multi_reduction <add>, %136, %cst_100 [0] : vector<80x4xf32> to vector<4xf32>
      %138 = vector.shape_cast %137 : vector<4xf32> to vector<1x4xf32>
      %139 = arith.addf %123, %138 : vector<1x4xf32>
      %140 = arith.mulf %136, %131 : vector<80x4xf32>
      %cst_101 = arith.constant dense<0.000000e+00> : vector<4xf32>
      %141 = vector.multi_reduction <add>, %140, %cst_101 [0] : vector<80x4xf32> to vector<4xf32>
      %142 = vector.shape_cast %141 : vector<4xf32> to vector<1x4xf32>
      %143 = arith.addf %127, %142 : vector<1x4xf32>
      %c2_102 = arith.constant 2 : index
      %c0_103 = arith.constant 0 : index
      %c0_104 = arith.constant 0 : index
      %144 = vector.load %arg9[%c2_102, %c0_103, %c0_104] : memref<4x80x4xf32, #tpu.memory_space<vmem>>, vector<1x80x4xf32>
      %145 = vector.shape_cast %144 : vector<1x80x4xf32> to vector<80x4xf32>
      %146 = vector.broadcast %108 : vector<1x4xf32> to vector<80x4xf32>
      %147 = arith.addf %145, %146 : vector<80x4xf32>
      %148 = arith.truncf %147 : vector<80x4xf32> to vector<80x4xbf16>
      %c0_105 = arith.constant 0 : index
      %c2_106 = arith.constant 2 : index
      %c0_107 = arith.constant 0 : index
      %c0_108 = arith.constant 0 : index
      %149 = vector.load %arg7[%c0_105, %c2_106, %c0_107, %c0_108] : memref<1x4x80x4xbf16, #tpu.memory_space<vmem>>, vector<1x1x80x4xbf16>
      %150 = vector.shape_cast %149 : vector<1x1x80x4xbf16> to vector<80x4xbf16>
      %151 = vector.shape_cast %148 : vector<80x4xbf16> to vector<1x1x80x4xbf16>
      tpu.vector_store %arg7[%c0_105, %c2_106, %c0_107, %c0_108], %151 {strides = array<i32>} : memref<1x4x80x4xbf16, #tpu.memory_space<vmem>>, vector<1x1x80x4xbf16>,
      %152 = arith.mulf %147, %109 : vector<80x4xf32>
      %cst_109 = arith.constant dense<0.000000e+00> : vector<4xf32>
      %153 = vector.multi_reduction <add>, %152, %cst_109 [0] : vector<80x4xf32> to vector<4xf32>
      %154 = vector.shape_cast %153 : vector<4xf32> to vector<1x4xf32>
      %155 = arith.addf %139, %154 : vector<1x4xf32>
      %156 = arith.mulf %152, %147 : vector<80x4xf32>
      %cst_110 = arith.constant dense<0.000000e+00> : vector<4xf32>
      %157 = vector.multi_reduction <add>, %156, %cst_110 [0] : vector<80x4xf32> to vector<4xf32>
      %158 = vector.shape_cast %157 : vector<4xf32> to vector<1x4xf32>
      %159 = arith.addf %143, %158 : vector<1x4xf32>
      %c3_111 = arith.constant 3 : index
      %c0_112 = arith.constant 0 : index
      %c0_113 = arith.constant 0 : index
      %160 = vector.load %arg9[%c3_111, %c0_112, %c0_113] : memref<4x80x4xf32, #tpu.memory_space<vmem>>, vector<1x80x4xf32>
      %161 = vector.shape_cast %160 : vector<1x80x4xf32> to vector<80x4xf32>
      %162 = vector.broadcast %108 : vector<1x4xf32> to vector<80x4xf32>
      %163 = arith.addf %161, %162 : vector<80x4xf32>
      %164 = arith.truncf %163 : vector<80x4xf32> to vector<80x4xbf16>
      %c0_114 = arith.constant 0 : index
      %c3_115 = arith.constant 3 : index
      %c0_116 = arith.constant 0 : index
      %c0_117 = arith.constant 0 : index
      %165 = vector.load %arg7[%c0_114, %c3_115, %c0_116, %c0_117] : memref<1x4x80x4xbf16, #tpu.memory_space<vmem>>, vector<1x1x80x4xbf16>
      %166 = vector.shape_cast %165 : vector<1x1x80x4xbf16> to vector<80x4xbf16>
      %167 = vector.shape_cast %164 : vector<80x4xbf16> to vector<1x1x80x4xbf16>
      tpu.vector_store %arg7[%c0_114, %c3_115, %c0_116, %c0_117], %167 {strides = array<i32>} : memref<1x4x80x4xbf16, #tpu.memory_space<vmem>>, vector<1x1x80x4xbf16>,
      %168 = arith.mulf %163, %109 : vector<80x4xf32>
      %cst_118 = arith.constant dense<0.000000e+00> : vector<4xf32>
      %169 = vector.multi_reduction <add>, %168, %cst_118 [0] : vector<80x4xf32> to vector<4xf32>
      %170 = vector.shape_cast %169 : vector<4xf32> to vector<1x4xf32>
      %171 = arith.addf %155, %170 : vector<1x4xf32>
      %172 = arith.mulf %168, %163 : vector<80x4xf32>
      %cst_119 = arith.constant dense<0.000000e+00> : vector<4xf32>
      %173 = vector.multi_reduction <add>, %172, %cst_119 [0] : vector<80x4xf32> to vector<4xf32>
      %174 = vector.shape_cast %173 : vector<4xf32> to vector<1x4xf32>
      %175 = arith.addf %159, %174 : vector<1x4xf32>
      %c0_120 = arith.constant 0 : index
      %c0_121 = arith.constant 0 : index
      %c0_122 = arith.constant 0 : index
      %c0_123 = arith.constant 0 : index
      %176 = vector.load %arg8[%c0_120, %c0_121, %c0_122, %c0_123] : memref<1x1x2x4xf32, #tpu.memory_space<vmem>>, vector<1x1x1x4xf32>
      %177 = vector.shape_cast %176 : vector<1x1x1x4xf32> to vector<1x4xf32>
      %178 = vector.shape_cast %171 : vector<1x4xf32> to vector<1x1x1x4xf32>
      tpu.vector_store %arg8[%c0_120, %c0_121, %c0_122, %c0_123], %178 {strides = array<i32>} : memref<1x1x2x4xf32, #tpu.memory_space<vmem>>, vector<1x1x1x4xf32>,
      %c0_124 = arith.constant 0 : index
      %c0_125 = arith.constant 0 : index
      %c1_126 = arith.constant 1 : index
      %c0_127 = arith.constant 0 : index
      %179 = vector.load %arg8[%c0_124, %c0_125, %c1_126, %c0_127] : memref<1x1x2x4xf32, #tpu.memory_space<vmem>>, vector<1x1x1x4xf32>
      %180 = vector.shape_cast %179 : vector<1x1x1x4xf32> to vector<1x4xf32>
      %181 = vector.shape_cast %175 : vector<1x4xf32> to vector<1x1x1x4xf32>
      tpu.vector_store %arg8[%c0_124, %c0_125, %c1_126, %c0_127], %181 {strides = array<i32>} : memref<1x1x2x4xf32, #tpu.memory_space<vmem>>, vector<1x1x1x4xf32>,
    } else {
    }
    return
  }
  func.func @transform_0(%arg0: i32, %arg1: i32, %arg2: i32) -> (i32, i32, i32, i32) {
    %c0_i32 = arith.constant 0 : i32
    %c0_i32_0 = arith.constant 0 : i32
    return %arg0, %arg1, %c0_i32, %arg2 : i32, i32, i32, i32
  }
  func.func @transform_1(%arg0: i32, %arg1: i32, %arg2: i32) -> (i32, i32, i32) {
    %c0_i32 = arith.constant 0 : i32
    %c0_i32_0 = arith.constant 0 : i32
    %c0_i32_1 = arith.constant 0 : i32
    %c0_i32_2 = arith.constant 0 : i32
    return %c0_i32, %c0_i32_0, %c0_i32_1 : i32, i32, i32
  }
  func.func @transform_2(%arg0: i32, %arg1: i32, %arg2: i32) -> (i32, i32) {
    %c0_i32 = arith.constant 0 : i32
    %c0_i32_0 = arith.constant 0 : i32
    %c0_i32_1 = arith.constant 0 : i32
    return %c0_i32, %c0_i32_0 : i32, i32
  }
  func.func @transform_3(%arg0: i32, %arg1: i32, %arg2: i32) -> (i32, i32) {
    %c0_i32 = arith.constant 0 : i32
    %c0_i32_0 = arith.constant 0 : i32
    %c0_i32_1 = arith.constant 0 : i32
    return %c0_i32, %c0_i32_0 : i32, i32
  }
  func.func @transform_4(%arg0: i32, %arg1: i32, %arg2: i32) -> (i32, i32, i32, i32) {
    %c0_i32 = arith.constant 0 : i32
    %c0_i32_0 = arith.constant 0 : i32
    %c0_i32_1 = arith.constant 0 : i32
    return %arg0, %c0_i32, %arg1, %c0_i32_0 : i32, i32, i32, i32
  }
  func.func @transform_5(%arg0: i32, %arg1: i32, %arg2: i32) -> (i32, i32, i32, i32) {
    %c0_i32 = arith.constant 0 : i32
    %c0_i32_0 = arith.constant 0 : i32
    %c0_i32_1 = arith.constant 0 : i32
    return %arg0, %arg1, %c0_i32, %c0_i32_0 : i32, i32, i32, i32
  }
}

module attributes {stable_mosaic.version = 11 : i64} {
  func.func @_bn_apply_kernel(%arg0: i32, %arg1: memref<640x4xbf16, #tpu.memory_space<vmem>>, %arg2: memref<1x4xf32, #tpu.memory_space<vmem>>, %arg3: memref<1x4xf32, #tpu.memory_space<vmem>>, %arg4: memref<640x4xf32, #tpu.memory_space<vmem>>) attributes {dimension_semantics = [#tpu.dimension_semantics<parallel>], iteration_bounds = array<i64: 1>, scalar_prefetch = 0 : i64, scratch_operands = 0 : i64, tpu.core_type = #tpu.core_type<tc>, window_params = [{transform_indices = @transform_0, window_bounds = array<i64: 640, 4>}, {pipeline_mode = #tpu.pipeline_mode<synchronous>, transform_indices = @transform_1, window_bounds = array<i64: 1, 4>}, {pipeline_mode = #tpu.pipeline_mode<synchronous>, transform_indices = @transform_2, window_bounds = array<i64: 1, 4>}, {transform_indices = @transform_3, window_bounds = array<i64: 640, 4>}]} {
    %c0 = arith.constant 0 : index
    %c0_0 = arith.constant 0 : index
    %0 = vector.load %arg1[%c0, %c0_0] : memref<640x4xbf16, #tpu.memory_space<vmem>>, vector<640x4xbf16>
    %1 = arith.extf %0 : vector<640x4xbf16> to vector<640x4xf32>
    %c0_1 = arith.constant 0 : index
    %c0_2 = arith.constant 0 : index
    %2 = vector.load %arg2[%c0_1, %c0_2] : memref<1x4xf32, #tpu.memory_space<vmem>>, vector<1x4xf32>
    %3 = vector.broadcast %2 : vector<1x4xf32> to vector<640x4xf32>
    %4 = arith.mulf %1, %3 : vector<640x4xf32>
    %c0_3 = arith.constant 0 : index
    %c0_4 = arith.constant 0 : index
    %5 = vector.load %arg3[%c0_3, %c0_4] : memref<1x4xf32, #tpu.memory_space<vmem>>, vector<1x4xf32>
    %6 = vector.broadcast %5 : vector<1x4xf32> to vector<640x4xf32>
    %7 = arith.addf %4, %6 : vector<640x4xf32>
    %c0_5 = arith.constant 0 : index
    %c0_6 = arith.constant 0 : index
    %8 = vector.load %arg4[%c0_5, %c0_6] : memref<640x4xf32, #tpu.memory_space<vmem>>, vector<640x4xf32>
    tpu.vector_store %arg4[%c0_5, %c0_6], %7 {strides = array<i32>} : memref<640x4xf32, #tpu.memory_space<vmem>>, vector<640x4xf32>,
    return
  }
  func.func @transform_0(%arg0: i32) -> (i32, i32) {
    %c0_i32 = arith.constant 0 : i32
    %c0_i32_0 = arith.constant 0 : i32
    return %arg0, %c0_i32 : i32, i32
  }
  func.func @transform_1(%arg0: i32) -> (i32, i32) {
    %c0_i32 = arith.constant 0 : i32
    %c0_i32_0 = arith.constant 0 : i32
    %c0_i32_1 = arith.constant 0 : i32
    return %c0_i32, %c0_i32_0 : i32, i32
  }
  func.func @transform_2(%arg0: i32) -> (i32, i32) {
    %c0_i32 = arith.constant 0 : i32
    %c0_i32_0 = arith.constant 0 : i32
    %c0_i32_1 = arith.constant 0 : i32
    return %c0_i32, %c0_i32_0 : i32, i32
  }
  func.func @transform_3(%arg0: i32) -> (i32, i32) {
    %c0_i32 = arith.constant 0 : i32
    %c0_i32_0 = arith.constant 0 : i32
    return %arg0, %c0_i32 : i32, i32
  }
}

</mosaic_0001>

<llo_original>
// kernel: patch_soft_unet_innermost_forward.3
$region0: #{patch_soft_unet_innermost_forward.3}
  #allocation0 [shape = 'u32[]', space=smem, size = 0x4, offset = 0x4, fixed_abs, tag = 'smem constant byte address 0x4 - core index']
  #allocation1 [shape = 'u32[72,128]{1,0:T(1,128)}', space=vmem, size = 0x9000, scoped, tag = 'internal scratch']
  #allocation2 [shape = 'f32[64,8]{1,0:T(8,128)}', space=vmem, size = 0x8000, scoped, tag = 'scratch operand']
  %s0 = inlined_call_operand.vmem [shape: bf16[2,1,72,32], index: 0, kind: input, shape index: {}]
  %s1 = inlined_call_operand.vmem [shape: bf16[2,32,8], index: 1, kind: input, shape index: {}]
  %s2 = inlined_call_operand.vmem [shape: f32[1,8], index: 2, kind: input, shape index: {}]
  %s3 = inlined_call_operand.vmem [shape: bf16[2,64,8], index: 3, kind: output, shape index: {}]
  %s4 = sld [smem:[#allocation0]]
  $region53: #{patch_soft_unet_innermost_forward.3} parent=0
    _
  %s6 = ssub.s32 1, %s4
  %s7 = scalar_select 0, %s6, %s4
  loop: start=0, step=1, limit=4
  $region2: #{patch_soft_unet_innermost_forward.3} parent=0 // loop_pre_header
    _
  $region3: #{patch_soft_unet_innermost_forward.3} parent=0 // loop_header
    %s9 = sphi 0, %s13
    %p10 = scmp.ge.s32.totalorder %s9, 4
    %s16 = sphi 0, %s35
    %s17 = sphi 0, %s31
    %s18 = sphi 0, %s27
    %s19 = sphi 0, %s16
    %s20 = sphi 0, %s17
    %s21 = sphi 0, %s18
    %s22 = sphi 0, %s19
    %s23 = sphi 0, %s20
    %s24 = sphi 0, %s21
    %s42 = sphi 0, %s44
    %s45 = sphi 0, %s42
    %s46 = sphi 0, %s45
    %s62 = sphi 0, %s46
    %s66 = sphi 0, %s66
    %s68 = sphi 0, %s66
    %s69 = sphi 0, %s68
    %s83 = sphi 0, %s69
    %s87 = sphi 0, %s87
    %s89 = sphi 0, %s87
    %s90 = sphi 0, %s89
    %s104 = sphi 0, %s90
    %s112 = sphi 0, %s114
    %s115 = sphi 0, %s112
    %s116 = sphi 0, %s115
    %s132 = sphi 0, %s116
  $region4: #{patch_soft_unet_innermost_forward.3} parent=0 // loop_header_branch
    %12 = sbr.rel (%p10) target = $region8
  $region5: #{patch_soft_unet_innermost_forward.3} parent=0 // loop_body
    %s14 = ssub.s32 %s9, 1
    %s15 = ssub.s32 %s9, 2
    %s25 = sadd.s32 1, %s18
    %p26 = scmp.ge.s32.totalorder %s25, 1
    %s27 = scalar_select %p26, 0, %s25
    %s28 = sadd.s32 1, %s17
    %s29 = scalar_select %p26, %s28, %s17
    %p30 = scmp.ge.s32.totalorder %s29, 1
    %s31 = scalar_select %p30, 0, %s29
    %s32 = sadd.s32 1, %s16
    %s33 = scalar_select %p30, %s32, %s16
    %p34 = scmp.ge.s32.totalorder %s33, 2
    %s35 = scalar_select %p34, 0, %s33
    %s36 = ssub.s32 %s16, %s35
    %s37 = ssub.s32 %s17, %s31
    %s38 = sor.u32 %s36, %s37
    %s39 = ssub.s32 %s18, %s27
    %s40 = sor.u32 %s38, %s39
    %p41 = scmp.eq.s32.totalorder %s40, 0
    %s43 = sadd.s32 %s42, 1
    %s44 = scalar_select %p41, %s42, %s43
    %p47 = pneg %p41
    %p48 = scmp.eq.s32.totalorder %s9, 1
    %p49 = por %p47, %p48
    %p50 = scmp.ne.s32.totalorder %s42, %s45
    %p51 = scmp.eq.s32.totalorder %s9, 0
    %p52 = por %p50, %p51
    %p53 = scmp.ne.s32.totalorder %s42, %s45
    %p54 = scmp.eq.s32.totalorder %s14, 1
    %p55 = por %p53, %p54
    %p56 = scmp.ne.s32.totalorder %s45, %s46
    %p57 = scmp.eq.s32.totalorder %s14, 0
    %p58 = por %p56, %p57
    %p59 = scmp.ne.s32.totalorder %s45, %s46
    %p60 = scmp.eq.s32.totalorder %s15, 1
    %p61 = por %p59, %p60
    %p63 = scmp.ne.s32.totalorder %s46, %s62
    %p64 = scmp.eq.s32.totalorder %s15, 0
    %p65 = por %p63, %p64
    %s67 = sadd.s32 %s66, 1
    %p70 = scmp.eq.s32.totalorder %s9, 1
    %p71 = scmp.ne.s32.totalorder %s66, %s68
    %p72 = scmp.eq.s32.totalorder %s9, 0
    %p73 = por %p71, %p72
    %p74 = scmp.ne.s32.totalorder %s66, %s68
    %p75 = scmp.eq.s32.totalorder %s14, 1
    %p76 = por %p74, %p75
    %p77 = scmp.ne.s32.totalorder %s68, %s69
    %p78 = scmp.eq.s32.totalorder %s14, 0
    %p79 = por %p77, %p78
    %p80 = scmp.ne.s32.totalorder %s68, %s69
    %p81 = scmp.eq.s32.totalorder %s15, 1
    %p82 = por %p80, %p81
    %p84 = scmp.ne.s32.totalorder %s69, %s83
    %p85 = scmp.eq.s32.totalorder %s15, 0
    %p86 = por %p84, %p85
    %s88 = sadd.s32 %s87, 1
    %p91 = scmp.eq.s32.totalorder %s9, 1
    %p92 = scmp.ne.s32.totalorder %s87, %s89
    %p93 = scmp.eq.s32.totalorder %s9, 0
    %p94 = por %p92, %p93
    %p95 = scmp.ne.s32.totalorder %s87, %s89
    %p96 = scmp.eq.s32.totalorder %s14, 1
    %p97 = por %p95, %p96
    %p98 = scmp.ne.s32.totalorder %s89, %s90
    %p99 = scmp.eq.s32.totalorder %s14, 0
    %p100 = por %p98, %p99
    %p101 = scmp.ne.s32.totalorder %s89, %s90
    %p102 = scmp.eq.s32.totalorder %s15, 1
    %p103 = por %p101, %p102
    %p105 = scmp.ne.s32.totalorder %s90, %s104
    %p106 = scmp.eq.s32.totalorder %s15, 0
    %p107 = por %p105, %p106
    %s108 = ssub.s32 %s16, %s35
    %s109 = ssub.s32 %s17, %s31
    %s110 = sor.u32 %s108, %s109
    %p111 = scmp.eq.s32.totalorder %s110, 0
    %s113 = sadd.s32 %s112, 1
    %s114 = scalar_select %p111, %s112, %s113
    %p117 = pneg %p111
    %p118 = scmp.eq.s32.totalorder %s9, 1
    %p119 = por %p117, %p118
    %p120 = scmp.ne.s32.totalorder %s112, %s115
    %p121 = scmp.eq.s32.totalorder %s9, 0
    %p122 = por %p120, %p121
    %p123 = scmp.ne.s32.totalorder %s112, %s115
    %p124 = scmp.eq.s32.totalorder %s14, 1
    %p125 = por %p123, %p124
    %p126 = scmp.ne.s32.totalorder %s115, %s116
    %p127 = scmp.eq.s32.totalorder %s14, 0
    %p128 = por %p126, %p127
    %p129 = scmp.ne.s32.totalorder %s115, %s116
    %p130 = scmp.eq.s32.totalorder %s15, 1
    %p131 = por %p129, %p130
    %p133 = scmp.ne.s32.totalorder %s116, %s132
    %p134 = scmp.eq.s32.totalorder %s15, 0
    %p135 = por %p133, %p134
    %p136 = scmp.le.s32.totalorder 1, %s9
    %p137 = scmp.lt.s32.totalorder %s9, 3
    %p138 = pnand %p136, %p137
    %p139 = pneg %p138
    // Predicated region
    $region9: #{patch_soft_unet_innermost_forward.3} parent=5 // pred_check
      _
    $region10: #{patch_soft_unet_innermost_forward.3} parent=5 // pred_check_branch
      %141 = sbr.rel (%p138) target = $region12
    $region11: #{patch_soft_unet_innermost_forward.3} parent=5 // pred_region
      %s142 = ssub.s32 %s9, 1
      // Predicated region
      $region13: #{patch_soft_unet_innermost_forward.3} parent=11 // pred_check
        %p143 = pneg %p79
      $region14: #{patch_soft_unet_innermost_forward.3} parent=11 // pred_check_branch
        %145 = sbr.rel (%p143) target = $region16
      $region15: #{patch_soft_unet_innermost_forward.3} parent=11 // pred_region
        _
      $region16: #{patch_soft_unet_innermost_forward.3} parent=11 // pred_fallthru
        _
      // Predicated region
      $region17: #{patch_soft_unet_innermost_forward.3} parent=11 // pred_check
        %p146 = pneg %p100
      $region18: #{patch_soft_unet_innermost_forward.3} parent=11 // pred_check_branch
        %148 = sbr.rel (%p146) target = $region20
      $region19: #{patch_soft_unet_innermost_forward.3} parent=11 // pred_region
        _
      $region20: #{patch_soft_unet_innermost_forward.3} parent=11 // pred_fallthru
        _
    $region12: #{patch_soft_unet_innermost_forward.3} parent=5 // pred_fallthru
      _
    %p149 = scmp.lt.s32.totalorder %s9, 2
    // Predicated region
    $region21: #{patch_soft_unet_innermost_forward.3} parent=5 // pred_check
      %p150 = pneg %p149
    $region22: #{patch_soft_unet_innermost_forward.3} parent=5 // pred_check_branch
      %152 = sbr.rel (%p150) target = $region24
    $region23: #{patch_soft_unet_innermost_forward.3} parent=5 // pred_region
      // Predicated region
      $region25: #{patch_soft_unet_innermost_forward.3} parent=23 // pred_check
        %p153 = pneg %p52
      $region26: #{patch_soft_unet_innermost_forward.3} parent=23 // pred_check_branch
        %155 = sbr.rel (%p153) target = $region28
      $region27: #{patch_soft_unet_innermost_forward.3} parent=23 // pred_region
        %p156 = scmp.lt.s32.totalorder %s16, 1
        %s157 = scalar_select %p156, %s16, 1
        %p158 = scmp.lt.s32.totalorder %s17, 0
        %s159 = scalar_select %p158, %s17, 0
        %p160 = scmp.lt.s32.totalorder %s18, 0
        %s161 = scalar_select %p160, %s18, 0
        %s162 = smul.addr %s159, 9
        %s163 = sadd.s32 %s161, %s162
        %s164 = smul.addr %s157, 9
        %s165 = sadd.s32 %s163, %s164
        %s166 = smul.addr %s165, 4
        %s167 = scalar_lea.vmem %s0, %s166
      $region28: #{patch_soft_unet_innermost_forward.3} parent=23 // pred_fallthru
        _
    $region24: #{patch_soft_unet_innermost_forward.3} parent=5 // pred_fallthru
      _
    %p168 = scmp.le.s32.totalorder 1, %s9
    %p169 = scmp.lt.s32.totalorder %s9, 3
    %p170 = pnand %p168, %p169
    %p171 = pneg %p170
    // Predicated region
    $region29: #{patch_soft_unet_innermost_forward.3} parent=5 // pred_check
      _
    $region30: #{patch_soft_unet_innermost_forward.3} parent=5 // pred_check_branch
      %173 = sbr.rel (%p170) target = $region32
    $region31: #{patch_soft_unet_innermost_forward.3} parent=5 // pred_region
      %s174 = ssub.s32 %s9, 1
      %p175 = scmp.lt.s32.totalorder %s19, 1
      %s176 = scalar_select %p175, %s19, 1
      %p177 = scmp.lt.s32.totalorder %s20, 0
      %s178 = scalar_select %p177, %s20, 0
      %p179 = scmp.lt.s32.totalorder %s21, 0
      %s180 = scalar_select %p179, %s21, 0
      %s181 = smul.addr %s178, 9
      %s182 = sadd.s32 %s180, %s181
      %s183 = smul.addr %s176, 9
      %s184 = sadd.s32 %s182, %s183
      %s185 = smul.addr %s184, 4
      %s186 = scalar_lea.vmem %s0, %s185
      %p187 = pneg %p58
      %p188 = pneg %p55
      %p189 = pneg %p79
      %p190 = pneg %p76
      %p191 = pneg %p100
      %p192 = pneg %p97
      %p193 = pneg %p128
      %p194 = pneg %p125
      %s195 = smul.u32 8, %s20
      %p196 = scmp.lt.s32.totalorder %s19, 1
      %s197 = scalar_select %p196, %s19, 1
      %p198 = scmp.lt.s32.totalorder %s195, 7
      %s199 = scalar_select %p198, %s195, 7
      %s200 = smul.addr %s197, 8
      %s201 = sadd.s32 %s199, %s200
      %s202 = smul.addr %s201, 4
      %s203 = scalar_lea.vmem %s3, %s202
      %p204 = scmp.lt.s32.totalorder %s19, 1
      %s205 = scalar_select %p204, %s19, 1
      %p206 = scmp.lt.s32.totalorder %s20, 0
      %s207 = scalar_select %p206, %s20, 0
      %p208 = scmp.lt.s32.totalorder %s21, 0
      %s209 = scalar_select %p208, %s21, 0
      %s210 = smul.addr %s207, 9
      %s211 = sadd.s32 %s209, %s210
      %s212 = smul.addr %s205, 9
      %s213 = sadd.s32 %s211, %s212
      %s214 = smul.addr %s213, 4
      %s215 = scalar_lea.vmem %s0, %s214
      %s216 = smul.u32 8, %s20
      %p217 = scmp.lt.s32.totalorder %s19, 1
      %s218 = scalar_select %p217, %s19, 1
      %p219 = scmp.lt.s32.totalorder %s216, 7
      %s220 = scalar_select %p219, %s216, 7
      %s221 = smul.addr %s218, 8
      %s222 = sadd.s32 %s220, %s221
      %s223 = smul.addr %s222, 4
      %s224 = scalar_lea.vmem %s3, %s223
      %s225 = smul.u32 8, %s20
      %p227 = scmp.eq.s32.totalorder %s21, 0
      // Predicated region
      $region33: #{patch_soft_unet_innermost_forward.3} parent=31 // pred_check
        %p228 = pneg %p227
      $region34: #{patch_soft_unet_innermost_forward.3} parent=31 // pred_check_branch
        %230 = sbr.rel (%p228) target = $region36
      $region35: #{patch_soft_unet_innermost_forward.3} parent=31 // pred_region
        %vm231 = vcmask 64512
        %232 = vst.msk [vmem:[#allocation2] sm:$0xff] %vm231, 0.0
        %233 = vst.msk [vmem:[#allocation2 + $0x8] sm:$0xff] %vm231, 0.0
        %234 = vst.msk [vmem:[#allocation2 + $0x10] sm:$0xff] %vm231, 0.0
        %235 = vst.msk [vmem:[#allocation2 + $0x18] sm:$0xff] %vm231, 0.0
        %236 = vst.msk [vmem:[#allocation2 + $0x20] sm:$0xff] %vm231, 0.0
        %237 = vst.msk [vmem:[#allocation2 + $0x28] sm:$0xff] %vm231, 0.0
        %238 = vst.msk [vmem:[#allocation2 + $0x30] sm:$0xff] %vm231, 0.0
        %239 = vst.msk [vmem:[#allocation2 + $0x38] sm:$0xff] %vm231, 0.0
      $region36: #{patch_soft_unet_innermost_forward.3} parent=31 // pred_fallthru
        _
      %v240 = vld [vmem:[%s215] sm:$0xf]
      %v241 = vld [vmem:[%s215 + $0x4] sm:$0xf]
      %v242 = vld [vmem:[%s215 + $0x8] sm:$0xf]
      %v243 = vld [vmem:[%s215 + $0xc] sm:$0xf]
      %v244 = vld [vmem:[%s215 + $0x10] sm:$0xf]
      %v245 = vld [vmem:[%s215 + $0x14] sm:$0xf]
      %v246 = vld [vmem:[%s215 + $0x18] sm:$0xf]
      %v247 = vld [vmem:[%s215 + $0x1c] sm:$0xf]
      %v248 = vld [vmem:[%s215 + $0x20] sm:$0xf]
      %v249 = vunpack.c.l.bf16 %v240
      %v250 = vunpack.c.l.bf16 %v241
      %v251 = vunpack.c.l.bf16 %v242
      %v252 = vunpack.c.l.bf16 %v243
      %v253 = vunpack.c.l.bf16 %v244
      %v254 = vunpack.c.l.bf16 %v245
      %v255 = vunpack.c.l.bf16 %v246
      %v256 = vunpack.c.l.bf16 %v247
      %v257 = vunpack.c.l.bf16 %v248
      %vm258 = vcmp.gt.f32.partialorder %v249, 0.0
      %vm259 = vcmp.gt.f32.partialorder %v250, 0.0
      %vm260 = vcmp.gt.f32.partialorder %v251, 0.0
      %vm261 = vcmp.gt.f32.partialorder %v252, 0.0
      %vm262 = vcmp.gt.f32.partialorder %v253, 0.0
      %vm263 = vcmp.gt.f32.partialorder %v254, 0.0
      %vm264 = vcmp.gt.f32.partialorder %v255, 0.0
      %vm265 = vcmp.gt.f32.partialorder %v256, 0.0
      %vm266 = vcmp.gt.f32.partialorder %v257, 0.0
      %v267 = vmul.f32 %v249, 0.20019531
      %v268 = vmul.f32 %v250, 0.20019531
      %v269 = vmul.f32 %v251, 0.20019531
      %v270 = vmul.f32 %v252, 0.20019531
      %v271 = vmul.f32 %v253, 0.20019531
      %v272 = vmul.f32 %v254, 0.20019531
      %v273 = vmul.f32 %v255, 0.20019531
      %v274 = vmul.f32 %v256, 0.20019531
      %v275 = vmul.f32 %v257, 0.20019531
      %v276 = vpack.c.bf16 %v267, %v267
      %v277 = vpack.c.bf16 %v268, %v268
      %v278 = vpack.c.bf16 %v269, %v269
      %v279 = vpack.c.bf16 %v270, %v270
      %v280 = vpack.c.bf16 %v271, %v271
      %v281 = vpack.c.bf16 %v272, %v272
      %v282 = vpack.c.bf16 %v273, %v273
      %v283 = vpack.c.bf16 %v274, %v274
      %v284 = vpack.c.bf16 %v275, %v275
      %vm285 = vmpackc.low %vm258, %vm258
      %vm286 = vmpackc.low %vm259, %vm259
      %vm287 = vmpackc.low %vm260, %vm260
      %vm288 = vmpackc.low %vm261, %vm261
      %vm289 = vmpackc.low %vm262, %vm262
      %vm290 = vmpackc.low %vm263, %vm263
      %vm291 = vmpackc.low %vm264, %vm264
      %vm292 = vmpackc.low %vm265, %vm265
      %vm293 = vmpackc.low %vm266, %vm266
      %v294 = vsel %vm285, %v240, %v276
      %v295 = vsel %vm286, %v241, %v277
      %v296 = vsel %vm287, %v242, %v278
      %v297 = vsel %vm288, %v243, %v279
      %v298 = vsel %vm289, %v244, %v280
      %v299 = vsel %vm290, %v245, %v281
      %v300 = vsel %vm291, %v246, %v282
      %v301 = vsel %vm292, %v247, %v283
      %v302 = vsel %vm293, %v248, %v284
      %v303 = vld [vmem:[#allocation2] sm:$0xff]
      %v304 = vld [vmem:[#allocation2 + $0x8] sm:$0xff]
      %v305 = vld [vmem:[#allocation2 + $0x10] sm:$0xff]
      %v306 = vld [vmem:[#allocation2 + $0x18] sm:$0xff]
      %v307 = vld [vmem:[#allocation2 + $0x20] sm:$0xff]
      %v308 = vld [vmem:[#allocation2 + $0x28] sm:$0xff]
      %v309 = vld [vmem:[#allocation2 + $0x30] sm:$0xff]
      %v310 = vld [vmem:[#allocation2 + $0x38] sm:$0xff]
      %v311 = vld [vmem:[%s1] sm:$0xf]
      %v312 = vld [vmem:[%s1 + $0x4] sm:$0xf]
      %v313 = vld [vmem:[%s1 + $0x8] sm:$0xf]
      %v314 = vld [vmem:[%s1 + $0xc] sm:$0xf]
      %v323 = vunpack.c.l.b16 %v294
      %v324 = vunpack.c.l.b16 %v295
      %v325 = vunpack.c.l.b16 %v296
      %v326 = vunpack.c.l.b16 %v297
      %v327 = vunpack.c.l.b16 %v298
      %v328 = vunpack.c.l.b16 %v299
      %v329 = vunpack.c.l.b16 %v300
      %v330 = vunpack.c.l.b16 %v301
      %v331 = vpack.c.b16 %v324, %v323
      %v332 = vpack.c.b16 %v326, %v325
      %v333 = vpack.c.b16 %v328, %v327
      %v334 = vpack.c.b16 %v330, %v329
      %v339 = vunpack.c.l.b16 %v311
      %v340 = vunpack.c.l.b16 %v312
      %v341 = vunpack.c.l.b16 %v313
      %v342 = vunpack.c.l.b16 %v314
      %v343 = vpack.c.b16 %v340, %v339
      %v344 = vpack.c.b16 %v342, %v341
      %vm347 = vcmask 261120
      %v349 = vsel %vm347, %v331, 0
      %v352 = vsel %vm347, %v332, 0
      %v355 = vsel %vm347, %v333, 0
      %v358 = vsel %vm347, %v334, 0
      %360 = vmatpush.bf16.msra.mxu0 0
      %361 = vmatpush.bf16.msra.mxu0 0
      %362 = vmatpush.bf16.msra.mxu0 0
      %363 = vmatpush.bf16.msra.mxu0 0
      %364 = vmatpush.bf16.msra.mxu0 0
      %365 = vmatpush.bf16.msra.mxu0 0
      %366 = vmatpush.bf16.msra.mxu0 %v344
      %367 = vmatpush.bf16.msra.mxu0 %v343
      %368 = vmatmul.bf16.gmra.mxu0 %v349
      %v369 = vpop.f32.mrf.mxu0
      %v370 = vadd.f32 0.0, %v369
      %v371 = vpop.f32.mrf.mxu0
      %v372 = vadd.f32 0.0, %v371
      %373 = vmatmul.bf16.gmra.mxu0 %v352
      %v374 = vpop.f32.mrf.mxu0
      %v375 = vadd.f32 0.0, %v374
      %v376 = vpop.f32.mrf.mxu0
      %v377 = vadd.f32 0.0, %v376
      %378 = vmatmul.bf16.gmra.mxu0 %v355
      %v379 = vpop.f32.mrf.mxu0
      %v380 = vadd.f32 0.0, %v379
      %v381 = vpop.f32.mrf.mxu0
      %v382 = vadd.f32 0.0, %v381
      %383 = vmatmul.bf16.gmra.mxu0 %v358
      %v384 = vpop.f32.mrf.mxu0
      %v385 = vadd.f32 0.0, %v384
      %v386 = vpop.f32.mrf.mxu0
      %v387 = vadd.f32 0.0, %v386
      %388 = vdwg.mxu0
      %v389 = vadd.f32 %v303, %v370
      %v390 = vadd.f32 %v304, %v372
      %v391 = vadd.f32 %v305, %v375
      %v392 = vadd.f32 %v306, %v377
      %v393 = vadd.f32 %v307, %v380
      %v394 = vadd.f32 %v308, %v382
      %v395 = vadd.f32 %v309, %v385
      %v396 = vadd.f32 %v310, %v387
      %s397 = scalar_lea.vmem %s1, 16
      %v398 = vld [vmem:[%s397] sm:$0xf]
      %v399 = vld [vmem:[%s397 + $0x4] sm:$0xf]
      %v400 = vld [vmem:[%s397 + $0x8] sm:$0xf]
      %v401 = vld [vmem:[%s397 + $0xc] sm:$0xf]
      %v403 = vunpack.c.l.b16 %v302
      %v404 = vpack.c.b16 %v325, %v324
      %v405 = vpack.c.b16 %v327, %v326
      %v406 = vpack.c.b16 %v329, %v328
      %v407 = vpack.c.b16 %v403, %v330
      %v412 = vunpack.c.l.b16 %v398
      %v413 = vunpack.c.l.b16 %v399
      %v414 = vunpack.c.l.b16 %v400
      %v415 = vunpack.c.l.b16 %v401
      %v416 = vpack.c.b16 %v413, %v412
      %v417 = vpack.c.b16 %v415, %v414
      %v421 = vsel %vm347, %v404, 0
      %v424 = vsel %vm347, %v405, 0
      %v427 = vsel %vm347, %v406, 0
      %v430 = vsel %vm347, %v407, 0
      %432 = vmatpush.bf16.msra.mxu0 0
      %433 = vmatpush.bf16.msra.mxu0 0
      %434 = vmatpush.bf16.msra.mxu0 0
      %435 = vmatpush.bf16.msra.mxu0 0
      %436 = vmatpush.bf16.msra.mxu0 0
      %437 = vmatpush.bf16.msra.mxu0 0
      %438 = vmatpush.bf16.msra.mxu0 %v417
      %439 = vmatpush.bf16.msra.mxu0 %v416
      %440 = vmatmul.bf16.gmra.mxu0 %v421
      %v441 = vpop.f32.mrf.mxu0
      %v442 = vadd.f32 0.0, %v441
      %v443 = vpop.f32.mrf.mxu0
      %v444 = vadd.f32 0.0, %v443
      %445 = vmatmul.bf16.gmra.mxu0 %v424
      %v446 = vpop.f32.mrf.mxu0
      %v447 = vadd.f32 0.0, %v446
      %v448 = vpop.f32.mrf.mxu0
      %v449 = vadd.f32 0.0, %v448
      %450 = vmatmul.bf16.gmra.mxu0 %v427
      %v451 = vpop.f32.mrf.mxu0
      %v452 = vadd.f32 0.0, %v451
      %v453 = vpop.f32.mrf.mxu0
      %v454 = vadd.f32 0.0, %v453
      %455 = vmatmul.bf16.gmra.mxu0 %v430
      %v456 = vpop.f32.mrf.mxu0
      %v457 = vadd.f32 0.0, %v456
      %v458 = vpop.f32.mrf.mxu0
      %v459 = vadd.f32 0.0, %v458
      %460 = vdwg.mxu0
      %v461 = vadd.f32 %v389, %v442
      %v462 = vadd.f32 %v390, %v444
      %v463 = vadd.f32 %v391, %v447
      %v464 = vadd.f32 %v392, %v449
      %v465 = vadd.f32 %v393, %v452
      %v466 = vadd.f32 %v394, %v454
      %v467 = vadd.f32 %v395, %v457
      %v468 = vadd.f32 %v396, %v459
      %vm469 = vcmask 64512
      %470 = vst.msk [vmem:[#allocation2] sm:$0xff] %vm469, %v461
      %471 = vst.msk [vmem:[#allocation2 + $0x8] sm:$0xff] %vm469, %v462
      %472 = vst.msk [vmem:[#allocation2 + $0x10] sm:$0xff] %vm469, %v463
      %473 = vst.msk [vmem:[#allocation2 + $0x18] sm:$0xff] %vm469, %v464
      %474 = vst.msk [vmem:[#allocation2 + $0x20] sm:$0xff] %vm469, %v465
      %475 = vst.msk [vmem:[#allocation2 + $0x28] sm:$0xff] %vm469, %v466
      %476 = vst.msk [vmem:[#allocation2 + $0x30] sm:$0xff] %vm469, %v467
      %477 = vst.msk [vmem:[#allocation2 + $0x38] sm:$0xff] %vm469, %v468
      // Predicated region
      $region37: #{patch_soft_unet_innermost_forward.3} parent=31 // pred_check
        %p478 = pneg %p227
      $region38: #{patch_soft_unet_innermost_forward.3} parent=31 // pred_check_branch
        %480 = sbr.rel (%p478) target = $region40
      $region39: #{patch_soft_unet_innermost_forward.3} parent=31 // pred_region
        %v481 = vld [vmem:[#allocation2] sm:$0xff]
        %v482 = vld [vmem:[#allocation2 + $0x8] sm:$0xff]
        %v483 = vld [vmem:[#allocation2 + $0x10] sm:$0xff]
        %v484 = vld [vmem:[#allocation2 + $0x18] sm:$0xff]
        %v485 = vld [vmem:[#allocation2 + $0x20] sm:$0xff]
        %v486 = vld [vmem:[#allocation2 + $0x28] sm:$0xff]
        %v487 = vld [vmem:[#allocation2 + $0x30] sm:$0xff]
        %v488 = vld [vmem:[#allocation2 + $0x38] sm:$0xff]
        %v489 = vld [vmem:[%s2] sm:$0x1]
        %v491 = vperm.slane %v489, 0
        %v493 = vadd.f32 %v481, %v491
        %v494 = vadd.f32 %v482, %v491
        %v495 = vadd.f32 %v483, %v491
        %v496 = vadd.f32 %v484, %v491
        %v497 = vadd.f32 %v485, %v491
        %v498 = vadd.f32 %v486, %v491
        %v499 = vadd.f32 %v487, %v491
        %v500 = vadd.f32 %v488, %v491
        %v501 = vmax.f32 %v493, 0.0
        %v502 = vmax.f32 %v494, 0.0
        %v503 = vmax.f32 %v495, 0.0
        %v504 = vmax.f32 %v496, 0.0
        %v505 = vmax.f32 %v497, 0.0
        %v506 = vmax.f32 %v498, 0.0
        %v507 = vmax.f32 %v499, 0.0
        %v508 = vmax.f32 %v500, 0.0
        %v509 = vpack.c.bf16 %v501, %v501
        %v510 = vpack.c.bf16 %v502, %v502
        %v511 = vpack.c.bf16 %v503, %v503
        %v512 = vpack.c.bf16 %v504, %v504
        %v513 = vpack.c.bf16 %v505, %v505
        %v514 = vpack.c.bf16 %v506, %v506
        %v515 = vpack.c.bf16 %v507, %v507
        %v516 = vpack.c.bf16 %v508, %v508
        %vm517 = vcmask 60416
        %518 = vst.msk [vmem:[%s224] sm:$0xf] %vm517, %v509
        %519 = vst.msk [vmem:[%s224 + $0x4] sm:$0xf] %vm517, %v510
        %520 = vst.msk [vmem:[%s224 + $0x8] sm:$0xf] %vm517, %v511
        %521 = vst.msk [vmem:[%s224 + $0xc] sm:$0xf] %vm517, %v512
        %522 = vst.msk [vmem:[%s224 + $0x10] sm:$0xf] %vm517, %v513
        %523 = vst.msk [vmem:[%s224 + $0x14] sm:$0xf] %vm517, %v514
        %524 = vst.msk [vmem:[%s224 + $0x18] sm:$0xf] %vm517, %v515
        %525 = vst.msk [vmem:[%s224 + $0x1c] sm:$0xf] %vm517, %v516
      $region40: #{patch_soft_unet_innermost_forward.3} parent=31 // pred_fallthru
        _
      %s526 = smul.u32 8, %s20
      %p527 = scmp.lt.s32.totalorder %s19, 1
      %s528 = scalar_select %p527, %s19, 1
      %p529 = scmp.lt.s32.totalorder %s526, 7
      %s530 = scalar_select %p529, %s526, 7
      %s531 = smul.addr %s528, 8
      %s532 = sadd.s32 %s530, %s531
      %s533 = smul.addr %s532, 4
      %s534 = scalar_lea.vmem %s3, %s533
      // Predicated region
      $region41: #{patch_soft_unet_innermost_forward.3} parent=31 // pred_check
        %p535 = pneg %p125
      $region42: #{patch_soft_unet_innermost_forward.3} parent=31 // pred_check_branch
        %537 = sbr.rel (%p535) target = $region44
      $region43: #{patch_soft_unet_innermost_forward.3} parent=31 // pred_region
        %s538 = smul.u32 8, %s20
      $region44: #{patch_soft_unet_innermost_forward.3} parent=31 // pred_fallthru
        _
    $region32: #{patch_soft_unet_innermost_forward.3} parent=5 // pred_fallthru
      _
    %p539 = scmp.le.s32.totalorder 2, %s9
    // Predicated region
    $region45: #{patch_soft_unet_innermost_forward.3} parent=5 // pred_check
      %p540 = pneg %p539
    $region46: #{patch_soft_unet_innermost_forward.3} parent=5 // pred_check_branch
      %542 = sbr.rel (%p540) target = $region48
    $region47: #{patch_soft_unet_innermost_forward.3} parent=5 // pred_region
      %s543 = ssub.s32 %s9, 2
      // Predicated region
      $region49: #{patch_soft_unet_innermost_forward.3} parent=47 // pred_check
        %p544 = pneg %p131
      $region50: #{patch_soft_unet_innermost_forward.3} parent=47 // pred_check_branch
        %546 = sbr.rel (%p544) target = $region52
      $region51: #{patch_soft_unet_innermost_forward.3} parent=47 // pred_region
        %s547 = smul.u32 8, %s23
        %p548 = scmp.lt.s32.totalorder %s22, 1
        %s549 = scalar_select %p548, %s22, 1
        %p550 = scmp.lt.s32.totalorder %s547, 7
        %s551 = scalar_select %p550, %s547, 7
        %s552 = smul.addr %s549, 8
        %s553 = sadd.s32 %s551, %s552
        %s554 = smul.addr %s553, 4
        %s555 = scalar_lea.vmem %s3, %s554
      $region52: #{patch_soft_unet_innermost_forward.3} parent=47 // pred_fallthru
        _
    $region48: #{patch_soft_unet_innermost_forward.3} parent=5 // pred_fallthru
      _
  $region6: #{patch_soft_unet_innermost_forward.3} parent=0 // loop_footer
    %s13 = sadd.s32 1, %s9
  $region7: #{patch_soft_unet_innermost_forward.3} parent=0 // loop_footer_branch
    %8 = sbr.rel target = $region3
  $region8: #{patch_soft_unet_innermost_forward.3} parent=0 // loop_exit
    _

// kernel: patch_soft_unet_innermost_forward.5
$region0: #{patch_soft_unet_innermost_forward.5}
  #allocation0 [shape = 'u32[]', space=smem, size = 0x4, offset = 0x4, fixed_abs, tag = 'smem constant byte address 0x4 - core index']
  #allocation1 [shape = 'u32[72,128]{1,0:T(1,128)}', space=vmem, size = 0x9000, scoped, tag = 'internal scratch']
  %s0 = inlined_call_operand.vmem [shape: bf16[640,4], index: 0, kind: input, shape index: {}]
  %s1 = inlined_call_operand.vmem [shape: f32[1,4], index: 1, kind: input, shape index: {}]
  %s2 = inlined_call_operand.vmem [shape: f32[1,4], index: 2, kind: input, shape index: {}]
  %s3 = inlined_call_operand.vmem [shape: f32[640,4], index: 3, kind: output, shape index: {}]
  %s4 = sld [smem:[#allocation0]]
  $region22: #{patch_soft_unet_innermost_forward.5} parent=0
    _
  %s6 = ssub.s32 1, %s4
  %s7 = scalar_select 0, %s6, %s4
  // Predicated region
  $region2: #{patch_soft_unet_innermost_forward.5} parent=0 // pred_check
    _
  $region3: #{patch_soft_unet_innermost_forward.5} parent=0 // pred_check_branch
    %9 = sbr.rel (0) target = $region5
  $region4: #{patch_soft_unet_innermost_forward.5} parent=0 // pred_region
    _
  $region5: #{patch_soft_unet_innermost_forward.5} parent=0 // pred_fallthru
    _
  // Predicated region
  $region6: #{patch_soft_unet_innermost_forward.5} parent=0 // pred_check
    _
  $region7: #{patch_soft_unet_innermost_forward.5} parent=0 // pred_check_branch
    %11 = sbr.rel (0) target = $region9
  $region8: #{patch_soft_unet_innermost_forward.5} parent=0 // pred_region
    _
  $region9: #{patch_soft_unet_innermost_forward.5} parent=0 // pred_fallthru
    _
  // Predicated region
  $region10: #{patch_soft_unet_innermost_forward.5} parent=0 // pred_check
    _
  $region11: #{patch_soft_unet_innermost_forward.5} parent=0 // pred_check_branch
    %13 = sbr.rel (0) target = $region13
  $region12: #{patch_soft_unet_innermost_forward.5} parent=0 // pred_region
    _
  $region13: #{patch_soft_unet_innermost_forward.5} parent=0 // pred_fallthru
    _
  %v14 = vld [vmem:[%s0] sm:$0xf]
  %v15 = vld [vmem:[%s0 + $0x4] sm:$0xf]
  %v16 = vld [vmem:[%s0 + $0x8] sm:$0xf]
  %v17 = vld [vmem:[%s0 + $0xc] sm:$0xf]
  %v18 = vld [vmem:[%s0 + $0x10] sm:$0xf]
  %v19 = vld [vmem:[%s0 + $0x14] sm:$0xf]
  %v20 = vld [vmem:[%s0 + $0x18] sm:$0xf]
  %v21 = vld [vmem:[%s0 + $0x1c] sm:$0xf]
  %v22 = vld [vmem:[%s0 + $0x20] sm:$0xf]
  %v23 = vld [vmem:[%s0 + $0x24] sm:$0xf]
  %v24 = vld [vmem:[%s0 + $0x28] sm:$0xf]
  %v25 = vld [vmem:[%s0 + $0x2c] sm:$0xf]
  %v26 = vld [vmem:[%s0 + $0x30] sm:$0xf]
  %v27 = vld [vmem:[%s0 + $0x34] sm:$0xf]
  %v28 = vld [vmem:[%s0 + $0x38] sm:$0xf]
  %v29 = vld [vmem:[%s0 + $0x3c] sm:$0xf]
  %v30 = vld [vmem:[%s0 + $0x40] sm:$0xf]
  %v31 = vld [vmem:[%s0 + $0x44] sm:$0xf]
  %v32 = vld [vmem:[%s0 + $0x48] sm:$0xf]
  %v33 = vld [vmem:[%s0 + $0x4c] sm:$0xf]
  %v34 = vld [vmem:[%s0 + $0x50] sm:$0xf]
  %v35 = vld [vmem:[%s0 + $0x54] sm:$0xf]
  %v36 = vld [vmem:[%s0 + $0x58] sm:$0xf]
  %v37 = vld [vmem:[%s0 + $0x5c] sm:$0xf]
  %v38 = vld [vmem:[%s0 + $0x60] sm:$0xf]
  %v39 = vld [vmem:[%s0 + $0x64] sm:$0xf]
  %v40 = vld [vmem:[%s0 + $0x68] sm:$0xf]
  %v41 = vld [vmem:[%s0 + $0x6c] sm:$0xf]
  %v42 = vld [vmem:[%s0 + $0x70] sm:$0xf]
  %v43 = vld [vmem:[%s0 + $0x74] sm:$0xf]
  %v44 = vld [vmem:[%s0 + $0x78] sm:$0xf]
  %v45 = vld [vmem:[%s0 + $0x7c] sm:$0xf]
  %v46 = vld [vmem:[%s0 + $0x80] sm:$0xf]
  %v47 = vld [vmem:[%s0 + $0x84] sm:$0xf]
  %v48 = vld [vmem:[%s0 + $0x88] sm:$0xf]
  %v49 = vld [vmem:[%s0 + $0x8c] sm:$0xf]
  %v50 = vld [vmem:[%s0 + $0x90] sm:$0xf]
  %v51 = vld [vmem:[%s0 + $0x94] sm:$0xf]
  %v52 = vld [vmem:[%s0 + $0x98] sm:$0xf]
  %v53 = vld [vmem:[%s0 + $0x9c] sm:$0xf]
  %v54 = vld [vmem:[%s0 + $0xa0] sm:$0xf]
  %v55 = vld [vmem:[%s0 + $0xa4] sm:$0xf]
  %v56 = vld [vmem:[%s0 + $0xa8] sm:$0xf]
  %v57 = vld [vmem:[%s0 + $0xac] sm:$0xf]
  %v58 = vld [vmem:[%s0 + $0xb0] sm:$0xf]
  %v59 = vld [vmem:[%s0 + $0xb4] sm:$0xf]
  %v60 = vld [vmem:[%s0 + $0xb8] sm:$0xf]
  %v61 = vld [vmem:[%s0 + $0xbc] sm:$0xf]
  %v62 = vld [vmem:[%s0 + $0xc0] sm:$0xf]
  %v63 = vld [vmem:[%s0 + $0xc4] sm:$0xf]
  %v64 = vld [vmem:[%s0 + $0xc8] sm:$0xf]
  %v65 = vld [vmem:[%s0 + $0xcc] sm:$0xf]
  %v66 = vld [vmem:[%s0 + $0xd0] sm:$0xf]
  %v67 = vld [vmem:[%s0 + $0xd4] sm:$0xf]
  %v68 = vld [vmem:[%s0 + $0xd8] sm:$0xf]
  %v69 = vld [vmem:[%s0 + $0xdc] sm:$0xf]
  %v70 = vld [vmem:[%s0 + $0xe0] sm:$0xf]
  %v71 = vld [vmem:[%s0 + $0xe4] sm:$0xf]
  %v72 = vld [vmem:[%s0 + $0xe8] sm:$0xf]
  %v73 = vld [vmem:[%s0 + $0xec] sm:$0xf]
  %v74 = vld [vmem:[%s0 + $0xf0] sm:$0xf]
  %v75 = vld [vmem:[%s0 + $0xf4] sm:$0xf]
  %v76 = vld [vmem:[%s0 + $0xf8] sm:$0xf]
  %v77 = vld [vmem:[%s0 + $0xfc] sm:$0xf]
  %v78 = vld [vmem:[%s0 + $0x100] sm:$0xf]
  %v79 = vld [vmem:[%s0 + $0x104] sm:$0xf]
  %v80 = vld [vmem:[%s0 + $0x108] sm:$0xf]
  %v81 = vld [vmem:[%s0 + $0x10c] sm:$0xf]
  %v82 = vld [vmem:[%s0 + $0x110] sm:$0xf]
  %v83 = vld [vmem:[%s0 + $0x114] sm:$0xf]
  %v84 = vld [vmem:[%s0 + $0x118] sm:$0xf]
  %v85 = vld [vmem:[%s0 + $0x11c] sm:$0xf]
  %v86 = vld [vmem:[%s0 + $0x120] sm:$0xf]
  %v87 = vld [vmem:[%s0 + $0x124] sm:$0xf]
  %v88 = vld [vmem:[%s0 + $0x128] sm:$0xf]
  %v89 = vld [vmem:[%s0 + $0x12c] sm:$0xf]
  %v90 = vld [vmem:[%s0 + $0x130] sm:$0xf]
  %v91 = vld [vmem:[%s0 + $0x134] sm:$0xf]
  %v92 = vld [vmem:[%s0 + $0x138] sm:$0xf]
  %v93 = vld [vmem:[%s0 + $0x13c] sm:$0xf]
  %v94 = vunpack.c.l.bf16 %v14
  %v95 = vunpack.c.l.bf16 %v15
  %v96 = vunpack.c.l.bf16 %v16
  %v97 = vunpack.c.l.bf16 %v17
  %v98 = vunpack.c.l.bf16 %v18
  %v99 = vunpack.c.l.bf16 %v19
  %v100 = vunpack.c.l.bf16 %v20
  %v101 = vunpack.c.l.bf16 %v21
  %v102 = vunpack.c.l.bf16 %v22
  %v103 = vunpack.c.l.bf16 %v23
  %v104 = vunpack.c.l.bf16 %v24
  %v105 = vunpack.c.l.bf16 %v25
  %v106 = vunpack.c.l.bf16 %v26
  %v107 = vunpack.c.l.bf16 %v27
  %v108 = vunpack.c.l.bf16 %v28
  %v109 = vunpack.c.l.bf16 %v29
  %v110 = vunpack.c.l.bf16 %v30
  %v111 = vunpack.c.l.bf16 %v31
  %v112 = vunpack.c.l.bf16 %v32
  %v113 = vunpack.c.l.bf16 %v33
  %v114 = vunpack.c.l.bf16 %v34
  %v115 = vunpack.c.l.bf16 %v35
  %v116 = vunpack.c.l.bf16 %v36
  %v117 = vunpack.c.l.bf16 %v37
  %v118 = vunpack.c.l.bf16 %v38
  %v119 = vunpack.c.l.bf16 %v39
  %v120 = vunpack.c.l.bf16 %v40
  %v121 = vunpack.c.l.bf16 %v41
  %v122 = vunpack.c.l.bf16 %v42
  %v123 = vunpack.c.l.bf16 %v43
  %v124 = vunpack.c.l.bf16 %v44
  %v125 = vunpack.c.l.bf16 %v45
  %v126 = vunpack.c.l.bf16 %v46
  %v127 = vunpack.c.l.bf16 %v47
  %v128 = vunpack.c.l.bf16 %v48
  %v129 = vunpack.c.l.bf16 %v49
  %v130 = vunpack.c.l.bf16 %v50
  %v131 = vunpack.c.l.bf16 %v51
  %v132 = vunpack.c.l.bf16 %v52
  %v133 = vunpack.c.l.bf16 %v53
  %v134 = vunpack.c.l.bf16 %v54
  %v135 = vunpack.c.l.bf16 %v55
  %v136 = vunpack.c.l.bf16 %v56
  %v137 = vunpack.c.l.bf16 %v57
  %v138 = vunpack.c.l.bf16 %v58
  %v139 = vunpack.c.l.bf16 %v59
  %v140 = vunpack.c.l.bf16 %v60
  %v141 = vunpack.c.l.bf16 %v61
  %v142 = vunpack.c.l.bf16 %v62
  %v143 = vunpack.c.l.bf16 %v63
  %v144 = vunpack.c.l.bf16 %v64
  %v145 = vunpack.c.l.bf16 %v65
  %v146 = vunpack.c.l.bf16 %v66
  %v147 = vunpack.c.l.bf16 %v67
  %v148 = vunpack.c.l.bf16 %v68
  %v149 = vunpack.c.l.bf16 %v69
  %v150 = vunpack.c.l.bf16 %v70
  %v151 = vunpack.c.l.bf16 %v71
  %v152 = vunpack.c.l.bf16 %v72
  %v153 = vunpack.c.l.bf16 %v73
  %v154 = vunpack.c.l.bf16 %v74
  %v155 = vunpack.c.l.bf16 %v75
  %v156 = vunpack.c.l.bf16 %v76
  %v157 = vunpack.c.l.bf16 %v77
  %v158 = vunpack.c.l.bf16 %v78
  %v159 = vunpack.c.l.bf16 %v79
  %v160 = vunpack.c.l.bf16 %v80
  %v161 = vunpack.c.l.bf16 %v81
  %v162 = vunpack.c.l.bf16 %v82
  %v163 = vunpack.c.l.bf16 %v83
  %v164 = vunpack.c.l.bf16 %v84
  %v165 = vunpack.c.l.bf16 %v85
  %v166 = vunpack.c.l.bf16 %v86
  %v167 = vunpack.c.l.bf16 %v87
  %v168 = vunpack.c.l.bf16 %v88
  %v169 = vunpack.c.l.bf16 %v89
  %v170 = vunpack.c.l.bf16 %v90
  %v171 = vunpack.c.l.bf16 %v91
  %v172 = vunpack.c.l.bf16 %v92
  %v173 = vunpack.c.l.bf16 %v93
  %v174 = vld [vmem:[%s1] sm:$0x1]
  %v176 = vperm.slane %v174, 0
  %v178 = vmul.f32 %v94, %v176
  %v179 = vmul.f32 %v95, %v176
  %v180 = vmul.f32 %v96, %v176
  %v181 = vmul.f32 %v97, %v176
  %v182 = vmul.f32 %v98, %v176
  %v183 = vmul.f32 %v99, %v176
  %v184 = vmul.f32 %v100, %v176
  %v185 = vmul.f32 %v101, %v176
  %v186 = vmul.f32 %v102, %v176
  %v187 = vmul.f32 %v103, %v176
  %v188 = vmul.f32 %v104, %v176
  %v189 = vmul.f32 %v105, %v176
  %v190 = vmul.f32 %v106, %v176
  %v191 = vmul.f32 %v107, %v176
  %v192 = vmul.f32 %v108, %v176
  %v193 = vmul.f32 %v109, %v176
  %v194 = vmul.f32 %v110, %v176
  %v195 = vmul.f32 %v111, %v176
  %v196 = vmul.f32 %v112, %v176
  %v197 = vmul.f32 %v113, %v176
  %v198 = vmul.f32 %v114, %v176
  %v199 = vmul.f32 %v115, %v176
  %v200 = vmul.f32 %v116, %v176
  %v201 = vmul.f32 %v117, %v176
  %v202 = vmul.f32 %v118, %v176
  %v203 = vmul.f32 %v119, %v176
  %v204 = vmul.f32 %v120, %v176
  %v205 = vmul.f32 %v121, %v176
  %v206 = vmul.f32 %v122, %v176
  %v207 = vmul.f32 %v123, %v176
  %v208 = vmul.f32 %v124, %v176
  %v209 = vmul.f32 %v125, %v176
  %v210 = vmul.f32 %v126, %v176
  %v211 = vmul.f32 %v127, %v176
  %v212 = vmul.f32 %v128, %v176
  %v213 = vmul.f32 %v129, %v176
  %v214 = vmul.f32 %v130, %v176
  %v215 = vmul.f32 %v131, %v176
  %v216 = vmul.f32 %v132, %v176
  %v217 = vmul.f32 %v133, %v176
  %v218 = vmul.f32 %v134, %v176
  %v219 = vmul.f32 %v135, %v176
  %v220 = vmul.f32 %v136, %v176
  %v221 = vmul.f32 %v137, %v176
  %v222 = vmul.f32 %v138, %v176
  %v223 = vmul.f32 %v139, %v176
  %v224 = vmul.f32 %v140, %v176
  %v225 = vmul.f32 %v141, %v176
  %v226 = vmul.f32 %v142, %v176
  %v227 = vmul.f32 %v143, %v176
  %v228 = vmul.f32 %v144, %v176
  %v229 = vmul.f32 %v145, %v176
  %v230 = vmul.f32 %v146, %v176
  %v231 = vmul.f32 %v147, %v176
  %v232 = vmul.f32 %v148, %v176
  %v233 = vmul.f32 %v149, %v176
  %v234 = vmul.f32 %v150, %v176
  %v235 = vmul.f32 %v151, %v176
  %v236 = vmul.f32 %v152, %v176
  %v237 = vmul.f32 %v153, %v176
  %v238 = vmul.f32 %v154, %v176
  %v239 = vmul.f32 %v155, %v176
  %v240 = vmul.f32 %v156, %v176
  %v241 = vmul.f32 %v157, %v176
  %v242 = vmul.f32 %v158, %v176
  %v243 = vmul.f32 %v159, %v176
  %v244 = vmul.f32 %v160, %v176
  %v245 = vmul.f32 %v161, %v176
  %v246 = vmul.f32 %v162, %v176
  %v247 = vmul.f32 %v163, %v176
  %v248 = vmul.f32 %v164, %v176
  %v249 = vmul.f32 %v165, %v176
  %v250 = vmul.f32 %v166, %v176
  %v251 = vmul.f32 %v167, %v176
  %v252 = vmul.f32 %v168, %v176
  %v253 = vmul.f32 %v169, %v176
  %v254 = vmul.f32 %v170, %v176
  %v255 = vmul.f32 %v171, %v176
  %v256 = vmul.f32 %v172, %v176
  %v257 = vmul.f32 %v173, %v176
  %v258 = vld [vmem:[%s2] sm:$0x1]
  %v260 = vperm.slane %v258, 0
  %v262 = vadd.f32 %v178, %v260
  %v263 = vadd.f32 %v179, %v260
  %v264 = vadd.f32 %v180, %v260
  %v265 = vadd.f32 %v181, %v260
  %v266 = vadd.f32 %v182, %v260
  %v267 = vadd.f32 %v183, %v260
  %v268 = vadd.f32 %v184, %v260
  %v269 = vadd.f32 %v185, %v260
  %v270 = vadd.f32 %v186, %v260
  %v271 = vadd.f32 %v187, %v260
  %v272 = vadd.f32 %v188, %v260
  %v273 = vadd.f32 %v189, %v260
  %v274 = vadd.f32 %v190, %v260
  %v275 = vadd.f32 %v191, %v260
  %v276 = vadd.f32 %v192, %v260
  %v277 = vadd.f32 %v193, %v260
  %v278 = vadd.f32 %v194, %v260
  %v279 = vadd.f32 %v195, %v260
  %v280 = vadd.f32 %v196, %v260
  %v281 = vadd.f32 %v197, %v260
  %v282 = vadd.f32 %v198, %v260
  %v283 = vadd.f32 %v199, %v260
  %v284 = vadd.f32 %v200, %v260
  %v285 = vadd.f32 %v201, %v260
  %v286 = vadd.f32 %v202, %v260
  %v287 = vadd.f32 %v203, %v260
  %v288 = vadd.f32 %v204, %v260
  %v289 = vadd.f32 %v205, %v260
  %v290 = vadd.f32 %v206, %v260
  %v291 = vadd.f32 %v207, %v260
  %v292 = vadd.f32 %v208, %v260
  %v293 = vadd.f32 %v209, %v260
  %v294 = vadd.f32 %v210, %v260
  %v295 = vadd.f32 %v211, %v260
  %v296 = vadd.f32 %v212, %v260
  %v297 = vadd.f32 %v213, %v260
  %v298 = vadd.f32 %v214, %v260
  %v299 = vadd.f32 %v215, %v260
  %v300 = vadd.f32 %v216, %v260
  %v301 = vadd.f32 %v217, %v260
  %v302 = vadd.f32 %v218, %v260
  %v303 = vadd.f32 %v219, %v260
  %v304 = vadd.f32 %v220, %v260
  %v305 = vadd.f32 %v221, %v260
  %v306 = vadd.f32 %v222, %v260
  %v307 = vadd.f32 %v223, %v260
  %v308 = vadd.f32 %v224, %v260
  %v309 = vadd.f32 %v225, %v260
  %v310 = vadd.f32 %v226, %v260
  %v311 = vadd.f32 %v227, %v260
  %v312 = vadd.f32 %v228, %v260
  %v313 = vadd.f32 %v229, %v260
  %v314 = vadd.f32 %v230, %v260
  %v315 = vadd.f32 %v231, %v260
  %v316 = vadd.f32 %v232, %v260
  %v317 = vadd.f32 %v233, %v260
  %v318 = vadd.f32 %v234, %v260
  %v319 = vadd.f32 %v235, %v260
  %v320 = vadd.f32 %v236, %v260
  %v321 = vadd.f32 %v237, %v260
  %v322 = vadd.f32 %v238, %v260
  %v323 = vadd.f32 %v239, %v260
  %v324 = vadd.f32 %v240, %v260
  %v325 = vadd.f32 %v241, %v260
  %v326 = vadd.f32 %v242, %v260
  %v327 = vadd.f32 %v243, %v260
  %v328 = vadd.f32 %v244, %v260
  %v329 = vadd.f32 %v245, %v260
  %v330 = vadd.f32 %v246, %v260
  %v331 = vadd.f32 %v247, %v260
  %v332 = vadd.f32 %v248, %v260
  %v333 = vadd.f32 %v249, %v260
  %v334 = vadd.f32 %v250, %v260
  %v335 = vadd.f32 %v251, %v260
  %v336 = vadd.f32 %v252, %v260
  %v337 = vadd.f32 %v253, %v260
  %v338 = vadd.f32 %v254, %v260
  %v339 = vadd.f32 %v255, %v260
  %v340 = vadd.f32 %v256, %v260
  %v341 = vadd.f32 %v257, %v260
  %vm342 = vcmask 31744
  %343 = vst.msk [vmem:[%s3] sm:$0xff] %vm342, %v262
  %344 = vst.msk [vmem:[%s3 + $0x8] sm:$0xff] %vm342, %v263
  %345 = vst.msk [vmem:[%s3 + $0x10] sm:$0xff] %vm342, %v264
  %346 = vst.msk [vmem:[%s3 + $0x18] sm:$0xff] %vm342, %v265
  %347 = vst.msk [vmem:[%s3 + $0x20] sm:$0xff] %vm342, %v266
  %348 = vst.msk [vmem:[%s3 + $0x28] sm:$0xff] %vm342, %v267
  %349 = vst.msk [vmem:[%s3 + $0x30] sm:$0xff] %vm342, %v268
  %350 = vst.msk [vmem:[%s3 + $0x38] sm:$0xff] %vm342, %v269
  %351 = vst.msk [vmem:[%s3 + $0x40] sm:$0xff] %vm342, %v270
  %352 = vst.msk [vmem:[%s3 + $0x48] sm:$0xff] %vm342, %v271
  %353 = vst.msk [vmem:[%s3 + $0x50] sm:$0xff] %vm342, %v272
  %354 = vst.msk [vmem:[%s3 + $0x58] sm:$0xff] %vm342, %v273
  %355 = vst.msk [vmem:[%s3 + $0x60] sm:$0xff] %vm342, %v274
  %356 = vst.msk [vmem:[%s3 + $0x68] sm:$0xff] %vm342, %v275
  %357 = vst.msk [vmem:[%s3 + $0x70] sm:$0xff] %vm342, %v276
  %358 = vst.msk [vmem:[%s3 + $0x78] sm:$0xff] %vm342, %v277
  %359 = vst.msk [vmem:[%s3 + $0x80] sm:$0xff] %vm342, %v278
  %360 = vst.msk [vmem:[%s3 + $0x88] sm:$0xff] %vm342, %v279
  %361 = vst.msk [vmem:[%s3 + $0x90] sm:$0xff] %vm342, %v280
  %362 = vst.msk [vmem:[%s3 + $0x98] sm:$0xff] %vm342, %v281
  %363 = vst.msk [vmem:[%s3 + $0xa0] sm:$0xff] %vm342, %v282
  %364 = vst.msk [vmem:[%s3 + $0xa8] sm:$0xff] %vm342, %v283
  %365 = vst.msk [vmem:[%s3 + $0xb0] sm:$0xff] %vm342, %v284
  %366 = vst.msk [vmem:[%s3 + $0xb8] sm:$0xff] %vm342, %v285
  %367 = vst.msk [vmem:[%s3 + $0xc0] sm:$0xff] %vm342, %v286
  %368 = vst.msk [vmem:[%s3 + $0xc8] sm:$0xff] %vm342, %v287
  %369 = vst.msk [vmem:[%s3 + $0xd0] sm:$0xff] %vm342, %v288
  %370 = vst.msk [vmem:[%s3 + $0xd8] sm:$0xff] %vm342, %v289
  %371 = vst.msk [vmem:[%s3 + $0xe0] sm:$0xff] %vm342, %v290
  %372 = vst.msk [vmem:[%s3 + $0xe8] sm:$0xff] %vm342, %v291
  %373 = vst.msk [vmem:[%s3 + $0xf0] sm:$0xff] %vm342, %v292
  %374 = vst.msk [vmem:[%s3 + $0xf8] sm:$0xff] %vm342, %v293
  %375 = vst.msk [vmem:[%s3 + $0x100] sm:$0xff] %vm342, %v294
  %376 = vst.msk [vmem:[%s3 + $0x108] sm:$0xff] %vm342, %v295
  %377 = vst.msk [vmem:[%s3 + $0x110] sm:$0xff] %vm342, %v296
  %378 = vst.msk [vmem:[%s3 + $0x118] sm:$0xff] %vm342, %v297
  %379 = vst.msk [vmem:[%s3 + $0x120] sm:$0xff] %vm342, %v298
  %380 = vst.msk [vmem:[%s3 + $0x128] sm:$0xff] %vm342, %v299
  %381 = vst.msk [vmem:[%s3 + $0x130] sm:$0xff] %vm342, %v300
  %382 = vst.msk [vmem:[%s3 + $0x138] sm:$0xff] %vm342, %v301
  %383 = vst.msk [vmem:[%s3 + $0x140] sm:$0xff] %vm342, %v302
  %384 = vst.msk [vmem:[%s3 + $0x148] sm:$0xff] %vm342, %v303
  %385 = vst.msk [vmem:[%s3 + $0x150] sm:$0xff] %vm342, %v304
  %386 = vst.msk [vmem:[%s3 + $0x158] sm:$0xff] %vm342, %v305
  %387 = vst.msk [vmem:[%s3 + $0x160] sm:$0xff] %vm342, %v306
  %388 = vst.msk [vmem:[%s3 + $0x168] sm:$0xff] %vm342, %v307
  %389 = vst.msk [vmem:[%s3 + $0x170] sm:$0xff] %vm342, %v308
  %390 = vst.msk [vmem:[%s3 + $0x178] sm:$0xff] %vm342, %v309
  %391 = vst.msk [vmem:[%s3 + $0x180] sm:$0xff] %vm342, %v310
  %392 = vst.msk [vmem:[%s3 + $0x188] sm:$0xff] %vm342, %v311
  %393 = vst.msk [vmem:[%s3 + $0x190] sm:$0xff] %vm342, %v312
  %394 = vst.msk [vmem:[%s3 + $0x198] sm:$0xff] %vm342, %v313
  %395 = vst.msk [vmem:[%s3 + $0x1a0] sm:$0xff] %vm342, %v314
  %396 = vst.msk [vmem:[%s3 + $0x1a8] sm:$0xff] %vm342, %v315
  %397 = vst.msk [vmem:[%s3 + $0x1b0] sm:$0xff] %vm342, %v316
  %398 = vst.msk [vmem:[%s3 + $0x1b8] sm:$0xff] %vm342, %v317
  %399 = vst.msk [vmem:[%s3 + $0x1c0] sm:$0xff] %vm342, %v318
  %400 = vst.msk [vmem:[%s3 + $0x1c8] sm:$0xff] %vm342, %v319
  %401 = vst.msk [vmem:[%s3 + $0x1d0] sm:$0xff] %vm342, %v320
  %402 = vst.msk [vmem:[%s3 + $0x1d8] sm:$0xff] %vm342, %v321
  %403 = vst.msk [vmem:[%s3 + $0x1e0] sm:$0xff] %vm342, %v322
  %404 = vst.msk [vmem:[%s3 + $0x1e8] sm:$0xff] %vm342, %v323
  %405 = vst.msk [vmem:[%s3 + $0x1f0] sm:$0xff] %vm342, %v324
  %406 = vst.msk [vmem:[%s3 + $0x1f8] sm:$0xff] %vm342, %v325
  %407 = vst.msk [vmem:[%s3 + $0x200] sm:$0xff] %vm342, %v326
  %408 = vst.msk [vmem:[%s3 + $0x208] sm:$0xff] %vm342, %v327
  %409 = vst.msk [vmem:[%s3 + $0x210] sm:$0xff] %vm342, %v328
  %410 = vst.msk [vmem:[%s3 + $0x218] sm:$0xff] %vm342, %v329
  %411 = vst.msk [vmem:[%s3 + $0x220] sm:$0xff] %vm342, %v330
  %412 = vst.msk [vmem:[%s3 + $0x228] sm:$0xff] %vm342, %v331
  %413 = vst.msk [vmem:[%s3 + $0x230] sm:$0xff] %vm342, %v332
  %414 = vst.msk [vmem:[%s3 + $0x238] sm:$0xff] %vm342, %v333
  %415 = vst.msk [vmem:[%s3 + $0x240] sm:$0xff] %vm342, %v334
  %416 = vst.msk [vmem:[%s3 + $0x248] sm:$0xff] %vm342, %v335
  %417 = vst.msk [vmem:[%s3 + $0x250] sm:$0xff] %vm342, %v336
  %418 = vst.msk [vmem:[%s3 + $0x258] sm:$0xff] %vm342, %v337
  %419 = vst.msk [vmem:[%s3 + $0x260] sm:$0xff] %vm342, %v338
  %420 = vst.msk [vmem:[%s3 + $0x268] sm:$0xff] %vm342, %v339
  %421 = vst.msk [vmem:[%s3 + $0x270] sm:$0xff] %vm342, %v340
  %422 = vst.msk [vmem:[%s3 + $0x278] sm:$0xff] %vm342, %v341
  // Predicated region
  $region14: #{patch_soft_unet_innermost_forward.5} parent=0 // pred_check
    _
  $region15: #{patch_soft_unet_innermost_forward.5} parent=0 // pred_check_branch
    %424 = sbr.rel (0) target = $region17
  $region16: #{patch_soft_unet_innermost_forward.5} parent=0 // pred_region
    _
  $region17: #{patch_soft_unet_innermost_forward.5} parent=0 // pred_fallthru
    _
  // Predicated region
  $region18: #{patch_soft_unet_innermost_forward.5} parent=0 // pred_check
    _
  $region19: #{patch_soft_unet_innermost_forward.5} parent=0 // pred_check_branch
    %426 = sbr.rel (0) target = $region21
  $region20: #{patch_soft_unet_innermost_forward.5} parent=0 // pred_region
    _
  $region21: #{patch_soft_unet_innermost_forward.5} parent=0 // pred_fallthru
    _

// kernel: patch_soft_unet_innermost_forward.4
$region0: #{patch_soft_unet_innermost_forward.4}
  #allocation0 [shape = 'u32[]', space=smem, size = 0x4, offset = 0x4, fixed_abs, tag = 'smem constant byte address 0x4 - core index']
  #allocation1 [shape = 'u32[72,128]{1,0:T(1,128)}', space=vmem, size = 0x9000, scoped, tag = 'internal scratch']
  #allocation2 [shape = 'f32[4,80,4]{2,1,0:T(8,128)}', space=vmem, size = 0x28000, scoped, tag = 'scratch operand']
  %s0 = inlined_call_operand.vmem [shape: bf16[2,1,108,8], index: 0, kind: input, shape index: {}]
  %s1 = inlined_call_operand.vmem [shape: bf16[16,8,4], index: 1, kind: input, shape index: {}]
  %s2 = inlined_call_operand.vmem [shape: f32[1,4], index: 2, kind: input, shape index: {}]
  %s3 = inlined_call_operand.vmem [shape: f32[80,4], index: 3, kind: input, shape index: {}]
  %s4 = inlined_call_operand.vmem [shape: bf16[2,4,80,4], index: 4, kind: output, shape index: {0}]
  %s5 = inlined_call_operand.vmem [shape: f32[2,1,2,4], index: 5, kind: output, shape index: {1}]
  %6 = xla_tuple %s4, %s5
  %s7 = sld [smem:[#allocation0]]
  $region65: #{patch_soft_unet_innermost_forward.4} parent=0
    _
  %s9 = ssub.s32 1, %s7
  %s10 = scalar_select 0, %s9, %s7
  loop: start=0, step=1, limit=4
  $region2: #{patch_soft_unet_innermost_forward.4} parent=0 // loop_pre_header
    _
  $region3: #{patch_soft_unet_innermost_forward.4} parent=0 // loop_header
    %s12 = sphi 0, %s16
    %p13 = scmp.ge.s32.totalorder %s12, 4
    %s19 = sphi 0, %s38
    %s20 = sphi 0, %s34
    %s21 = sphi 0, %s30
    %s22 = sphi 0, %s19
    %s23 = sphi 0, %s20
    %s24 = sphi 0, %s21
    %s25 = sphi 0, %s22
    %s26 = sphi 0, %s23
    %s27 = sphi 0, %s24
    %s45 = sphi 0, %s47
    %s48 = sphi 0, %s45
    %s49 = sphi 0, %s48
    %s65 = sphi 0, %s49
    %s69 = sphi 0, %s69
    %s71 = sphi 0, %s69
    %s72 = sphi 0, %s71
    %s86 = sphi 0, %s72
    %s90 = sphi 0, %s90
    %s92 = sphi 0, %s90
    %s93 = sphi 0, %s92
    %s107 = sphi 0, %s93
    %s111 = sphi 0, %s111
    %s113 = sphi 0, %s111
    %s114 = sphi 0, %s113
    %s128 = sphi 0, %s114
    %s136 = sphi 0, %s138
    %s139 = sphi 0, %s136
    %s140 = sphi 0, %s139
    %s156 = sphi 0, %s140
    %s164 = sphi 0, %s166
    %s167 = sphi 0, %s164
    %s168 = sphi 0, %s167
    %s184 = sphi 0, %s168
  $region4: #{patch_soft_unet_innermost_forward.4} parent=0 // loop_header_branch
    %15 = sbr.rel (%p13) target = $region8
  $region5: #{patch_soft_unet_innermost_forward.4} parent=0 // loop_body
    %s17 = ssub.s32 %s12, 1
    %s18 = ssub.s32 %s12, 2
    %s28 = sadd.s32 1, %s21
    %p29 = scmp.ge.s32.totalorder %s28, 1
    %s30 = scalar_select %p29, 0, %s28
    %s31 = sadd.s32 1, %s20
    %s32 = scalar_select %p29, %s31, %s20
    %p33 = scmp.ge.s32.totalorder %s32, 1
    %s34 = scalar_select %p33, 0, %s32
    %s35 = sadd.s32 1, %s19
    %s36 = scalar_select %p33, %s35, %s19
    %p37 = scmp.ge.s32.totalorder %s36, 2
    %s38 = scalar_select %p37, 0, %s36
    %s39 = ssub.s32 %s19, %s38
    %s40 = ssub.s32 %s20, %s34
    %s41 = sor.u32 %s39, %s40
    %s42 = ssub.s32 %s21, %s30
    %s43 = sor.u32 %s41, %s42
    %p44 = scmp.eq.s32.totalorder %s43, 0
    %s46 = sadd.s32 %s45, 1
    %s47 = scalar_select %p44, %s45, %s46
    %p50 = pneg %p44
    %p51 = scmp.eq.s32.totalorder %s12, 1
    %p52 = por %p50, %p51
    %p53 = scmp.ne.s32.totalorder %s45, %s48
    %p54 = scmp.eq.s32.totalorder %s12, 0
    %p55 = por %p53, %p54
    %p56 = scmp.ne.s32.totalorder %s45, %s48
    %p57 = scmp.eq.s32.totalorder %s17, 1
    %p58 = por %p56, %p57
    %p59 = scmp.ne.s32.totalorder %s48, %s49
    %p60 = scmp.eq.s32.totalorder %s17, 0
    %p61 = por %p59, %p60
    %p62 = scmp.ne.s32.totalorder %s48, %s49
    %p63 = scmp.eq.s32.totalorder %s18, 1
    %p64 = por %p62, %p63
    %p66 = scmp.ne.s32.totalorder %s49, %s65
    %p67 = scmp.eq.s32.totalorder %s18, 0
    %p68 = por %p66, %p67
    %s70 = sadd.s32 %s69, 1
    %p73 = scmp.eq.s32.totalorder %s12, 1
    %p74 = scmp.ne.s32.totalorder %s69, %s71
    %p75 = scmp.eq.s32.totalorder %s12, 0
    %p76 = por %p74, %p75
    %p77 = scmp.ne.s32.totalorder %s69, %s71
    %p78 = scmp.eq.s32.totalorder %s17, 1
    %p79 = por %p77, %p78
    %p80 = scmp.ne.s32.totalorder %s71, %s72
    %p81 = scmp.eq.s32.totalorder %s17, 0
    %p82 = por %p80, %p81
    %p83 = scmp.ne.s32.totalorder %s71, %s72
    %p84 = scmp.eq.s32.totalorder %s18, 1
    %p85 = por %p83, %p84
    %p87 = scmp.ne.s32.totalorder %s72, %s86
    %p88 = scmp.eq.s32.totalorder %s18, 0
    %p89 = por %p87, %p88
    %s91 = sadd.s32 %s90, 1
    %p94 = scmp.eq.s32.totalorder %s12, 1
    %p95 = scmp.ne.s32.totalorder %s90, %s92
    %p96 = scmp.eq.s32.totalorder %s12, 0
    %p97 = por %p95, %p96
    %p98 = scmp.ne.s32.totalorder %s90, %s92
    %p99 = scmp.eq.s32.totalorder %s17, 1
    %p100 = por %p98, %p99
    %p101 = scmp.ne.s32.totalorder %s92, %s93
    %p102 = scmp.eq.s32.totalorder %s17, 0
    %p103 = por %p101, %p102
    %p104 = scmp.ne.s32.totalorder %s92, %s93
    %p105 = scmp.eq.s32.totalorder %s18, 1
    %p106 = por %p104, %p105
    %p108 = scmp.ne.s32.totalorder %s93, %s107
    %p109 = scmp.eq.s32.totalorder %s18, 0
    %p110 = por %p108, %p109
    %s112 = sadd.s32 %s111, 1
    %p115 = scmp.eq.s32.totalorder %s12, 1
    %p116 = scmp.ne.s32.totalorder %s111, %s113
    %p117 = scmp.eq.s32.totalorder %s12, 0
    %p118 = por %p116, %p117
    %p119 = scmp.ne.s32.totalorder %s111, %s113
    %p120 = scmp.eq.s32.totalorder %s17, 1
    %p121 = por %p119, %p120
    %p122 = scmp.ne.s32.totalorder %s113, %s114
    %p123 = scmp.eq.s32.totalorder %s17, 0
    %p124 = por %p122, %p123
    %p125 = scmp.ne.s32.totalorder %s113, %s114
    %p126 = scmp.eq.s32.totalorder %s18, 1
    %p127 = por %p125, %p126
    %p129 = scmp.ne.s32.totalorder %s114, %s128
    %p130 = scmp.eq.s32.totalorder %s18, 0
    %p131 = por %p129, %p130
    %s132 = ssub.s32 %s19, %s38
    %s133 = ssub.s32 %s20, %s34
    %s134 = sor.u32 %s132, %s133
    %p135 = scmp.eq.s32.totalorder %s134, 0
    %s137 = sadd.s32 %s136, 1
    %s138 = scalar_select %p135, %s136, %s137
    %p141 = pneg %p135
    %p142 = scmp.eq.s32.totalorder %s12, 1
    %p143 = por %p141, %p142
    %p144 = scmp.ne.s32.totalorder %s136, %s139
    %p145 = scmp.eq.s32.totalorder %s12, 0
    %p146 = por %p144, %p145
    %p147 = scmp.ne.s32.totalorder %s136, %s139
    %p148 = scmp.eq.s32.totalorder %s17, 1
    %p149 = por %p147, %p148
    %p150 = scmp.ne.s32.totalorder %s139, %s140
    %p151 = scmp.eq.s32.totalorder %s17, 0
    %p152 = por %p150, %p151
    %p153 = scmp.ne.s32.totalorder %s139, %s140
    %p154 = scmp.eq.s32.totalorder %s18, 1
    %p155 = por %p153, %p154
    %p157 = scmp.ne.s32.totalorder %s140, %s156
    %p158 = scmp.eq.s32.totalorder %s18, 0
    %p159 = por %p157, %p158
    %s160 = ssub.s32 %s19, %s38
    %s161 = ssub.s32 %s20, %s34
    %s162 = sor.u32 %s160, %s161
    %p163 = scmp.eq.s32.totalorder %s162, 0
    %s165 = sadd.s32 %s164, 1
    %s166 = scalar_select %p163, %s164, %s165
    %p169 = pneg %p163
    %p170 = scmp.eq.s32.totalorder %s12, 1
    %p171 = por %p169, %p170
    %p172 = scmp.ne.s32.totalorder %s164, %s167
    %p173 = scmp.eq.s32.totalorder %s12, 0
    %p174 = por %p172, %p173
    %p175 = scmp.ne.s32.totalorder %s164, %s167
    %p176 = scmp.eq.s32.totalorder %s17, 1
    %p177 = por %p175, %p176
    %p178 = scmp.ne.s32.totalorder %s167, %s168
    %p179 = scmp.eq.s32.totalorder %s17, 0
    %p180 = por %p178, %p179
    %p181 = scmp.ne.s32.totalorder %s167, %s168
    %p182 = scmp.eq.s32.totalorder %s18, 1
    %p183 = por %p181, %p182
    %p185 = scmp.ne.s32.totalorder %s168, %s184
    %p186 = scmp.eq.s32.totalorder %s18, 0
    %p187 = por %p185, %p186
    %p188 = scmp.le.s32.totalorder 1, %s12
    %p189 = scmp.lt.s32.totalorder %s12, 3
    %p190 = pnand %p188, %p189
    %p191 = pneg %p190
    // Predicated region
    $region9: #{patch_soft_unet_innermost_forward.4} parent=5 // pred_check
      _
    $region10: #{patch_soft_unet_innermost_forward.4} parent=5 // pred_check_branch
      %193 = sbr.rel (%p190) target = $region12
    $region11: #{patch_soft_unet_innermost_forward.4} parent=5 // pred_region
      %s194 = ssub.s32 %s12, 1
      // Predicated region
      $region13: #{patch_soft_unet_innermost_forward.4} parent=11 // pred_check
        %p195 = pneg %p82
      $region14: #{patch_soft_unet_innermost_forward.4} parent=11 // pred_check_branch
        %197 = sbr.rel (%p195) target = $region16
      $region15: #{patch_soft_unet_innermost_forward.4} parent=11 // pred_region
        _
      $region16: #{patch_soft_unet_innermost_forward.4} parent=11 // pred_fallthru
        _
      // Predicated region
      $region17: #{patch_soft_unet_innermost_forward.4} parent=11 // pred_check
        %p198 = pneg %p103
      $region18: #{patch_soft_unet_innermost_forward.4} parent=11 // pred_check_branch
        %200 = sbr.rel (%p198) target = $region20
      $region19: #{patch_soft_unet_innermost_forward.4} parent=11 // pred_region
        _
      $region20: #{patch_soft_unet_innermost_forward.4} parent=11 // pred_fallthru
        _
      // Predicated region
      $region21: #{patch_soft_unet_innermost_forward.4} parent=11 // pred_check
        %p201 = pneg %p124
      $region22: #{patch_soft_unet_innermost_forward.4} parent=11 // pred_check_branch
        %203 = sbr.rel (%p201) target = $region24
      $region23: #{patch_soft_unet_innermost_forward.4} parent=11 // pred_region
        _
      $region24: #{patch_soft_unet_innermost_forward.4} parent=11 // pred_fallthru
        _
    $region12: #{patch_soft_unet_innermost_forward.4} parent=5 // pred_fallthru
      _
    %p204 = scmp.lt.s32.totalorder %s12, 2
    // Predicated region
    $region25: #{patch_soft_unet_innermost_forward.4} parent=5 // pred_check
      %p205 = pneg %p204
    $region26: #{patch_soft_unet_innermost_forward.4} parent=5 // pred_check_branch
      %207 = sbr.rel (%p205) target = $region28
    $region27: #{patch_soft_unet_innermost_forward.4} parent=5 // pred_region
      // Predicated region
      $region29: #{patch_soft_unet_innermost_forward.4} parent=27 // pred_check
        %p208 = pneg %p55
      $region30: #{patch_soft_unet_innermost_forward.4} parent=27 // pred_check_branch
        %210 = sbr.rel (%p208) target = $region32
      $region31: #{patch_soft_unet_innermost_forward.4} parent=27 // pred_region
        %p211 = scmp.lt.s32.totalorder %s19, 1
        %s212 = scalar_select %p211, %s19, 1
        %p213 = scmp.lt.s32.totalorder %s20, 0
        %s214 = scalar_select %p213, %s20, 0
        %p215 = scmp.lt.s32.totalorder %s21, 0
        %s216 = scalar_select %p215, %s21, 0
        %s217 = smul.addr %s214, 14
        %s218 = sadd.s32 %s216, %s217
        %s219 = smul.addr %s212, 14
        %s220 = sadd.s32 %s218, %s219
        %s221 = smul.addr %s220, 4
        %s222 = scalar_lea.vmem %s0, %s221
      $region32: #{patch_soft_unet_innermost_forward.4} parent=27 // pred_fallthru
        _
    $region28: #{patch_soft_unet_innermost_forward.4} parent=5 // pred_fallthru
      _
    %p223 = scmp.le.s32.totalorder 1, %s12
    %p224 = scmp.lt.s32.totalorder %s12, 3
    %p225 = pnand %p223, %p224
    %p226 = pneg %p225
    // Predicated region
    $region33: #{patch_soft_unet_innermost_forward.4} parent=5 // pred_check
      _
    $region34: #{patch_soft_unet_innermost_forward.4} parent=5 // pred_check_branch
      %228 = sbr.rel (%p225) target = $region36
    $region35: #{patch_soft_unet_innermost_forward.4} parent=5 // pred_region
      %s229 = ssub.s32 %s12, 1
      %p230 = scmp.lt.s32.totalorder %s22, 1
      %s231 = scalar_select %p230, %s22, 1
      %p232 = scmp.lt.s32.totalorder %s23, 0
      %s233 = scalar_select %p232, %s23, 0
      %p234 = scmp.lt.s32.totalorder %s24, 0
      %s235 = scalar_select %p234, %s24, 0
      %s236 = smul.addr %s233, 14
      %s237 = sadd.s32 %s235, %s236
      %s238 = smul.addr %s231, 14
      %s239 = sadd.s32 %s237, %s238
      %s240 = smul.addr %s239, 4
      %s241 = scalar_lea.vmem %s0, %s240
      %p242 = pneg %p61
      %p243 = pneg %p58
      %p244 = pneg %p82
      %p245 = pneg %p79
      %p246 = pneg %p103
      %p247 = pneg %p100
      %p248 = pneg %p124
      %p249 = pneg %p121
      %p250 = pneg %p152
      %p251 = pneg %p149
      %s252 = smul.u32 10, %s23
      %p253 = scmp.lt.s32.totalorder %s22, 1
      %s254 = scalar_select %p253, %s22, 1
      %p255 = scmp.lt.s32.totalorder %s252, 9
      %s256 = scalar_select %p255, %s252, 9
      %s257 = smul.addr %s254, 40
      %s258 = sadd.s32 %s256, %s257
      %s259 = smul.addr %s258, 4
      %s260 = scalar_lea.vmem %s4, %s259
      %p261 = pneg %p180
      %p262 = pneg %p177
      %p263 = scmp.lt.s32.totalorder %s22, 1
      %s264 = scalar_select %p263, %s22, 1
      %p265 = scmp.lt.s32.totalorder %s23, 0
      %s266 = scalar_select %p265, %s23, 0
      %s267 = sadd.s32 %s266, %s264
      %s268 = smul.addr %s267, 2
      %s269 = scalar_lea.vmem %s5, %s268
      %p270 = scmp.lt.s32.totalorder %s22, 1
      %s271 = scalar_select %p270, %s22, 1
      %p272 = scmp.lt.s32.totalorder %s23, 0
      %s273 = scalar_select %p272, %s23, 0
      %p274 = scmp.lt.s32.totalorder %s24, 0
      %s275 = scalar_select %p274, %s24, 0
      %s276 = smul.addr %s273, 14
      %s277 = sadd.s32 %s275, %s276
      %s278 = smul.addr %s271, 14
      %s279 = sadd.s32 %s277, %s278
      %s280 = smul.addr %s279, 4
      %s281 = scalar_lea.vmem %s0, %s280
      %s282 = smul.u32 10, %s23
      %p283 = scmp.lt.s32.totalorder %s22, 1
      %s284 = scalar_select %p283, %s22, 1
      %p285 = scmp.lt.s32.totalorder %s282, 9
      %s286 = scalar_select %p285, %s282, 9
      %s287 = smul.addr %s284, 40
      %s288 = sadd.s32 %s286, %s287
      %s289 = smul.addr %s288, 4
      %s290 = scalar_lea.vmem %s4, %s289
      %s291 = smul.u32 10, %s23
      %p292 = scmp.lt.s32.totalorder %s22, 1
      %s293 = scalar_select %p292, %s22, 1
      %p294 = scmp.lt.s32.totalorder %s23, 0
      %s295 = scalar_select %p294, %s23, 0
      %s296 = sadd.s32 %s295, %s293
      %s297 = smul.addr %s296, 2
      %s298 = scalar_lea.vmem %s5, %s297
      %p300 = scmp.eq.s32.totalorder %s24, 0
      // Predicated region
      $region37: #{patch_soft_unet_innermost_forward.4} parent=35 // pred_check
        %p301 = pneg %p300
      $region38: #{patch_soft_unet_innermost_forward.4} parent=35 // pred_check_branch
        %303 = sbr.rel (%p301) target = $region40
      $region39: #{patch_soft_unet_innermost_forward.4} parent=35 // pred_region
        %vm304 = vcmask 31744
        %305 = vst.msk [vmem:[#allocation2] sm:$0xff] %vm304, 0.0
        %306 = vst.msk [vmem:[#allocation2 + $0x8] sm:$0xff] %vm304, 0.0
        %307 = vst.msk [vmem:[#allocation2 + $0x10] sm:$0xff] %vm304, 0.0
        %308 = vst.msk [vmem:[#allocation2 + $0x18] sm:$0xff] %vm304, 0.0
        %309 = vst.msk [vmem:[#allocation2 + $0x20] sm:$0xff] %vm304, 0.0
        %310 = vst.msk [vmem:[#allocation2 + $0x28] sm:$0xff] %vm304, 0.0
        %311 = vst.msk [vmem:[#allocation2 + $0x30] sm:$0xff] %vm304, 0.0
        %312 = vst.msk [vmem:[#allocation2 + $0x38] sm:$0xff] %vm304, 0.0
        %313 = vst.msk [vmem:[#allocation2 + $0x40] sm:$0xff] %vm304, 0.0
        %314 = vst.msk [vmem:[#allocation2 + $0x48] sm:$0xff] %vm304, 0.0
        %315 = vst.msk [vmem:[#allocation2 + $0x50] sm:$0xff] %vm304, 0.0
        %316 = vst.msk [vmem:[#allocation2 + $0x58] sm:$0xff] %vm304, 0.0
        %317 = vst.msk [vmem:[#allocation2 + $0x60] sm:$0xff] %vm304, 0.0
        %318 = vst.msk [vmem:[#allocation2 + $0x68] sm:$0xff] %vm304, 0.0
        %319 = vst.msk [vmem:[#allocation2 + $0x70] sm:$0xff] %vm304, 0.0
        %320 = vst.msk [vmem:[#allocation2 + $0x78] sm:$0xff] %vm304, 0.0
        %321 = vst.msk [vmem:[#allocation2 + $0x80] sm:$0xff] %vm304, 0.0
        %322 = vst.msk [vmem:[#allocation2 + $0x88] sm:$0xff] %vm304, 0.0
        %323 = vst.msk [vmem:[#allocation2 + $0x90] sm:$0xff] %vm304, 0.0
        %324 = vst.msk [vmem:[#allocation2 + $0x98] sm:$0xff] %vm304, 0.0
        %325 = vst.msk [vmem:[#allocation2 + $0xa0] sm:$0xff] %vm304, 0.0
        %326 = vst.msk [vmem:[#allocation2 + $0xa8] sm:$0xff] %vm304, 0.0
        %327 = vst.msk [vmem:[#allocation2 + $0xb0] sm:$0xff] %vm304, 0.0
        %328 = vst.msk [vmem:[#allocation2 + $0xb8] sm:$0xff] %vm304, 0.0
        %329 = vst.msk [vmem:[#allocation2 + $0xc0] sm:$0xff] %vm304, 0.0
        %330 = vst.msk [vmem:[#allocation2 + $0xc8] sm:$0xff] %vm304, 0.0
        %331 = vst.msk [vmem:[#allocation2 + $0xd0] sm:$0xff] %vm304, 0.0
        %332 = vst.msk [vmem:[#allocation2 + $0xd8] sm:$0xff] %vm304, 0.0
        %333 = vst.msk [vmem:[#allocation2 + $0xe0] sm:$0xff] %vm304, 0.0
        %334 = vst.msk [vmem:[#allocation2 + $0xe8] sm:$0xff] %vm304, 0.0
        %335 = vst.msk [vmem:[#allocation2 + $0xf0] sm:$0xff] %vm304, 0.0
        %336 = vst.msk [vmem:[#allocation2 + $0xf8] sm:$0xff] %vm304, 0.0
        %337 = vst.msk [vmem:[#allocation2 + $0x100] sm:$0xff] %vm304, 0.0
        %338 = vst.msk [vmem:[#allocation2 + $0x108] sm:$0xff] %vm304, 0.0
        %339 = vst.msk [vmem:[#allocation2 + $0x110] sm:$0xff] %vm304, 0.0
        %340 = vst.msk [vmem:[#allocation2 + $0x118] sm:$0xff] %vm304, 0.0
        %341 = vst.msk [vmem:[#allocation2 + $0x120] sm:$0xff] %vm304, 0.0
        %342 = vst.msk [vmem:[#allocation2 + $0x128] sm:$0xff] %vm304, 0.0
        %343 = vst.msk [vmem:[#allocation2 + $0x130] sm:$0xff] %vm304, 0.0
        %344 = vst.msk [vmem:[#allocation2 + $0x138] sm:$0xff] %vm304, 0.0
      $region40: #{patch_soft_unet_innermost_forward.4} parent=35 // pred_fallthru
        _
      %v345 = vld [vmem:[%s281] sm:$0xf]
      %v346 = vld [vmem:[%s281 + $0x4] sm:$0xf]
      %v347 = vld [vmem:[%s281 + $0x8] sm:$0xf]
      %v348 = vld [vmem:[%s281 + $0xc] sm:$0xf]
      %v349 = vld [vmem:[%s281 + $0x10] sm:$0xf]
      %v350 = vld [vmem:[%s281 + $0x14] sm:$0xf]
      %v351 = vld [vmem:[%s281 + $0x18] sm:$0xf]
      %v352 = vld [vmem:[%s281 + $0x1c] sm:$0xf]
      %v353 = vld [vmem:[%s281 + $0x20] sm:$0xf]
      %v354 = vld [vmem:[%s281 + $0x24] sm:$0xf]
      %v355 = vld [vmem:[%s281 + $0x28] sm:$0xf]
      %v356 = vld [vmem:[%s281 + $0x2c] sm:$0xf]
      %v357 = vld [vmem:[%s281 + $0x30] sm:$0xf]
      %v358 = vld [vmem:[%s281 + $0x34] sm:$0x3]
      %v359 = vld [vmem:[#allocation2] sm:$0xff]
      %v360 = vld [vmem:[#allocation2 + $0x8] sm:$0xff]
      %v361 = vld [vmem:[#allocation2 + $0x10] sm:$0xff]
      %v362 = vld [vmem:[#allocation2 + $0x18] sm:$0xff]
      %v363 = vld [vmem:[#allocation2 + $0x20] sm:$0xff]
      %v364 = vld [vmem:[#allocation2 + $0x28] sm:$0xff]
      %v365 = vld [vmem:[#allocation2 + $0x30] sm:$0xff]
      %v366 = vld [vmem:[#allocation2 + $0x38] sm:$0xff]
      %v367 = vld [vmem:[#allocation2 + $0x40] sm:$0xff]
      %v368 = vld [vmem:[#allocation2 + $0x48] sm:$0xff]
      %s369 = scalar_lea.vmem %s1, 60
      %v370 = vld [vmem:[%s369] sm:$0xf]
      %v385 = vunpack.c.l.b16 %v345
      %v386 = vunpack.c.l.b16 %v346
      %v387 = vunpack.c.l.b16 %v347
      %v388 = vunpack.c.l.b16 %v348
      %v389 = vunpack.c.l.b16 %v349
      %v390 = vunpack.c.l.b16 %v350
      %v391 = vunpack.c.l.b16 %v351
      %v392 = vunpack.c.l.b16 %v352
      %v393 = vunpack.c.l.b16 %v353
      %v394 = vunpack.c.l.b16 %v354
      %v395 = vunpack.c.l.b16 %v355
      %v396 = vunpack.c.l.b16 %v356
      %v397 = vunpack.c.l.b16 %v357
      %v398 = vunpack.c.l.b16 %v358
      %v399 = vpack.c.b16 %v386, %v385
      %v400 = vpack.c.b16 %v388, %v387
      %v401 = vpack.c.b16 %v390, %v389
      %v402 = vpack.c.b16 %v392, %v391
      %v403 = vpack.c.b16 %v394, %v393
      %v404 = vpack.c.b16 %v396, %v395
      %v405 = vpack.c.b16 %v398, %v397
      %vm406 = vcmask 64512
      %v408 = vsel %vm406, %v399, 0
      %v411 = vsel %vm406, %v400, 0
      %v414 = vsel %vm406, %v401, 0
      %v417 = vsel %vm406, %v402, 0
      %v420 = vsel %vm406, %v403, 0
      %v423 = vsel %vm406, %v404, 0
      %v426 = vsel %vm406, %v405, 0
      %vm428 = vcmask 1043456
      %v430 = vsel %vm428, %v370, 0
      %432 = vmatpush.bf16.msra.mxu0 0
      %433 = vmatpush.bf16.msra.mxu0 0
      %434 = vmatpush.bf16.msra.mxu0 0
      %435 = vmatpush.bf16.msra.mxu0 0
      %436 = vmatpush.bf16.msra.mxu0 0
      %437 = vmatpush.bf16.msra.mxu0 0
      %438 = vmatpush.bf16.msra.mxu0 0
      %439 = vmatpush.bf16.msra.mxu0 %v430
      %440 = vmatmul.bf16.gmra.mxu0 %v408
      %v441 = vpop.f32.mrf.mxu0
      %v442 = vadd.f32 0.0, %v441
      %v443 = vpop.f32.mrf.mxu0
      %v444 = vadd.f32 0.0, %v443
      %445 = vmatmul.bf16.gmra.mxu0 %v411
      %v446 = vpop.f32.mrf.mxu0
      %v447 = vadd.f32 0.0, %v446
      %v448 = vpop.f32.mrf.mxu0
      %v449 = vadd.f32 0.0, %v448
      %450 = vmatmul.bf16.gmra.mxu0 %v414
      %v451 = vpop.f32.mrf.mxu0
      %v452 = vadd.f32 0.0, %v451
      %v453 = vpop.f32.mrf.mxu0
      %v454 = vadd.f32 0.0, %v453
      %455 = vmatmul.bf16.gmra.mxu0 %v417
      %v456 = vpop.f32.mrf.mxu0
      %v457 = vadd.f32 0.0, %v456
      %v458 = vpop.f32.mrf.mxu0
      %v459 = vadd.f32 0.0, %v458
      %460 = vmatmul.bf16.gmra.mxu0 %v420
      %v461 = vpop.f32.mrf.mxu0
      %v462 = vadd.f32 0.0, %v461
      %v463 = vpop.f32.mrf.mxu0
      %v464 = vadd.f32 0.0, %v463
      %465 = vmatmul.bf16.gmra.mxu0 %v423
      %v466 = vpop.f32.mrf.mxu0
      %v467 = vpop.f32.mrf.mxu0
      %468 = vmatmul.bf16.gmra.mxu0 %v426
      %v469 = vpop.f32.mrf.mxu0
      %v470 = vpop.f32.mrf.mxu0
      %471 = vdwg.mxu0
      %v472 = vadd.f32 %v359, %v442
      %v473 = vadd.f32 %v360, %v444
      %v474 = vadd.f32 %v361, %v447
      %v475 = vadd.f32 %v362, %v449
      %v476 = vadd.f32 %v363, %v452
      %v477 = vadd.f32 %v364, %v454
      %v478 = vadd.f32 %v365, %v457
      %v479 = vadd.f32 %v366, %v459
      %v480 = vadd.f32 %v367, %v462
      %v481 = vadd.f32 %v368, %v464
      %s482 = scalar_lea.vmem %s1, 52
      %v483 = vld [vmem:[%s482] sm:$0xf]
      %v485 = vsel %vm428, %v483, 0
      %487 = vmatpush.bf16.msra.mxu0 0
      %488 = vmatpush.bf16.msra.mxu0 0
      %489 = vmatpush.bf16.msra.mxu0 0
      %490 = vmatpush.bf16.msra.mxu0 0
      %491 = vmatpush.bf16.msra.mxu0 0
      %492 = vmatpush.bf16.msra.mxu0 0
      %493 = vmatpush.bf16.msra.mxu0 0
      %494 = vmatpush.bf16.msra.mxu0 %v485
      %495 = vmatmul.bf16.gmra.mxu0 %v408
      %v496 = vpop.f32.mrf.mxu0
      %v497 = vadd.f32 0.0, %v496
      %v498 = vpop.f32.mrf.mxu0
      %v499 = vadd.f32 0.0, %v498
      %500 = vmatmul.bf16.gmra.mxu0 %v411
      %v501 = vpop.f32.mrf.mxu0
      %v502 = vadd.f32 0.0, %v501
      %v503 = vpop.f32.mrf.mxu0
      %v504 = vadd.f32 0.0, %v503
      %505 = vmatmul.bf16.gmra.mxu0 %v414
      %v506 = vpop.f32.mrf.mxu0
      %v507 = vadd.f32 0.0, %v506
      %v508 = vpop.f32.mrf.mxu0
      %v509 = vadd.f32 0.0, %v508
      %510 = vmatmul.bf16.gmra.mxu0 %v417
      %v511 = vpop.f32.mrf.mxu0
      %v512 = vadd.f32 0.0, %v511
      %v513 = vpop.f32.mrf.mxu0
      %v514 = vadd.f32 0.0, %v513
      %515 = vmatmul.bf16.gmra.mxu0 %v420
      %v516 = vpop.f32.mrf.mxu0
      %v517 = vadd.f32 0.0, %v516
      %v518 = vpop.f32.mrf.mxu0
      %v519 = vadd.f32 0.0, %v518
      %520 = vmatmul.bf16.gmra.mxu0 %v423
      %v521 = vpop.f32.mrf.mxu0
      %v522 = vadd.f32 0.0, %v521
      %v523 = vpop.f32.mrf.mxu0
      %524 = vmatmul.bf16.gmra.mxu0 %v426
      %v525 = vpop.f32.mrf.mxu0
      %v526 = vpop.f32.mrf.mxu0
      %527 = vdwg.mxu0
      %vm539 = vcmask 1046528
      %v540 = vrot.slane %v497, 1
      %v541 = vrot.slane %v499, 1
      %v542 = vsel %vm539, %v540, %v541
      %v543 = vrot.slane %v502, 1
      %v544 = vsel %vm539, %v541, %v543
      %v545 = vrot.slane %v504, 1
      %v546 = vsel %vm539, %v543, %v545
      %v547 = vrot.slane %v507, 1
      %v548 = vsel %vm539, %v545, %v547
      %v549 = vrot.slane %v509, 1
      %v550 = vsel %vm539, %v547, %v549
      %v551 = vrot.slane %v512, 1
      %v552 = vsel %vm539, %v549, %v551
      %v553 = vrot.slane %v514, 1
      %v554 = vsel %vm539, %v551, %v553
      %v555 = vrot.slane %v517, 1
      %v556 = vsel %vm539, %v553, %v555
      %v557 = vrot.slane %v519, 1
      %v558 = vsel %vm539, %v555, %v557
      %v559 = vrot.slane %v522, 1
      %v560 = vsel %vm539, %v557, %v559
      %v571 = vadd.f32 %v472, %v542
      %v572 = vadd.f32 %v473, %v544
      %v573 = vadd.f32 %v474, %v546
      %v574 = vadd.f32 %v475, %v548
      %v575 = vadd.f32 %v476, %v550
      %v576 = vadd.f32 %v477, %v552
      %v577 = vadd.f32 %v478, %v554
      %v578 = vadd.f32 %v479, %v556
      %v579 = vadd.f32 %v480, %v558
      %v580 = vadd.f32 %v481, %v560
      %s581 = scalar_lea.vmem %s1, 28
      %v582 = vld [vmem:[%s581] sm:$0xf]
      %v584 = vsel %vm428, %v582, 0
      %586 = vmatpush.bf16.msra.mxu0 0
      %587 = vmatpush.bf16.msra.mxu0 0
      %588 = vmatpush.bf16.msra.mxu0 0
      %589 = vmatpush.bf16.msra.mxu0 0
      %590 = vmatpush.bf16.msra.mxu0 0
      %591 = vmatpush.bf16.msra.mxu0 0
      %592 = vmatpush.bf16.msra.mxu0 0
      %593 = vmatpush.bf16.msra.mxu0 %v584
      %594 = vmatmul.bf16.gmra.mxu0 %v408
      %v595 = vpop.f32.mrf.mxu0
      %v596 = vpop.f32.mrf.mxu0
      %v597 = vadd.f32 0.0, %v596
      %598 = vmatmul.bf16.gmra.mxu0 %v411
      %v599 = vpop.f32.mrf.mxu0
      %v600 = vadd.f32 0.0, %v599
      %v601 = vpop.f32.mrf.mxu0
      %v602 = vadd.f32 0.0, %v601
      %603 = vmatmul.bf16.gmra.mxu0 %v414
      %v604 = vpop.f32.mrf.mxu0
      %v605 = vadd.f32 0.0, %v604
      %v606 = vpop.f32.mrf.mxu0
      %v607 = vadd.f32 0.0, %v606
      %608 = vmatmul.bf16.gmra.mxu0 %v417
      %v609 = vpop.f32.mrf.mxu0
      %v610 = vadd.f32 0.0, %v609
      %v611 = vpop.f32.mrf.mxu0
      %v612 = vadd.f32 0.0, %v611
      %613 = vmatmul.bf16.gmra.mxu0 %v420
      %v614 = vpop.f32.mrf.mxu0
      %v615 = vadd.f32 0.0, %v614
      %v616 = vpop.f32.mrf.mxu0
      %v617 = vadd.f32 0.0, %v616
      %618 = vmatmul.bf16.gmra.mxu0 %v423
      %v619 = vpop.f32.mrf.mxu0
      %v620 = vadd.f32 0.0, %v619
      %v621 = vpop.f32.mrf.mxu0
      %v622 = vadd.f32 0.0, %v621
      %623 = vmatmul.bf16.gmra.mxu0 %v426
      %v624 = vpop.f32.mrf.mxu0
      %v625 = vpop.f32.mrf.mxu0
      %626 = vdwg.mxu0
      %vm638 = vcmask 1045504
      %v639 = vrot.slane %v597, 2
      %v640 = vrot.slane %v600, 2
      %v641 = vsel %vm638, %v639, %v640
      %v642 = vrot.slane %v602, 2
      %v643 = vsel %vm638, %v640, %v642
      %v644 = vrot.slane %v605, 2
      %v645 = vsel %vm638, %v642, %v644
      %v646 = vrot.slane %v607, 2
      %v647 = vsel %vm638, %v644, %v646
      %v648 = vrot.slane %v610, 2
      %v649 = vsel %vm638, %v646, %v648
      %v650 = vrot.slane %v612, 2
      %v651 = vsel %vm638, %v648, %v650
      %v652 = vrot.slane %v615, 2
      %v653 = vsel %vm638, %v650, %v652
      %v654 = vrot.slane %v617, 2
      %v655 = vsel %vm638, %v652, %v654
      %v656 = vrot.slane %v620, 2
      %v657 = vsel %vm638, %v654, %v656
      %v658 = vrot.slane %v622, 2
      %v659 = vsel %vm638, %v656, %v658
      %v670 = vadd.f32 %v571, %v641
      %v671 = vadd.f32 %v572, %v643
      %v672 = vadd.f32 %v573, %v645
      %v673 = vadd.f32 %v574, %v647
      %v674 = vadd.f32 %v575, %v649
      %v675 = vadd.f32 %v576, %v651
      %v676 = vadd.f32 %v577, %v653
      %v677 = vadd.f32 %v578, %v655
      %v678 = vadd.f32 %v579, %v657
      %v679 = vadd.f32 %v580, %v659
      %s680 = scalar_lea.vmem %s1, 20
      %v681 = vld [vmem:[%s680] sm:$0xf]
      %v683 = vsel %vm428, %v681, 0
      %685 = vmatpush.bf16.msra.mxu0 0
      %686 = vmatpush.bf16.msra.mxu0 0
      %687 = vmatpush.bf16.msra.mxu0 0
      %688 = vmatpush.bf16.msra.mxu0 0
      %689 = vmatpush.bf16.msra.mxu0 0
      %690 = vmatpush.bf16.msra.mxu0 0
      %691 = vmatpush.bf16.msra.mxu0 0
      %692 = vmatpush.bf16.msra.mxu0 %v683
      %693 = vmatmul.bf16.gmra.mxu0 %v408
      %v694 = vpop.f32.mrf.mxu0
      %v695 = vpop.f32.mrf.mxu0
      %v696 = vadd.f32 0.0, %v695
      %697 = vmatmul.bf16.gmra.mxu0 %v411
      %v698 = vpop.f32.mrf.mxu0
      %v699 = vadd.f32 0.0, %v698
      %v700 = vpop.f32.mrf.mxu0
      %v701 = vadd.f32 0.0, %v700
      %702 = vmatmul.bf16.gmra.mxu0 %v414
      %v703 = vpop.f32.mrf.mxu0
      %v704 = vadd.f32 0.0, %v703
      %v705 = vpop.f32.mrf.mxu0
      %v706 = vadd.f32 0.0, %v705
      %707 = vmatmul.bf16.gmra.mxu0 %v417
      %v708 = vpop.f32.mrf.mxu0
      %v709 = vadd.f32 0.0, %v708
      %v710 = vpop.f32.mrf.mxu0
      %v711 = vadd.f32 0.0, %v710
      %712 = vmatmul.bf16.gmra.mxu0 %v420
      %v713 = vpop.f32.mrf.mxu0
      %v714 = vadd.f32 0.0, %v713
      %v715 = vpop.f32.mrf.mxu0
      %v716 = vadd.f32 0.0, %v715
      %717 = vmatmul.bf16.gmra.mxu0 %v423
      %v718 = vpop.f32.mrf.mxu0
      %v719 = vadd.f32 0.0, %v718
      %v720 = vpop.f32.mrf.mxu0
      %v721 = vadd.f32 0.0, %v720
      %722 = vmatmul.bf16.gmra.mxu0 %v426
      %v723 = vpop.f32.mrf.mxu0
      %v724 = vpop.f32.mrf.mxu0
      %725 = vdwg.mxu0
      %vm737 = vcmask 1044480
      %v738 = vrot.slane %v696, 3
      %v739 = vrot.slane %v699, 3
      %v740 = vsel %vm737, %v738, %v739
      %v741 = vrot.slane %v701, 3
      %v742 = vsel %vm737, %v739, %v741
      %v743 = vrot.slane %v704, 3
      %v744 = vsel %vm737, %v741, %v743
      %v745 = vrot.slane %v706, 3
      %v746 = vsel %vm737, %v743, %v745
      %v747 = vrot.slane %v709, 3
      %v748 = vsel %vm737, %v745, %v747
      %v749 = vrot.slane %v711, 3
      %v750 = vsel %vm737, %v747, %v749
      %v751 = vrot.slane %v714, 3
      %v752 = vsel %vm737, %v749, %v751
      %v753 = vrot.slane %v716, 3
      %v754 = vsel %vm737, %v751, %v753
      %v755 = vrot.slane %v719, 3
      %v756 = vsel %vm737, %v753, %v755
      %v757 = vrot.slane %v721, 3
      %v758 = vsel %vm737, %v755, %v757
      %v769 = vadd.f32 %v670, %v740
      %v770 = vadd.f32 %v671, %v742
      %v771 = vadd.f32 %v672, %v744
      %v772 = vadd.f32 %v673, %v746
      %v773 = vadd.f32 %v674, %v748
      %v774 = vadd.f32 %v675, %v750
      %v775 = vadd.f32 %v676, %v752
      %v776 = vadd.f32 %v677, %v754
      %v777 = vadd.f32 %v678, %v756
      %v778 = vadd.f32 %v679, %v758
      %vm779 = vcmask 31744
      %780 = vst.msk [vmem:[#allocation2] sm:$0xff] %vm779, %v769
      %781 = vst.msk [vmem:[#allocation2 + $0x8] sm:$0xff] %vm779, %v770
      %782 = vst.msk [vmem:[#allocation2 + $0x10] sm:$0xff] %vm779, %v771
      %783 = vst.msk [vmem:[#allocation2 + $0x18] sm:$0xff] %vm779, %v772
      %784 = vst.msk [vmem:[#allocation2 + $0x20] sm:$0xff] %vm779, %v773
      %785 = vst.msk [vmem:[#allocation2 + $0x28] sm:$0xff] %vm779, %v774
      %786 = vst.msk [vmem:[#allocation2 + $0x30] sm:$0xff] %vm779, %v775
      %787 = vst.msk [vmem:[#allocation2 + $0x38] sm:$0xff] %vm779, %v776
      %788 = vst.msk [vmem:[#allocation2 + $0x40] sm:$0xff] %vm779, %v777
      %789 = vst.msk [vmem:[#allocation2 + $0x48] sm:$0xff] %vm779, %v778
      %s790 = scalar_lea.vmem [#allocation2], 80
      %v791 = vld [vmem:[%s790] sm:$0xff]
      %v792 = vld [vmem:[%s790 + $0x8] sm:$0xff]
      %v793 = vld [vmem:[%s790 + $0x10] sm:$0xff]
      %v794 = vld [vmem:[%s790 + $0x18] sm:$0xff]
      %v795 = vld [vmem:[%s790 + $0x20] sm:$0xff]
      %v796 = vld [vmem:[%s790 + $0x28] sm:$0xff]
      %v797 = vld [vmem:[%s790 + $0x30] sm:$0xff]
      %v798 = vld [vmem:[%s790 + $0x38] sm:$0xff]
      %v799 = vld [vmem:[%s790 + $0x40] sm:$0xff]
      %v800 = vld [vmem:[%s790 + $0x48] sm:$0xff]
      %s801 = scalar_lea.vmem %s1, 56
      %v802 = vld [vmem:[%s801] sm:$0xf]
      %v804 = vsel %vm428, %v802, 0
      %806 = vmatpush.bf16.msra.mxu0 0
      %807 = vmatpush.bf16.msra.mxu0 0
      %808 = vmatpush.bf16.msra.mxu0 0
      %809 = vmatpush.bf16.msra.mxu0 0
      %810 = vmatpush.bf16.msra.mxu0 0
      %811 = vmatpush.bf16.msra.mxu0 0
      %812 = vmatpush.bf16.msra.mxu0 0
      %813 = vmatpush.bf16.msra.mxu0 %v804
      %814 = vmatmul.bf16.gmra.mxu0 %v408
      %v815 = vpop.f32.mrf.mxu0
      %v816 = vadd.f32 0.0, %v815
      %v817 = vpop.f32.mrf.mxu0
      %v818 = vadd.f32 0.0, %v817
      %819 = vmatmul.bf16.gmra.mxu0 %v411
      %v820 = vpop.f32.mrf.mxu0
      %v821 = vadd.f32 0.0, %v820
      %v822 = vpop.f32.mrf.mxu0
      %v823 = vadd.f32 0.0, %v822
      %824 = vmatmul.bf16.gmra.mxu0 %v414
      %v825 = vpop.f32.mrf.mxu0
      %v826 = vadd.f32 0.0, %v825
      %v827 = vpop.f32.mrf.mxu0
      %v828 = vadd.f32 0.0, %v827
      %829 = vmatmul.bf16.gmra.mxu0 %v417
      %v830 = vpop.f32.mrf.mxu0
      %v831 = vadd.f32 0.0, %v830
      %v832 = vpop.f32.mrf.mxu0
      %v833 = vadd.f32 0.0, %v832
      %834 = vmatmul.bf16.gmra.mxu0 %v420
      %v835 = vpop.f32.mrf.mxu0
      %v836 = vadd.f32 0.0, %v835
      %v837 = vpop.f32.mrf.mxu0
      %v838 = vadd.f32 0.0, %v837
      %839 = vmatmul.bf16.gmra.mxu0 %v423
      %v840 = vpop.f32.mrf.mxu0
      %v841 = vadd.f32 0.0, %v840
      %v842 = vpop.f32.mrf.mxu0
      %843 = vmatmul.bf16.gmra.mxu0 %v426
      %v844 = vpop.f32.mrf.mxu0
      %v845 = vpop.f32.mrf.mxu0
      %846 = vdwg.mxu0
      %v858 = vrot.slane %v816, 1
      %v859 = vrot.slane %v818, 1
      %v860 = vsel %vm539, %v858, %v859
      %v861 = vrot.slane %v821, 1
      %v862 = vsel %vm539, %v859, %v861
      %v863 = vrot.slane %v823, 1
      %v864 = vsel %vm539, %v861, %v863
      %v865 = vrot.slane %v826, 1
      %v866 = vsel %vm539, %v863, %v865
      %v867 = vrot.slane %v828, 1
      %v868 = vsel %vm539, %v865, %v867
      %v869 = vrot.slane %v831, 1
      %v870 = vsel %vm539, %v867, %v869
      %v871 = vrot.slane %v833, 1
      %v872 = vsel %vm539, %v869, %v871
      %v873 = vrot.slane %v836, 1
      %v874 = vsel %vm539, %v871, %v873
      %v875 = vrot.slane %v838, 1
      %v876 = vsel %vm539, %v873, %v875
      %v877 = vrot.slane %v841, 1
      %v878 = vsel %vm539, %v875, %v877
      %v889 = vadd.f32 %v791, %v860
      %v890 = vadd.f32 %v792, %v862
      %v891 = vadd.f32 %v793, %v864
      %v892 = vadd.f32 %v794, %v866
      %v893 = vadd.f32 %v795, %v868
      %v894 = vadd.f32 %v796, %v870
      %v895 = vadd.f32 %v797, %v872
      %v896 = vadd.f32 %v798, %v874
      %v897 = vadd.f32 %v799, %v876
      %v898 = vadd.f32 %v800, %v878
      %s899 = scalar_lea.vmem %s1, 48
      %v900 = vld [vmem:[%s899] sm:$0xf]
      %v902 = vsel %vm428, %v900, 0
      %904 = vmatpush.bf16.msra.mxu0 0
      %905 = vmatpush.bf16.msra.mxu0 0
      %906 = vmatpush.bf16.msra.mxu0 0
      %907 = vmatpush.bf16.msra.mxu0 0
      %908 = vmatpush.bf16.msra.mxu0 0
      %909 = vmatpush.bf16.msra.mxu0 0
      %910 = vmatpush.bf16.msra.mxu0 0
      %911 = vmatpush.bf16.msra.mxu0 %v902
      %912 = vmatmul.bf16.gmra.mxu0 %v408
      %v913 = vpop.f32.mrf.mxu0
      %v914 = vadd.f32 0.0, %v913
      %v915 = vpop.f32.mrf.mxu0
      %v916 = vadd.f32 0.0, %v915
      %917 = vmatmul.bf16.gmra.mxu0 %v411
      %v918 = vpop.f32.mrf.mxu0
      %v919 = vadd.f32 0.0, %v918
      %v920 = vpop.f32.mrf.mxu0
      %v921 = vadd.f32 0.0, %v920
      %922 = vmatmul.bf16.gmra.mxu0 %v414
      %v923 = vpop.f32.mrf.mxu0
      %v924 = vadd.f32 0.0, %v923
      %v925 = vpop.f32.mrf.mxu0
      %v926 = vadd.f32 0.0, %v925
      %927 = vmatmul.bf16.gmra.mxu0 %v417
      %v928 = vpop.f32.mrf.mxu0
      %v929 = vadd.f32 0.0, %v928
      %v930 = vpop.f32.mrf.mxu0
      %v931 = vadd.f32 0.0, %v930
      %932 = vmatmul.bf16.gmra.mxu0 %v420
      %v933 = vpop.f32.mrf.mxu0
      %v934 = vadd.f32 0.0, %v933
      %v935 = vpop.f32.mrf.mxu0
      %v936 = vadd.f32 0.0, %v935
      %937 = vmatmul.bf16.gmra.mxu0 %v423
      %v938 = vpop.f32.mrf.mxu0
      %v939 = vadd.f32 0.0, %v938
      %v940 = vpop.f32.mrf.mxu0
      %941 = vmatmul.bf16.gmra.mxu0 %v426
      %v942 = vpop.f32.mrf.mxu0
      %v943 = vpop.f32.mrf.mxu0
      %944 = vdwg.mxu0
      %v956 = vrot.slane %v914, 2
      %v957 = vrot.slane %v916, 2
      %v958 = vsel %vm638, %v956, %v957
      %v959 = vrot.slane %v919, 2
      %v960 = vsel %vm638, %v957, %v959
      %v961 = vrot.slane %v921, 2
      %v962 = vsel %vm638, %v959, %v961
      %v963 = vrot.slane %v924, 2
      %v964 = vsel %vm638, %v961, %v963
      %v965 = vrot.slane %v926, 2
      %v966 = vsel %vm638, %v963, %v965
      %v967 = vrot.slane %v929, 2
      %v968 = vsel %vm638, %v965, %v967
      %v969 = vrot.slane %v931, 2
      %v970 = vsel %vm638, %v967, %v969
      %v971 = vrot.slane %v934, 2
      %v972 = vsel %vm638, %v969, %v971
      %v973 = vrot.slane %v936, 2
      %v974 = vsel %vm638, %v971, %v973
      %v975 = vrot.slane %v939, 2
      %v976 = vsel %vm638, %v973, %v975
      %v987 = vadd.f32 %v889, %v958
      %v988 = vadd.f32 %v890, %v960
      %v989 = vadd.f32 %v891, %v962
      %v990 = vadd.f32 %v892, %v964
      %v991 = vadd.f32 %v893, %v966
      %v992 = vadd.f32 %v894, %v968
      %v993 = vadd.f32 %v895, %v970
      %v994 = vadd.f32 %v896, %v972
      %v995 = vadd.f32 %v897, %v974
      %v996 = vadd.f32 %v898, %v976
      %s997 = scalar_lea.vmem %s1, 24
      %v998 = vld [vmem:[%s997] sm:$0xf]
      %v1000 = vsel %vm428, %v998, 0
      %1002 = vmatpush.bf16.msra.mxu0 0
      %1003 = vmatpush.bf16.msra.mxu0 0
      %1004 = vmatpush.bf16.msra.mxu0 0
      %1005 = vmatpush.bf16.msra.mxu0 0
      %1006 = vmatpush.bf16.msra.mxu0 0
      %1007 = vmatpush.bf16.msra.mxu0 0
      %1008 = vmatpush.bf16.msra.mxu0 0
      %1009 = vmatpush.bf16.msra.mxu0 %v1000
      %1010 = vmatmul.bf16.gmra.mxu0 %v408
      %v1011 = vpop.f32.mrf.mxu0
      %v1012 = vpop.f32.mrf.mxu0
      %v1013 = vadd.f32 0.0, %v1012
      %1014 = vmatmul.bf16.gmra.mxu0 %v411
      %v1015 = vpop.f32.mrf.mxu0
      %v1016 = vadd.f32 0.0, %v1015
      %v1017 = vpop.f32.mrf.mxu0
      %v1018 = vadd.f32 0.0, %v1017
      %1019 = vmatmul.bf16.gmra.mxu0 %v414
      %v1020 = vpop.f32.mrf.mxu0
      %v1021 = vadd.f32 0.0, %v1020
      %v1022 = vpop.f32.mrf.mxu0
      %v1023 = vadd.f32 0.0, %v1022
      %1024 = vmatmul.bf16.gmra.mxu0 %v417
      %v1025 = vpop.f32.mrf.mxu0
      %v1026 = vadd.f32 0.0, %v1025
      %v1027 = vpop.f32.mrf.mxu0
      %v1028 = vadd.f32 0.0, %v1027
      %1029 = vmatmul.bf16.gmra.mxu0 %v420
      %v1030 = vpop.f32.mrf.mxu0
      %v1031 = vadd.f32 0.0, %v1030
      %v1032 = vpop.f32.mrf.mxu0
      %v1033 = vadd.f32 0.0, %v1032
      %1034 = vmatmul.bf16.gmra.mxu0 %v423
      %v1035 = vpop.f32.mrf.mxu0
      %v1036 = vadd.f32 0.0, %v1035
      %v1037 = vpop.f32.mrf.mxu0
      %v1038 = vadd.f32 0.0, %v1037
      %1039 = vmatmul.bf16.gmra.mxu0 %v426
      %v1040 = vpop.f32.mrf.mxu0
      %v1041 = vpop.f32.mrf.mxu0
      %1042 = vdwg.mxu0
      %v1054 = vrot.slane %v1013, 3
      %v1055 = vrot.slane %v1016, 3
      %v1056 = vsel %vm737, %v1054, %v1055
      %v1057 = vrot.slane %v1018, 3
      %v1058 = vsel %vm737, %v1055, %v1057
      %v1059 = vrot.slane %v1021, 3
      %v1060 = vsel %vm737, %v1057, %v1059
      %v1061 = vrot.slane %v1023, 3
      %v1062 = vsel %vm737, %v1059, %v1061
      %v1063 = vrot.slane %v1026, 3
      %v1064 = vsel %vm737, %v1061, %v1063
      %v1065 = vrot.slane %v1028, 3
      %v1066 = vsel %vm737, %v1063, %v1065
      %v1067 = vrot.slane %v1031, 3
      %v1068 = vsel %vm737, %v1065, %v1067
      %v1069 = vrot.slane %v1033, 3
      %v1070 = vsel %vm737, %v1067, %v1069
      %v1071 = vrot.slane %v1036, 3
      %v1072 = vsel %vm737, %v1069, %v1071
      %v1073 = vrot.slane %v1038, 3
      %v1074 = vsel %vm737, %v1071, %v1073
      %v1085 = vadd.f32 %v987, %v1056
      %v1086 = vadd.f32 %v988, %v1058
      %v1087 = vadd.f32 %v989, %v1060
      %v1088 = vadd.f32 %v990, %v1062
      %v1089 = vadd.f32 %v991, %v1064
      %v1090 = vadd.f32 %v992, %v1066
      %v1091 = vadd.f32 %v993, %v1068
      %v1092 = vadd.f32 %v994, %v1070
      %v1093 = vadd.f32 %v995, %v1072
      %v1094 = vadd.f32 %v996, %v1074
      %s1095 = scalar_lea.vmem %s1, 16
      %v1096 = vld [vmem:[%s1095] sm:$0xf]
      %v1098 = vsel %vm428, %v1096, 0
      %1100 = vmatpush.bf16.msra.mxu0 0
      %1101 = vmatpush.bf16.msra.mxu0 0
      %1102 = vmatpush.bf16.msra.mxu0 0
      %1103 = vmatpush.bf16.msra.mxu0 0
      %1104 = vmatpush.bf16.msra.mxu0 0
      %1105 = vmatpush.bf16.msra.mxu0 0
      %1106 = vmatpush.bf16.msra.mxu0 0
      %1107 = vmatpush.bf16.msra.mxu0 %v1098
      %1108 = vmatmul.bf16.gmra.mxu0 %v408
      %v1109 = vpop.f32.mrf.mxu0
      %v1110 = vpop.f32.mrf.mxu0
      %v1111 = vadd.f32 0.0, %v1110
      %1112 = vmatmul.bf16.gmra.mxu0 %v411
      %v1113 = vpop.f32.mrf.mxu0
      %v1114 = vadd.f32 0.0, %v1113
      %v1115 = vpop.f32.mrf.mxu0
      %v1116 = vadd.f32 0.0, %v1115
      %1117 = vmatmul.bf16.gmra.mxu0 %v414
      %v1118 = vpop.f32.mrf.mxu0
      %v1119 = vadd.f32 0.0, %v1118
      %v1120 = vpop.f32.mrf.mxu0
      %v1121 = vadd.f32 0.0, %v1120
      %1122 = vmatmul.bf16.gmra.mxu0 %v417
      %v1123 = vpop.f32.mrf.mxu0
      %v1124 = vadd.f32 0.0, %v1123
      %v1125 = vpop.f32.mrf.mxu0
      %v1126 = vadd.f32 0.0, %v1125
      %1127 = vmatmul.bf16.gmra.mxu0 %v420
      %v1128 = vpop.f32.mrf.mxu0
      %v1129 = vadd.f32 0.0, %v1128
      %v1130 = vpop.f32.mrf.mxu0
      %v1131 = vadd.f32 0.0, %v1130
      %1132 = vmatmul.bf16.gmra.mxu0 %v423
      %v1133 = vpop.f32.mrf.mxu0
      %v1134 = vadd.f32 0.0, %v1133
      %v1135 = vpop.f32.mrf.mxu0
      %v1136 = vadd.f32 0.0, %v1135
      %1137 = vmatmul.bf16.gmra.mxu0 %v426
      %v1138 = vpop.f32.mrf.mxu0
      %v1139 = vpop.f32.mrf.mxu0
      %1140 = vdwg.mxu0
      %v1152 = vrot.slane %v1111, 4
      %v1153 = vrot.slane %v1114, 4
      %v1154 = vsel %vm428, %v1152, %v1153
      %v1155 = vrot.slane %v1116, 4
      %v1156 = vsel %vm428, %v1153, %v1155
      %v1157 = vrot.slane %v1119, 4
      %v1158 = vsel %vm428, %v1155, %v1157
      %v1159 = vrot.slane %v1121, 4
      %v1160 = vsel %vm428, %v1157, %v1159
      %v1161 = vrot.slane %v1124, 4
      %v1162 = vsel %vm428, %v1159, %v1161
      %v1163 = vrot.slane %v1126, 4
      %v1164 = vsel %vm428, %v1161, %v1163
      %v1165 = vrot.slane %v1129, 4
      %v1166 = vsel %vm428, %v1163, %v1165
      %v1167 = vrot.slane %v1131, 4
      %v1168 = vsel %vm428, %v1165, %v1167
      %v1169 = vrot.slane %v1134, 4
      %v1170 = vsel %vm428, %v1167, %v1169
      %v1171 = vrot.slane %v1136, 4
      %v1172 = vsel %vm428, %v1169, %v1171
      %v1183 = vadd.f32 %v1085, %v1154
      %v1184 = vadd.f32 %v1086, %v1156
      %v1185 = vadd.f32 %v1087, %v1158
      %v1186 = vadd.f32 %v1088, %v1160
      %v1187 = vadd.f32 %v1089, %v1162
      %v1188 = vadd.f32 %v1090, %v1164
      %v1189 = vadd.f32 %v1091, %v1166
      %v1190 = vadd.f32 %v1092, %v1168
      %v1191 = vadd.f32 %v1093, %v1170
      %v1192 = vadd.f32 %v1094, %v1172
      %1193 = vst.msk [vmem:[%s790] sm:$0xff] %vm779, %v1183
      %1194 = vst.msk [vmem:[%s790 + $0x8] sm:$0xff] %vm779, %v1184
      %1195 = vst.msk [vmem:[%s790 + $0x10] sm:$0xff] %vm779, %v1185
      %1196 = vst.msk [vmem:[%s790 + $0x18] sm:$0xff] %vm779, %v1186
      %1197 = vst.msk [vmem:[%s790 + $0x20] sm:$0xff] %vm779, %v1187
      %1198 = vst.msk [vmem:[%s790 + $0x28] sm:$0xff] %vm779, %v1188
      %1199 = vst.msk [vmem:[%s790 + $0x30] sm:$0xff] %vm779, %v1189
      %1200 = vst.msk [vmem:[%s790 + $0x38] sm:$0xff] %vm779, %v1190
      %1201 = vst.msk [vmem:[%s790 + $0x40] sm:$0xff] %vm779, %v1191
      %1202 = vst.msk [vmem:[%s790 + $0x48] sm:$0xff] %vm779, %v1192
      %s1203 = scalar_lea.vmem [#allocation2], 160
      %v1204 = vld [vmem:[%s1203] sm:$0xff]
      %v1205 = vld [vmem:[%s1203 + $0x8] sm:$0xff]
      %v1206 = vld [vmem:[%s1203 + $0x10] sm:$0xff]
      %v1207 = vld [vmem:[%s1203 + $0x18] sm:$0xff]
      %v1208 = vld [vmem:[%s1203 + $0x20] sm:$0xff]
      %v1209 = vld [vmem:[%s1203 + $0x28] sm:$0xff]
      %v1210 = vld [vmem:[%s1203 + $0x30] sm:$0xff]
      %v1211 = vld [vmem:[%s1203 + $0x38] sm:$0xff]
      %v1212 = vld [vmem:[%s1203 + $0x40] sm:$0xff]
      %v1213 = vld [vmem:[%s1203 + $0x48] sm:$0xff]
      %s1214 = scalar_lea.vmem %s1, 44
      %v1215 = vld [vmem:[%s1214] sm:$0xf]
      %v1217 = vsel %vm428, %v1215, 0
      %1219 = vmatpush.bf16.msra.mxu0 0
      %1220 = vmatpush.bf16.msra.mxu0 0
      %1221 = vmatpush.bf16.msra.mxu0 0
      %1222 = vmatpush.bf16.msra.mxu0 0
      %1223 = vmatpush.bf16.msra.mxu0 0
      %1224 = vmatpush.bf16.msra.mxu0 0
      %1225 = vmatpush.bf16.msra.mxu0 0
      %1226 = vmatpush.bf16.msra.mxu0 %v1217
      %1227 = vmatmul.bf16.gmra.mxu0 %v408
      %v1228 = vpop.f32.mrf.mxu0
      %v1229 = vpop.f32.mrf.mxu0
      %v1230 = vadd.f32 0.0, %v1229
      %1231 = vmatmul.bf16.gmra.mxu0 %v411
      %v1232 = vpop.f32.mrf.mxu0
      %v1233 = vadd.f32 0.0, %v1232
      %v1234 = vpop.f32.mrf.mxu0
      %v1235 = vadd.f32 0.0, %v1234
      %1236 = vmatmul.bf16.gmra.mxu0 %v414
      %v1237 = vpop.f32.mrf.mxu0
      %v1238 = vadd.f32 0.0, %v1237
      %v1239 = vpop.f32.mrf.mxu0
      %v1240 = vadd.f32 0.0, %v1239
      %1241 = vmatmul.bf16.gmra.mxu0 %v417
      %v1242 = vpop.f32.mrf.mxu0
      %v1243 = vadd.f32 0.0, %v1242
      %v1244 = vpop.f32.mrf.mxu0
      %v1245 = vadd.f32 0.0, %v1244
      %1246 = vmatmul.bf16.gmra.mxu0 %v420
      %v1247 = vpop.f32.mrf.mxu0
      %v1248 = vadd.f32 0.0, %v1247
      %v1249 = vpop.f32.mrf.mxu0
      %v1250 = vadd.f32 0.0, %v1249
      %1251 = vmatmul.bf16.gmra.mxu0 %v423
      %v1252 = vpop.f32.mrf.mxu0
      %v1253 = vadd.f32 0.0, %v1252
      %v1254 = vpop.f32.mrf.mxu0
      %v1255 = vadd.f32 0.0, %v1254
      %1256 = vmatmul.bf16.gmra.mxu0 %v426
      %v1257 = vpop.f32.mrf.mxu0
      %v1258 = vpop.f32.mrf.mxu0
      %1259 = vdwg.mxu0
      %v1271 = vrot.slane %v1230, 2
      %v1272 = vrot.slane %v1233, 2
      %v1273 = vsel %vm638, %v1271, %v1272
      %v1274 = vrot.slane %v1235, 2
      %v1275 = vsel %vm638, %v1272, %v1274
      %v1276 = vrot.slane %v1238, 2
      %v1277 = vsel %vm638, %v1274, %v1276
      %v1278 = vrot.slane %v1240, 2
      %v1279 = vsel %vm638, %v1276, %v1278
      %v1280 = vrot.slane %v1243, 2
      %v1281 = vsel %vm638, %v1278, %v1280
      %v1282 = vrot.slane %v1245, 2
      %v1283 = vsel %vm638, %v1280, %v1282
      %v1284 = vrot.slane %v1248, 2
      %v1285 = vsel %vm638, %v1282, %v1284
      %v1286 = vrot.slane %v1250, 2
      %v1287 = vsel %vm638, %v1284, %v1286
      %v1288 = vrot.slane %v1253, 2
      %v1289 = vsel %vm638, %v1286, %v1288
      %v1290 = vrot.slane %v1255, 2
      %v1291 = vsel %vm638, %v1288, %v1290
      %v1302 = vadd.f32 %v1204, %v1273
      %v1303 = vadd.f32 %v1205, %v1275
      %v1304 = vadd.f32 %v1206, %v1277
      %v1305 = vadd.f32 %v1207, %v1279
      %v1306 = vadd.f32 %v1208, %v1281
      %v1307 = vadd.f32 %v1209, %v1283
      %v1308 = vadd.f32 %v1210, %v1285
      %v1309 = vadd.f32 %v1211, %v1287
      %v1310 = vadd.f32 %v1212, %v1289
      %v1311 = vadd.f32 %v1213, %v1291
      %s1312 = scalar_lea.vmem %s1, 36
      %v1313 = vld [vmem:[%s1312] sm:$0xf]
      %v1315 = vsel %vm428, %v1313, 0
      %1317 = vmatpush.bf16.msra.mxu0 0
      %1318 = vmatpush.bf16.msra.mxu0 0
      %1319 = vmatpush.bf16.msra.mxu0 0
      %1320 = vmatpush.bf16.msra.mxu0 0
      %1321 = vmatpush.bf16.msra.mxu0 0
      %1322 = vmatpush.bf16.msra.mxu0 0
      %1323 = vmatpush.bf16.msra.mxu0 0
      %1324 = vmatpush.bf16.msra.mxu0 %v1315
      %1325 = vmatmul.bf16.gmra.mxu0 %v408
      %v1326 = vpop.f32.mrf.mxu0
      %v1327 = vpop.f32.mrf.mxu0
      %v1328 = vadd.f32 0.0, %v1327
      %1329 = vmatmul.bf16.gmra.mxu0 %v411
      %v1330 = vpop.f32.mrf.mxu0
      %v1331 = vadd.f32 0.0, %v1330
      %v1332 = vpop.f32.mrf.mxu0
      %v1333 = vadd.f32 0.0, %v1332
      %1334 = vmatmul.bf16.gmra.mxu0 %v414
      %v1335 = vpop.f32.mrf.mxu0
      %v1336 = vadd.f32 0.0, %v1335
      %v1337 = vpop.f32.mrf.mxu0
      %v1338 = vadd.f32 0.0, %v1337
      %1339 = vmatmul.bf16.gmra.mxu0 %v417
      %v1340 = vpop.f32.mrf.mxu0
      %v1341 = vadd.f32 0.0, %v1340
      %v1342 = vpop.f32.mrf.mxu0
      %v1343 = vadd.f32 0.0, %v1342
      %1344 = vmatmul.bf16.gmra.mxu0 %v420
      %v1345 = vpop.f32.mrf.mxu0
      %v1346 = vadd.f32 0.0, %v1345
      %v1347 = vpop.f32.mrf.mxu0
      %v1348 = vadd.f32 0.0, %v1347
      %1349 = vmatmul.bf16.gmra.mxu0 %v423
      %v1350 = vpop.f32.mrf.mxu0
      %v1351 = vadd.f32 0.0, %v1350
      %v1352 = vpop.f32.mrf.mxu0
      %v1353 = vadd.f32 0.0, %v1352
      %1354 = vmatmul.bf16.gmra.mxu0 %v426
      %v1355 = vpop.f32.mrf.mxu0
      %v1356 = vpop.f32.mrf.mxu0
      %1357 = vdwg.mxu0
      %v1369 = vrot.slane %v1328, 3
      %v1370 = vrot.slane %v1331, 3
      %v1371 = vsel %vm737, %v1369, %v1370
      %v1372 = vrot.slane %v1333, 3
      %v1373 = vsel %vm737, %v1370, %v1372
      %v1374 = vrot.slane %v1336, 3
      %v1375 = vsel %vm737, %v1372, %v1374
      %v1376 = vrot.slane %v1338, 3
      %v1377 = vsel %vm737, %v1374, %v1376
      %v1378 = vrot.slane %v1341, 3
      %v1379 = vsel %vm737, %v1376, %v1378
      %v1380 = vrot.slane %v1343, 3
      %v1381 = vsel %vm737, %v1378, %v1380
      %v1382 = vrot.slane %v1346, 3
      %v1383 = vsel %vm737, %v1380, %v1382
      %v1384 = vrot.slane %v1348, 3
      %v1385 = vsel %vm737, %v1382, %v1384
      %v1386 = vrot.slane %v1351, 3
      %v1387 = vsel %vm737, %v1384, %v1386
      %v1388 = vrot.slane %v1353, 3
      %v1389 = vsel %vm737, %v1386, %v1388
      %v1400 = vadd.f32 %v1302, %v1371
      %v1401 = vadd.f32 %v1303, %v1373
      %v1402 = vadd.f32 %v1304, %v1375
      %v1403 = vadd.f32 %v1305, %v1377
      %v1404 = vadd.f32 %v1306, %v1379
      %v1405 = vadd.f32 %v1307, %v1381
      %v1406 = vadd.f32 %v1308, %v1383
      %v1407 = vadd.f32 %v1309, %v1385
      %v1408 = vadd.f32 %v1310, %v1387
      %v1409 = vadd.f32 %v1311, %v1389
      %s1410 = scalar_lea.vmem %s1, 12
      %v1411 = vld [vmem:[%s1410] sm:$0xf]
      %v1413 = vsel %vm428, %v1411, 0
      %1415 = vmatpush.bf16.msra.mxu0 0
      %1416 = vmatpush.bf16.msra.mxu0 0
      %1417 = vmatpush.bf16.msra.mxu0 0
      %1418 = vmatpush.bf16.msra.mxu0 0
      %1419 = vmatpush.bf16.msra.mxu0 0
      %1420 = vmatpush.bf16.msra.mxu0 0
      %1421 = vmatpush.bf16.msra.mxu0 0
      %1422 = vmatpush.bf16.msra.mxu0 %v1413
      %1423 = vmatmul.bf16.gmra.mxu0 %v408
      %v1424 = vpop.f32.mrf.mxu0
      %v1425 = vpop.f32.mrf.mxu0
      %1426 = vmatmul.bf16.gmra.mxu0 %v411
      %v1427 = vpop.f32.mrf.mxu0
      %v1428 = vadd.f32 0.0, %v1427
      %v1429 = vpop.f32.mrf.mxu0
      %v1430 = vadd.f32 0.0, %v1429
      %1431 = vmatmul.bf16.gmra.mxu0 %v414
      %v1432 = vpop.f32.mrf.mxu0
      %v1433 = vadd.f32 0.0, %v1432
      %v1434 = vpop.f32.mrf.mxu0
      %v1435 = vadd.f32 0.0, %v1434
      %1436 = vmatmul.bf16.gmra.mxu0 %v417
      %v1437 = vpop.f32.mrf.mxu0
      %v1438 = vadd.f32 0.0, %v1437
      %v1439 = vpop.f32.mrf.mxu0
      %v1440 = vadd.f32 0.0, %v1439
      %1441 = vmatmul.bf16.gmra.mxu0 %v420
      %v1442 = vpop.f32.mrf.mxu0
      %v1443 = vadd.f32 0.0, %v1442
      %v1444 = vpop.f32.mrf.mxu0
      %v1445 = vadd.f32 0.0, %v1444
      %1446 = vmatmul.bf16.gmra.mxu0 %v423
      %v1447 = vpop.f32.mrf.mxu0
      %v1448 = vadd.f32 0.0, %v1447
      %v1449 = vpop.f32.mrf.mxu0
      %v1450 = vadd.f32 0.0, %v1449
      %1451 = vmatmul.bf16.gmra.mxu0 %v426
      %v1452 = vpop.f32.mrf.mxu0
      %v1453 = vadd.f32 0.0, %v1452
      %v1454 = vpop.f32.mrf.mxu0
      %1455 = vdwg.mxu0
      %v1467 = vrot.slane %v1428, 4
      %v1468 = vrot.slane %v1430, 4
      %v1469 = vsel %vm428, %v1467, %v1468
      %v1470 = vrot.slane %v1433, 4
      %v1471 = vsel %vm428, %v1468, %v1470
      %v1472 = vrot.slane %v1435, 4
      %v1473 = vsel %vm428, %v1470, %v1472
      %v1474 = vrot.slane %v1438, 4
      %v1475 = vsel %vm428, %v1472, %v1474
      %v1476 = vrot.slane %v1440, 4
      %v1477 = vsel %vm428, %v1474, %v1476
      %v1478 = vrot.slane %v1443, 4
      %v1479 = vsel %vm428, %v1476, %v1478
      %v1480 = vrot.slane %v1445, 4
      %v1481 = vsel %vm428, %v1478, %v1480
      %v1482 = vrot.slane %v1448, 4
      %v1483 = vsel %vm428, %v1480, %v1482
      %v1484 = vrot.slane %v1450, 4
      %v1485 = vsel %vm428, %v1482, %v1484
      %v1486 = vrot.slane %v1453, 4
      %v1487 = vsel %vm428, %v1484, %v1486
      %v1498 = vadd.f32 %v1400, %v1469
      %v1499 = vadd.f32 %v1401, %v1471
      %v1500 = vadd.f32 %v1402, %v1473
      %v1501 = vadd.f32 %v1403, %v1475
      %v1502 = vadd.f32 %v1404, %v1477
      %v1503 = vadd.f32 %v1405, %v1479
      %v1504 = vadd.f32 %v1406, %v1481
      %v1505 = vadd.f32 %v1407, %v1483
      %v1506 = vadd.f32 %v1408, %v1485
      %v1507 = vadd.f32 %v1409, %v1487
      %s1508 = scalar_lea.vmem %s1, 4
      %v1509 = vld [vmem:[%s1508] sm:$0xf]
      %v1511 = vsel %vm428, %v1509, 0
      %1513 = vmatpush.bf16.msra.mxu0 0
      %1514 = vmatpush.bf16.msra.mxu0 0
      %1515 = vmatpush.bf16.msra.mxu0 0
      %1516 = vmatpush.bf16.msra.mxu0 0
      %1517 = vmatpush.bf16.msra.mxu0 0
      %1518 = vmatpush.bf16.msra.mxu0 0
      %1519 = vmatpush.bf16.msra.mxu0 0
      %1520 = vmatpush.bf16.msra.mxu0 %v1511
      %1521 = vmatmul.bf16.gmra.mxu0 %v408
      %v1522 = vpop.f32.mrf.mxu0
      %v1523 = vpop.f32.mrf.mxu0
      %1524 = vmatmul.bf16.gmra.mxu0 %v411
      %v1525 = vpop.f32.mrf.mxu0
      %v1526 = vadd.f32 0.0, %v1525
      %v1527 = vpop.f32.mrf.mxu0
      %v1528 = vadd.f32 0.0, %v1527
      %1529 = vmatmul.bf16.gmra.mxu0 %v414
      %v1530 = vpop.f32.mrf.mxu0
      %v1531 = vadd.f32 0.0, %v1530
      %v1532 = vpop.f32.mrf.mxu0
      %v1533 = vadd.f32 0.0, %v1532
      %1534 = vmatmul.bf16.gmra.mxu0 %v417
      %v1535 = vpop.f32.mrf.mxu0
      %v1536 = vadd.f32 0.0, %v1535
      %v1537 = vpop.f32.mrf.mxu0
      %v1538 = vadd.f32 0.0, %v1537
      %1539 = vmatmul.bf16.gmra.mxu0 %v420
      %v1540 = vpop.f32.mrf.mxu0
      %v1541 = vadd.f32 0.0, %v1540
      %v1542 = vpop.f32.mrf.mxu0
      %v1543 = vadd.f32 0.0, %v1542
      %1544 = vmatmul.bf16.gmra.mxu0 %v423
      %v1545 = vpop.f32.mrf.mxu0
      %v1546 = vadd.f32 0.0, %v1545
      %v1547 = vpop.f32.mrf.mxu0
      %v1548 = vadd.f32 0.0, %v1547
      %1549 = vmatmul.bf16.gmra.mxu0 %v426
      %v1550 = vpop.f32.mrf.mxu0
      %v1551 = vadd.f32 0.0, %v1550
      %v1552 = vpop.f32.mrf.mxu0
      %1553 = vdwg.mxu0
      %vm1565 = vcmask 1042432
      %v1566 = vrot.slane %v1526, 5
      %v1567 = vrot.slane %v1528, 5
      %v1568 = vsel %vm1565, %v1566, %v1567
      %v1569 = vrot.slane %v1531, 5
      %v1570 = vsel %vm1565, %v1567, %v1569
      %v1571 = vrot.slane %v1533, 5
      %v1572 = vsel %vm1565, %v1569, %v1571
      %v1573 = vrot.slane %v1536, 5
      %v1574 = vsel %vm1565, %v1571, %v1573
      %v1575 = vrot.slane %v1538, 5
      %v1576 = vsel %vm1565, %v1573, %v1575
      %v1577 = vrot.slane %v1541, 5
      %v1578 = vsel %vm1565, %v1575, %v1577
      %v1579 = vrot.slane %v1543, 5
      %v1580 = vsel %vm1565, %v1577, %v1579
      %v1581 = vrot.slane %v1546, 5
      %v1582 = vsel %vm1565, %v1579, %v1581
      %v1583 = vrot.slane %v1548, 5
      %v1584 = vsel %vm1565, %v1581, %v1583
      %v1585 = vrot.slane %v1551, 5
      %v1586 = vsel %vm1565, %v1583, %v1585
      %v1597 = vadd.f32 %v1498, %v1568
      %v1598 = vadd.f32 %v1499, %v1570
      %v1599 = vadd.f32 %v1500, %v1572
      %v1600 = vadd.f32 %v1501, %v1574
      %v1601 = vadd.f32 %v1502, %v1576
      %v1602 = vadd.f32 %v1503, %v1578
      %v1603 = vadd.f32 %v1504, %v1580
      %v1604 = vadd.f32 %v1505, %v1582
      %v1605 = vadd.f32 %v1506, %v1584
      %v1606 = vadd.f32 %v1507, %v1586
      %1607 = vst.msk [vmem:[%s1203] sm:$0xff] %vm779, %v1597
      %1608 = vst.msk [vmem:[%s1203 + $0x8] sm:$0xff] %vm779, %v1598
      %1609 = vst.msk [vmem:[%s1203 + $0x10] sm:$0xff] %vm779, %v1599
      %1610 = vst.msk [vmem:[%s1203 + $0x18] sm:$0xff] %vm779, %v1600
      %1611 = vst.msk [vmem:[%s1203 + $0x20] sm:$0xff] %vm779, %v1601
      %1612 = vst.msk [vmem:[%s1203 + $0x28] sm:$0xff] %vm779, %v1602
      %1613 = vst.msk [vmem:[%s1203 + $0x30] sm:$0xff] %vm779, %v1603
      %1614 = vst.msk [vmem:[%s1203 + $0x38] sm:$0xff] %vm779, %v1604
      %1615 = vst.msk [vmem:[%s1203 + $0x40] sm:$0xff] %vm779, %v1605
      %1616 = vst.msk [vmem:[%s1203 + $0x48] sm:$0xff] %vm779, %v1606
      %s1617 = scalar_lea.vmem [#allocation2], 240
      %v1618 = vld [vmem:[%s1617] sm:$0xff]
      %v1619 = vld [vmem:[%s1617 + $0x8] sm:$0xff]
      %v1620 = vld [vmem:[%s1617 + $0x10] sm:$0xff]
      %v1621 = vld [vmem:[%s1617 + $0x18] sm:$0xff]
      %v1622 = vld [vmem:[%s1617 + $0x20] sm:$0xff]
      %v1623 = vld [vmem:[%s1617 + $0x28] sm:$0xff]
      %v1624 = vld [vmem:[%s1617 + $0x30] sm:$0xff]
      %v1625 = vld [vmem:[%s1617 + $0x38] sm:$0xff]
      %v1626 = vld [vmem:[%s1617 + $0x40] sm:$0xff]
      %v1627 = vld [vmem:[%s1617 + $0x48] sm:$0xff]
      %s1628 = scalar_lea.vmem %s1, 40
      %v1629 = vld [vmem:[%s1628] sm:$0xf]
      %v1631 = vsel %vm428, %v1629, 0
      %1633 = vmatpush.bf16.msra.mxu0 0
      %1634 = vmatpush.bf16.msra.mxu0 0
      %1635 = vmatpush.bf16.msra.mxu0 0
      %1636 = vmatpush.bf16.msra.mxu0 0
      %1637 = vmatpush.bf16.msra.mxu0 0
      %1638 = vmatpush.bf16.msra.mxu0 0
      %1639 = vmatpush.bf16.msra.mxu0 0
      %1640 = vmatpush.bf16.msra.mxu0 %v1631
      %1641 = vmatmul.bf16.gmra.mxu0 %v408
      %v1642 = vpop.f32.mrf.mxu0
      %v1643 = vpop.f32.mrf.mxu0
      %v1644 = vadd.f32 0.0, %v1643
      %1645 = vmatmul.bf16.gmra.mxu0 %v411
      %v1646 = vpop.f32.mrf.mxu0
      %v1647 = vadd.f32 0.0, %v1646
      %v1648 = vpop.f32.mrf.mxu0
      %v1649 = vadd.f32 0.0, %v1648
      %1650 = vmatmul.bf16.gmra.mxu0 %v414
      %v1651 = vpop.f32.mrf.mxu0
      %v1652 = vadd.f32 0.0, %v1651
      %v1653 = vpop.f32.mrf.mxu0
      %v1654 = vadd.f32 0.0, %v1653
      %1655 = vmatmul.bf16.gmra.mxu0 %v417
      %v1656 = vpop.f32.mrf.mxu0
      %v1657 = vadd.f32 0.0, %v1656
      %v1658 = vpop.f32.mrf.mxu0
      %v1659 = vadd.f32 0.0, %v1658
      %1660 = vmatmul.bf16.gmra.mxu0 %v420
      %v1661 = vpop.f32.mrf.mxu0
      %v1662 = vadd.f32 0.0, %v1661
      %v1663 = vpop.f32.mrf.mxu0
      %v1664 = vadd.f32 0.0, %v1663
      %1665 = vmatmul.bf16.gmra.mxu0 %v423
      %v1666 = vpop.f32.mrf.mxu0
      %v1667 = vadd.f32 0.0, %v1666
      %v1668 = vpop.f32.mrf.mxu0
      %v1669 = vadd.f32 0.0, %v1668
      %1670 = vmatmul.bf16.gmra.mxu0 %v426
      %v1671 = vpop.f32.mrf.mxu0
      %v1672 = vpop.f32.mrf.mxu0
      %1673 = vdwg.mxu0
      %v1685 = vrot.slane %v1644, 3
      %v1686 = vrot.slane %v1647, 3
      %v1687 = vsel %vm737, %v1685, %v1686
      %v1688 = vrot.slane %v1649, 3
      %v1689 = vsel %vm737, %v1686, %v1688
      %v1690 = vrot.slane %v1652, 3
      %v1691 = vsel %vm737, %v1688, %v1690
      %v1692 = vrot.slane %v1654, 3
      %v1693 = vsel %vm737, %v1690, %v1692
      %v1694 = vrot.slane %v1657, 3
      %v1695 = vsel %vm737, %v1692, %v1694
      %v1696 = vrot.slane %v1659, 3
      %v1697 = vsel %vm737, %v1694, %v1696
      %v1698 = vrot.slane %v1662, 3
      %v1699 = vsel %vm737, %v1696, %v1698
      %v1700 = vrot.slane %v1664, 3
      %v1701 = vsel %vm737, %v1698, %v1700
      %v1702 = vrot.slane %v1667, 3
      %v1703 = vsel %vm737, %v1700, %v1702
      %v1704 = vrot.slane %v1669, 3
      %v1705 = vsel %vm737, %v1702, %v1704
      %v1716 = vadd.f32 %v1618, %v1687
      %v1717 = vadd.f32 %v1619, %v1689
      %v1718 = vadd.f32 %v1620, %v1691
      %v1719 = vadd.f32 %v1621, %v1693
      %v1720 = vadd.f32 %v1622, %v1695
      %v1721 = vadd.f32 %v1623, %v1697
      %v1722 = vadd.f32 %v1624, %v1699
      %v1723 = vadd.f32 %v1625, %v1701
      %v1724 = vadd.f32 %v1626, %v1703
      %v1725 = vadd.f32 %v1627, %v1705
      %s1726 = scalar_lea.vmem %s1, 32
      %v1727 = vld [vmem:[%s1726] sm:$0xf]
      %v1729 = vsel %vm428, %v1727, 0
      %1731 = vmatpush.bf16.msra.mxu0 0
      %1732 = vmatpush.bf16.msra.mxu0 0
      %1733 = vmatpush.bf16.msra.mxu0 0
      %1734 = vmatpush.bf16.msra.mxu0 0
      %1735 = vmatpush.bf16.msra.mxu0 0
      %1736 = vmatpush.bf16.msra.mxu0 0
      %1737 = vmatpush.bf16.msra.mxu0 0
      %1738 = vmatpush.bf16.msra.mxu0 %v1729
      %1739 = vmatmul.bf16.gmra.mxu0 %v408
      %v1740 = vpop.f32.mrf.mxu0
      %v1741 = vpop.f32.mrf.mxu0
      %v1742 = vadd.f32 0.0, %v1741
      %1743 = vmatmul.bf16.gmra.mxu0 %v411
      %v1744 = vpop.f32.mrf.mxu0
      %v1745 = vadd.f32 0.0, %v1744
      %v1746 = vpop.f32.mrf.mxu0
      %v1747 = vadd.f32 0.0, %v1746
      %1748 = vmatmul.bf16.gmra.mxu0 %v414
      %v1749 = vpop.f32.mrf.mxu0
      %v1750 = vadd.f32 0.0, %v1749
      %v1751 = vpop.f32.mrf.mxu0
      %v1752 = vadd.f32 0.0, %v1751
      %1753 = vmatmul.bf16.gmra.mxu0 %v417
      %v1754 = vpop.f32.mrf.mxu0
      %v1755 = vadd.f32 0.0, %v1754
      %v1756 = vpop.f32.mrf.mxu0
      %v1757 = vadd.f32 0.0, %v1756
      %1758 = vmatmul.bf16.gmra.mxu0 %v420
      %v1759 = vpop.f32.mrf.mxu0
      %v1760 = vadd.f32 0.0, %v1759
      %v1761 = vpop.f32.mrf.mxu0
      %v1762 = vadd.f32 0.0, %v1761
      %1763 = vmatmul.bf16.gmra.mxu0 %v423
      %v1764 = vpop.f32.mrf.mxu0
      %v1765 = vadd.f32 0.0, %v1764
      %v1766 = vpop.f32.mrf.mxu0
      %v1767 = vadd.f32 0.0, %v1766
      %1768 = vmatmul.bf16.gmra.mxu0 %v426
      %v1769 = vpop.f32.mrf.mxu0
      %v1770 = vpop.f32.mrf.mxu0
      %1771 = vdwg.mxu0
      %v1783 = vrot.slane %v1742, 4
      %v1784 = vrot.slane %v1745, 4
      %v1785 = vsel %vm428, %v1783, %v1784
      %v1786 = vrot.slane %v1747, 4
      %v1787 = vsel %vm428, %v1784, %v1786
      %v1788 = vrot.slane %v1750, 4
      %v1789 = vsel %vm428, %v1786, %v1788
      %v1790 = vrot.slane %v1752, 4
      %v1791 = vsel %vm428, %v1788, %v1790
      %v1792 = vrot.slane %v1755, 4
      %v1793 = vsel %vm428, %v1790, %v1792
      %v1794 = vrot.slane %v1757, 4
      %v1795 = vsel %vm428, %v1792, %v1794
      %v1796 = vrot.slane %v1760, 4
      %v1797 = vsel %vm428, %v1794, %v1796
      %v1798 = vrot.slane %v1762, 4
      %v1799 = vsel %vm428, %v1796, %v1798
      %v1800 = vrot.slane %v1765, 4
      %v1801 = vsel %vm428, %v1798, %v1800
      %v1802 = vrot.slane %v1767, 4
      %v1803 = vsel %vm428, %v1800, %v1802
      %v1814 = vadd.f32 %v1716, %v1785
      %v1815 = vadd.f32 %v1717, %v1787
      %v1816 = vadd.f32 %v1718, %v1789
      %v1817 = vadd.f32 %v1719, %v1791
      %v1818 = vadd.f32 %v1720, %v1793
      %v1819 = vadd.f32 %v1721, %v1795
      %v1820 = vadd.f32 %v1722, %v1797
      %v1821 = vadd.f32 %v1723, %v1799
      %v1822 = vadd.f32 %v1724, %v1801
      %v1823 = vadd.f32 %v1725, %v1803
      %s1824 = scalar_lea.vmem %s1, 8
      %v1825 = vld [vmem:[%s1824] sm:$0xf]
      %v1827 = vsel %vm428, %v1825, 0
      %1829 = vmatpush.bf16.msra.mxu0 0
      %1830 = vmatpush.bf16.msra.mxu0 0
      %1831 = vmatpush.bf16.msra.mxu0 0
      %1832 = vmatpush.bf16.msra.mxu0 0
      %1833 = vmatpush.bf16.msra.mxu0 0
      %1834 = vmatpush.bf16.msra.mxu0 0
      %1835 = vmatpush.bf16.msra.mxu0 0
      %1836 = vmatpush.bf16.msra.mxu0 %v1827
      %1837 = vmatmul.bf16.gmra.mxu0 %v408
      %v1838 = vpop.f32.mrf.mxu0
      %v1839 = vpop.f32.mrf.mxu0
      %1840 = vmatmul.bf16.gmra.mxu0 %v411
      %v1841 = vpop.f32.mrf.mxu0
      %v1842 = vadd.f32 0.0, %v1841
      %v1843 = vpop.f32.mrf.mxu0
      %v1844 = vadd.f32 0.0, %v1843
      %1845 = vmatmul.bf16.gmra.mxu0 %v414
      %v1846 = vpop.f32.mrf.mxu0
      %v1847 = vadd.f32 0.0, %v1846
      %v1848 = vpop.f32.mrf.mxu0
      %v1849 = vadd.f32 0.0, %v1848
      %1850 = vmatmul.bf16.gmra.mxu0 %v417
      %v1851 = vpop.f32.mrf.mxu0
      %v1852 = vadd.f32 0.0, %v1851
      %v1853 = vpop.f32.mrf.mxu0
      %v1854 = vadd.f32 0.0, %v1853
      %1855 = vmatmul.bf16.gmra.mxu0 %v420
      %v1856 = vpop.f32.mrf.mxu0
      %v1857 = vadd.f32 0.0, %v1856
      %v1858 = vpop.f32.mrf.mxu0
      %v1859 = vadd.f32 0.0, %v1858
      %1860 = vmatmul.bf16.gmra.mxu0 %v423
      %v1861 = vpop.f32.mrf.mxu0
      %v1862 = vadd.f32 0.0, %v1861
      %v1863 = vpop.f32.mrf.mxu0
      %v1864 = vadd.f32 0.0, %v1863
      %1865 = vmatmul.bf16.gmra.mxu0 %v426
      %v1866 = vpop.f32.mrf.mxu0
      %v1867 = vadd.f32 0.0, %v1866
      %v1868 = vpop.f32.mrf.mxu0
      %1869 = vdwg.mxu0
      %v1881 = vrot.slane %v1842, 5
      %v1882 = vrot.slane %v1844, 5
      %v1883 = vsel %vm1565, %v1881, %v1882
      %v1884 = vrot.slane %v1847, 5
      %v1885 = vsel %vm1565, %v1882, %v1884
      %v1886 = vrot.slane %v1849, 5
      %v1887 = vsel %vm1565, %v1884, %v1886
      %v1888 = vrot.slane %v1852, 5
      %v1889 = vsel %vm1565, %v1886, %v1888
      %v1890 = vrot.slane %v1854, 5
      %v1891 = vsel %vm1565, %v1888, %v1890
      %v1892 = vrot.slane %v1857, 5
      %v1893 = vsel %vm1565, %v1890, %v1892
      %v1894 = vrot.slane %v1859, 5
      %v1895 = vsel %vm1565, %v1892, %v1894
      %v1896 = vrot.slane %v1862, 5
      %v1897 = vsel %vm1565, %v1894, %v1896
      %v1898 = vrot.slane %v1864, 5
      %v1899 = vsel %vm1565, %v1896, %v1898
      %v1900 = vrot.slane %v1867, 5
      %v1901 = vsel %vm1565, %v1898, %v1900
      %v1912 = vadd.f32 %v1814, %v1883
      %v1913 = vadd.f32 %v1815, %v1885
      %v1914 = vadd.f32 %v1816, %v1887
      %v1915 = vadd.f32 %v1817, %v1889
      %v1916 = vadd.f32 %v1818, %v1891
      %v1917 = vadd.f32 %v1819, %v1893
      %v1918 = vadd.f32 %v1820, %v1895
      %v1919 = vadd.f32 %v1821, %v1897
      %v1920 = vadd.f32 %v1822, %v1899
      %v1921 = vadd.f32 %v1823, %v1901
      %v1922 = vld [vmem:[%s1] sm:$0xf]
      %v1924 = vsel %vm428, %v1922, 0
      %1926 = vmatpush.bf16.msra.mxu0 0
      %1927 = vmatpush.bf16.msra.mxu0 0
      %1928 = vmatpush.bf16.msra.mxu0 0
      %1929 = vmatpush.bf16.msra.mxu0 0
      %1930 = vmatpush.bf16.msra.mxu0 0
      %1931 = vmatpush.bf16.msra.mxu0 0
      %1932 = vmatpush.bf16.msra.mxu0 0
      %1933 = vmatpush.bf16.msra.mxu0 %v1924
      %1934 = vmatmul.bf16.gmra.mxu0 %v408
      %v1935 = vpop.f32.mrf.mxu0
      %v1936 = vpop.f32.mrf.mxu0
      %1937 = vmatmul.bf16.gmra.mxu0 %v411
      %v1938 = vpop.f32.mrf.mxu0
      %v1939 = vadd.f32 0.0, %v1938
      %v1940 = vpop.f32.mrf.mxu0
      %v1941 = vadd.f32 0.0, %v1940
      %1942 = vmatmul.bf16.gmra.mxu0 %v414
      %v1943 = vpop.f32.mrf.mxu0
      %v1944 = vadd.f32 0.0, %v1943
      %v1945 = vpop.f32.mrf.mxu0
      %v1946 = vadd.f32 0.0, %v1945
      %1947 = vmatmul.bf16.gmra.mxu0 %v417
      %v1948 = vpop.f32.mrf.mxu0
      %v1949 = vadd.f32 0.0, %v1948
      %v1950 = vpop.f32.mrf.mxu0
      %v1951 = vadd.f32 0.0, %v1950
      %1952 = vmatmul.bf16.gmra.mxu0 %v420
      %v1953 = vpop.f32.mrf.mxu0
      %v1954 = vadd.f32 0.0, %v1953
      %v1955 = vpop.f32.mrf.mxu0
      %v1956 = vadd.f32 0.0, %v1955
      %1957 = vmatmul.bf16.gmra.mxu0 %v423
      %v1958 = vpop.f32.mrf.mxu0
      %v1959 = vadd.f32 0.0, %v1958
      %v1960 = vpop.f32.mrf.mxu0
      %v1961 = vadd.f32 0.0, %v1960
      %1962 = vmatmul.bf16.gmra.mxu0 %v426
      %v1963 = vpop.f32.mrf.mxu0
      %v1964 = vadd.f32 0.0, %v1963
      %v1965 = vpop.f32.mrf.mxu0
      %1966 = vdwg.mxu0
      %vm1978 = vcmask 1041408
      %v1979 = vrot.slane %v1939, 6
      %v1980 = vrot.slane %v1941, 6
      %v1981 = vsel %vm1978, %v1979, %v1980
      %v1982 = vrot.slane %v1944, 6
      %v1983 = vsel %vm1978, %v1980, %v1982
      %v1984 = vrot.slane %v1946, 6
      %v1985 = vsel %vm1978, %v1982, %v1984
      %v1986 = vrot.slane %v1949, 6
      %v1987 = vsel %vm1978, %v1984, %v1986
      %v1988 = vrot.slane %v1951, 6
      %v1989 = vsel %vm1978, %v1986, %v1988
      %v1990 = vrot.slane %v1954, 6
      %v1991 = vsel %vm1978, %v1988, %v1990
      %v1992 = vrot.slane %v1956, 6
      %v1993 = vsel %vm1978, %v1990, %v1992
      %v1994 = vrot.slane %v1959, 6
      %v1995 = vsel %vm1978, %v1992, %v1994
      %v1996 = vrot.slane %v1961, 6
      %v1997 = vsel %vm1978, %v1994, %v1996
      %v1998 = vrot.slane %v1964, 6
      %v1999 = vsel %vm1978, %v1996, %v1998
      %v2010 = vadd.f32 %v1912, %v1981
      %v2011 = vadd.f32 %v1913, %v1983
      %v2012 = vadd.f32 %v1914, %v1985
      %v2013 = vadd.f32 %v1915, %v1987
      %v2014 = vadd.f32 %v1916, %v1989
      %v2015 = vadd.f32 %v1917, %v1991
      %v2016 = vadd.f32 %v1918, %v1993
      %v2017 = vadd.f32 %v1919, %v1995
      %v2018 = vadd.f32 %v1920, %v1997
      %v2019 = vadd.f32 %v1921, %v1999
      %2020 = vst.msk [vmem:[%s1617] sm:$0xff] %vm779, %v2010
      %2021 = vst.msk [vmem:[%s1617 + $0x8] sm:$0xff] %vm779, %v2011
      %2022 = vst.msk [vmem:[%s1617 + $0x10] sm:$0xff] %vm779, %v2012
      %2023 = vst.msk [vmem:[%s1617 + $0x18] sm:$0xff] %vm779, %v2013
      %2024 = vst.msk [vmem:[%s1617 + $0x20] sm:$0xff] %vm779, %v2014
      %2025 = vst.msk [vmem:[%s1617 + $0x28] sm:$0xff] %vm779, %v2015
      %2026 = vst.msk [vmem:[%s1617 + $0x30] sm:$0xff] %vm779, %v2016
      %2027 = vst.msk [vmem:[%s1617 + $0x38] sm:$0xff] %vm779, %v2017
      %2028 = vst.msk [vmem:[%s1617 + $0x40] sm:$0xff] %vm779, %v2018
      %2029 = vst.msk [vmem:[%s1617 + $0x48] sm:$0xff] %vm779, %v2019
      // Predicated region
      $region41: #{patch_soft_unet_innermost_forward.4} parent=35 // pred_check
        %p2030 = pneg %p300
      $region42: #{patch_soft_unet_innermost_forward.4} parent=35 // pred_check_branch
        %2032 = sbr.rel (%p2030) target = $region44
      $region43: #{patch_soft_unet_innermost_forward.4} parent=35 // pred_region
        %v2033 = vld [vmem:[%s2] sm:$0x1]
        %v2034 = vld [vmem:[%s3] sm:$0xff]
        %v2035 = vld [vmem:[%s3 + $0x8] sm:$0xff]
        %v2036 = vld [vmem:[%s3 + $0x10] sm:$0xff]
        %v2037 = vld [vmem:[%s3 + $0x18] sm:$0xff]
        %v2038 = vld [vmem:[%s3 + $0x20] sm:$0xff]
        %v2039 = vld [vmem:[%s3 + $0x28] sm:$0xff]
        %v2040 = vld [vmem:[%s3 + $0x30] sm:$0xff]
        %v2041 = vld [vmem:[%s3 + $0x38] sm:$0xff]
        %v2042 = vld [vmem:[%s3 + $0x40] sm:$0xff]
        %v2043 = vld [vmem:[%s3 + $0x48] sm:$0xff]
        %v2044 = vld [vmem:[#allocation2] sm:$0xff]
        %v2045 = vld [vmem:[#allocation2 + $0x8] sm:$0xff]
        %v2046 = vld [vmem:[#allocation2 + $0x10] sm:$0xff]
        %v2047 = vld [vmem:[#allocation2 + $0x18] sm:$0xff]
        %v2048 = vld [vmem:[#allocation2 + $0x20] sm:$0xff]
        %v2049 = vld [vmem:[#allocation2 + $0x28] sm:$0xff]
        %v2050 = vld [vmem:[#allocation2 + $0x30] sm:$0xff]
        %v2051 = vld [vmem:[#allocation2 + $0x38] sm:$0xff]
        %v2052 = vld [vmem:[#allocation2 + $0x40] sm:$0xff]
        %v2053 = vld [vmem:[#allocation2 + $0x48] sm:$0xff]
        %v2055 = vperm.slane %v2033, 0
        %v2057 = vadd.f32 %v2044, %v2055
        %v2058 = vadd.f32 %v2045, %v2055
        %v2059 = vadd.f32 %v2046, %v2055
        %v2060 = vadd.f32 %v2047, %v2055
        %v2061 = vadd.f32 %v2048, %v2055
        %v2062 = vadd.f32 %v2049, %v2055
        %v2063 = vadd.f32 %v2050, %v2055
        %v2064 = vadd.f32 %v2051, %v2055
        %v2065 = vadd.f32 %v2052, %v2055
        %v2066 = vadd.f32 %v2053, %v2055
        %v2067 = vpack.c.bf16 %v2057, %v2057
        %v2068 = vpack.c.bf16 %v2058, %v2058
        %v2069 = vpack.c.bf16 %v2059, %v2059
        %v2070 = vpack.c.bf16 %v2060, %v2060
        %v2071 = vpack.c.bf16 %v2061, %v2061
        %v2072 = vpack.c.bf16 %v2062, %v2062
        %v2073 = vpack.c.bf16 %v2063, %v2063
        %v2074 = vpack.c.bf16 %v2064, %v2064
        %v2075 = vpack.c.bf16 %v2065, %v2065
        %v2076 = vpack.c.bf16 %v2066, %v2066
        %vm2077 = vcmask 27648
        %2078 = vst.msk [vmem:[%s290] sm:$0xf] %vm2077, %v2067
        %2079 = vst.msk [vmem:[%s290 + $0x4] sm:$0xf] %vm2077, %v2068
        %2080 = vst.msk [vmem:[%s290 + $0x8] sm:$0xf] %vm2077, %v2069
        %2081 = vst.msk [vmem:[%s290 + $0xc] sm:$0xf] %vm2077, %v2070
        %2082 = vst.msk [vmem:[%s290 + $0x10] sm:$0xf] %vm2077, %v2071
        %2083 = vst.msk [vmem:[%s290 + $0x14] sm:$0xf] %vm2077, %v2072
        %2084 = vst.msk [vmem:[%s290 + $0x18] sm:$0xf] %vm2077, %v2073
        %2085 = vst.msk [vmem:[%s290 + $0x1c] sm:$0xf] %vm2077, %v2074
        %2086 = vst.msk [vmem:[%s290 + $0x20] sm:$0xf] %vm2077, %v2075
        %2087 = vst.msk [vmem:[%s290 + $0x24] sm:$0xf] %vm2077, %v2076
        %v2088 = vmul.f32 %v2057, %v2034
        %v2089 = vmul.f32 %v2058, %v2035
        %v2090 = vmul.f32 %v2059, %v2036
        %v2091 = vmul.f32 %v2060, %v2037
        %v2092 = vmul.f32 %v2061, %v2038
        %v2093 = vmul.f32 %v2062, %v2039
        %v2094 = vmul.f32 %v2063, %v2040
        %v2095 = vmul.f32 %v2064, %v2041
        %v2096 = vmul.f32 %v2065, %v2042
        %v2097 = vmul.f32 %v2066, %v2043
        %v2098 = vsel %vm779, %v2088, 0.0
        %v2099 = vsel %vm779, %v2089, 0.0
        %v2100 = vadd.f32 %v2098, %v2099
        %v2101 = vsel %vm779, %v2090, 0.0
        %v2102 = vadd.f32 %v2100, %v2101
        %v2103 = vsel %vm779, %v2091, 0.0
        %v2104 = vadd.f32 %v2102, %v2103
        %v2105 = vsel %vm779, %v2092, 0.0
        %v2106 = vadd.f32 %v2104, %v2105
        %v2107 = vsel %vm779, %v2093, 0.0
        %v2108 = vadd.f32 %v2106, %v2107
        %v2109 = vsel %vm779, %v2094, 0.0
        %v2110 = vadd.f32 %v2108, %v2109
        %v2111 = vsel %vm779, %v2095, 0.0
        %v2112 = vadd.f32 %v2110, %v2111
        %v2113 = vsel %vm779, %v2096, 0.0
        %v2114 = vadd.f32 %v2112, %v2113
        %v2115 = vsel %vm779, %v2097, 0.0
        %v2116 = vadd.f32 %v2114, %v2115
        %v2117 = vrot.slane %v2116, 4
        %v2118 = vadd.f32 %v2116, %v2117
        %v2119 = vrot.slane %v2118, 2
        %v2120 = vadd.f32 %v2118, %v2119
        %v2121 = vrot.slane %v2120, 1
        %v2122 = vadd.f32 %v2120, %v2121
        %v2123 = vadd.f32 %v2122, 0.0
        %v2124 = vmul.f32 %v2088, %v2057
        %v2125 = vmul.f32 %v2089, %v2058
        %v2126 = vmul.f32 %v2090, %v2059
        %v2127 = vmul.f32 %v2091, %v2060
        %v2128 = vmul.f32 %v2092, %v2061
        %v2129 = vmul.f32 %v2093, %v2062
        %v2130 = vmul.f32 %v2094, %v2063
        %v2131 = vmul.f32 %v2095, %v2064
        %v2132 = vmul.f32 %v2096, %v2065
        %v2133 = vmul.f32 %v2097, %v2066
        %v2134 = vsel %vm779, %v2124, 0.0
        %v2135 = vsel %vm779, %v2125, 0.0
        %v2136 = vadd.f32 %v2134, %v2135
        %v2137 = vsel %vm779, %v2126, 0.0
        %v2138 = vadd.f32 %v2136, %v2137
        %v2139 = vsel %vm779, %v2127, 0.0
        %v2140 = vadd.f32 %v2138, %v2139
        %v2141 = vsel %vm779, %v2128, 0.0
        %v2142 = vadd.f32 %v2140, %v2141
        %v2143 = vsel %vm779, %v2129, 0.0
        %v2144 = vadd.f32 %v2142, %v2143
        %v2145 = vsel %vm779, %v2130, 0.0
        %v2146 = vadd.f32 %v2144, %v2145
        %v2147 = vsel %vm779, %v2131, 0.0
        %v2148 = vadd.f32 %v2146, %v2147
        %v2149 = vsel %vm779, %v2132, 0.0
        %v2150 = vadd.f32 %v2148, %v2149
        %v2151 = vsel %vm779, %v2133, 0.0
        %v2152 = vadd.f32 %v2150, %v2151
        %v2153 = vrot.slane %v2152, 4
        %v2154 = vadd.f32 %v2152, %v2153
        %v2155 = vrot.slane %v2154, 2
        %v2156 = vadd.f32 %v2154, %v2155
        %v2157 = vrot.slane %v2156, 1
        %v2158 = vadd.f32 %v2156, %v2157
        %v2159 = vadd.f32 %v2158, 0.0
        %v2160 = vld [vmem:[%s790] sm:$0xff]
        %v2161 = vld [vmem:[%s790 + $0x8] sm:$0xff]
        %v2162 = vld [vmem:[%s790 + $0x10] sm:$0xff]
        %v2163 = vld [vmem:[%s790 + $0x18] sm:$0xff]
        %v2164 = vld [vmem:[%s790 + $0x20] sm:$0xff]
        %v2165 = vld [vmem:[%s790 + $0x28] sm:$0xff]
        %v2166 = vld [vmem:[%s790 + $0x30] sm:$0xff]
        %v2167 = vld [vmem:[%s790 + $0x38] sm:$0xff]
        %v2168 = vld [vmem:[%s790 + $0x40] sm:$0xff]
        %v2169 = vld [vmem:[%s790 + $0x48] sm:$0xff]
        %v2170 = vadd.f32 %v2160, %v2055
        %v2171 = vadd.f32 %v2161, %v2055
        %v2172 = vadd.f32 %v2162, %v2055
        %v2173 = vadd.f32 %v2163, %v2055
        %v2174 = vadd.f32 %v2164, %v2055
        %v2175 = vadd.f32 %v2165, %v2055
        %v2176 = vadd.f32 %v2166, %v2055
        %v2177 = vadd.f32 %v2167, %v2055
        %v2178 = vadd.f32 %v2168, %v2055
        %v2179 = vadd.f32 %v2169, %v2055
        %v2180 = vpack.c.bf16 %v2170, %v2170
        %v2181 = vpack.c.bf16 %v2171, %v2171
        %v2182 = vpack.c.bf16 %v2172, %v2172
        %v2183 = vpack.c.bf16 %v2173, %v2173
        %v2184 = vpack.c.bf16 %v2174, %v2174
        %v2185 = vpack.c.bf16 %v2175, %v2175
        %v2186 = vpack.c.bf16 %v2176, %v2176
        %v2187 = vpack.c.bf16 %v2177, %v2177
        %v2188 = vpack.c.bf16 %v2178, %v2178
        %v2189 = vpack.c.bf16 %v2179, %v2179
        %s2190 = scalar_lea.vmem %s290, 40
        %2191 = vst.msk [vmem:[%s2190] sm:$0xf] %vm2077, %v2180
        %2192 = vst.msk [vmem:[%s2190 + $0x4] sm:$0xf] %vm2077, %v2181
        %2193 = vst.msk [vmem:[%s2190 + $0x8] sm:$0xf] %vm2077, %v2182
        %2194 = vst.msk [vmem:[%s2190 + $0xc] sm:$0xf] %vm2077, %v2183
        %2195 = vst.msk [vmem:[%s2190 + $0x10] sm:$0xf] %vm2077, %v2184
        %2196 = vst.msk [vmem:[%s2190 + $0x14] sm:$0xf] %vm2077, %v2185
        %2197 = vst.msk [vmem:[%s2190 + $0x18] sm:$0xf] %vm2077, %v2186
        %2198 = vst.msk [vmem:[%s2190 + $0x1c] sm:$0xf] %vm2077, %v2187
        %2199 = vst.msk [vmem:[%s2190 + $0x20] sm:$0xf] %vm2077, %v2188
        %2200 = vst.msk [vmem:[%s2190 + $0x24] sm:$0xf] %vm2077, %v2189
        %v2201 = vmul.f32 %v2170, %v2034
        %v2202 = vmul.f32 %v2171, %v2035
        %v2203 = vmul.f32 %v2172, %v2036
        %v2204 = vmul.f32 %v2173, %v2037
        %v2205 = vmul.f32 %v2174, %v2038
        %v2206 = vmul.f32 %v2175, %v2039
        %v2207 = vmul.f32 %v2176, %v2040
        %v2208 = vmul.f32 %v2177, %v2041
        %v2209 = vmul.f32 %v2178, %v2042
        %v2210 = vmul.f32 %v2179, %v2043
        %v2211 = vsel %vm779, %v2201, 0.0
        %v2212 = vsel %vm779, %v2202, 0.0
        %v2213 = vadd.f32 %v2211, %v2212
        %v2214 = vsel %vm779, %v2203, 0.0
        %v2215 = vadd.f32 %v2213, %v2214
        %v2216 = vsel %vm779, %v2204, 0.0
        %v2217 = vadd.f32 %v2215, %v2216
        %v2218 = vsel %vm779, %v2205, 0.0
        %v2219 = vadd.f32 %v2217, %v2218
        %v2220 = vsel %vm779, %v2206, 0.0
        %v2221 = vadd.f32 %v2219, %v2220
        %v2222 = vsel %vm779, %v2207, 0.0
        %v2223 = vadd.f32 %v2221, %v2222
        %v2224 = vsel %vm779, %v2208, 0.0
        %v2225 = vadd.f32 %v2223, %v2224
        %v2226 = vsel %vm779, %v2209, 0.0
        %v2227 = vadd.f32 %v2225, %v2226
        %v2228 = vsel %vm779, %v2210, 0.0
        %v2229 = vadd.f32 %v2227, %v2228
        %v2230 = vrot.slane %v2229, 4
        %v2231 = vadd.f32 %v2229, %v2230
        %v2232 = vrot.slane %v2231, 2
        %v2233 = vadd.f32 %v2231, %v2232
        %v2234 = vrot.slane %v2233, 1
        %v2235 = vadd.f32 %v2233, %v2234
        %v2236 = vadd.f32 %v2123, %v2235
        %v2237 = vmul.f32 %v2201, %v2170
        %v2238 = vmul.f32 %v2202, %v2171
        %v2239 = vmul.f32 %v2203, %v2172
        %v2240 = vmul.f32 %v2204, %v2173
        %v2241 = vmul.f32 %v2205, %v2174
        %v2242 = vmul.f32 %v2206, %v2175
        %v2243 = vmul.f32 %v2207, %v2176
        %v2244 = vmul.f32 %v2208, %v2177
        %v2245 = vmul.f32 %v2209, %v2178
        %v2246 = vmul.f32 %v2210, %v2179
        %v2247 = vsel %vm779, %v2237, 0.0
        %v2248 = vsel %vm779, %v2238, 0.0
        %v2249 = vadd.f32 %v2247, %v2248
        %v2250 = vsel %vm779, %v2239, 0.0
        %v2251 = vadd.f32 %v2249, %v2250
        %v2252 = vsel %vm779, %v2240, 0.0
        %v2253 = vadd.f32 %v2251, %v2252
        %v2254 = vsel %vm779, %v2241, 0.0
        %v2255 = vadd.f32 %v2253, %v2254
        %v2256 = vsel %vm779, %v2242, 0.0
        %v2257 = vadd.f32 %v2255, %v2256
        %v2258 = vsel %vm779, %v2243, 0.0
        %v2259 = vadd.f32 %v2257, %v2258
        %v2260 = vsel %vm779, %v2244, 0.0
        %v2261 = vadd.f32 %v2259, %v2260
        %v2262 = vsel %vm779, %v2245, 0.0
        %v2263 = vadd.f32 %v2261, %v2262
        %v2264 = vsel %vm779, %v2246, 0.0
        %v2265 = vadd.f32 %v2263, %v2264
        %v2266 = vrot.slane %v2265, 4
        %v2267 = vadd.f32 %v2265, %v2266
        %v2268 = vrot.slane %v2267, 2
        %v2269 = vadd.f32 %v2267, %v2268
        %v2270 = vrot.slane %v2269, 1
        %v2271 = vadd.f32 %v2269, %v2270
        %v2272 = vadd.f32 %v2159, %v2271
        %v2273 = vld [vmem:[%s1203] sm:$0xff]
        %v2274 = vld [vmem:[%s1203 + $0x8] sm:$0xff]
        %v2275 = vld [vmem:[%s1203 + $0x10] sm:$0xff]
        %v2276 = vld [vmem:[%s1203 + $0x18] sm:$0xff]
        %v2277 = vld [vmem:[%s1203 + $0x20] sm:$0xff]
        %v2278 = vld [vmem:[%s1203 + $0x28] sm:$0xff]
        %v2279 = vld [vmem:[%s1203 + $0x30] sm:$0xff]
        %v2280 = vld [vmem:[%s1203 + $0x38] sm:$0xff]
        %v2281 = vld [vmem:[%s1203 + $0x40] sm:$0xff]
        %v2282 = vld [vmem:[%s1203 + $0x48] sm:$0xff]
        %v2283 = vadd.f32 %v2273, %v2055
        %v2284 = vadd.f32 %v2274, %v2055
        %v2285 = vadd.f32 %v2275, %v2055
        %v2286 = vadd.f32 %v2276, %v2055
        %v2287 = vadd.f32 %v2277, %v2055
        %v2288 = vadd.f32 %v2278, %v2055
        %v2289 = vadd.f32 %v2279, %v2055
        %v2290 = vadd.f32 %v2280, %v2055
        %v2291 = vadd.f32 %v2281, %v2055
        %v2292 = vadd.f32 %v2282, %v2055
        %v2293 = vpack.c.bf16 %v2283, %v2283
        %v2294 = vpack.c.bf16 %v2284, %v2284
        %v2295 = vpack.c.bf16 %v2285, %v2285
        %v2296 = vpack.c.bf16 %v2286, %v2286
        %v2297 = vpack.c.bf16 %v2287, %v2287
        %v2298 = vpack.c.bf16 %v2288, %v2288
        %v2299 = vpack.c.bf16 %v2289, %v2289
        %v2300 = vpack.c.bf16 %v2290, %v2290
        %v2301 = vpack.c.bf16 %v2291, %v2291
        %v2302 = vpack.c.bf16 %v2292, %v2292
        %s2303 = scalar_lea.vmem %s290, 80
        %2304 = vst.msk [vmem:[%s2303] sm:$0xf] %vm2077, %v2293
        %2305 = vst.msk [vmem:[%s2303 + $0x4] sm:$0xf] %vm2077, %v2294
        %2306 = vst.msk [vmem:[%s2303 + $0x8] sm:$0xf] %vm2077, %v2295
        %2307 = vst.msk [vmem:[%s2303 + $0xc] sm:$0xf] %vm2077, %v2296
        %2308 = vst.msk [vmem:[%s2303 + $0x10] sm:$0xf] %vm2077, %v2297
        %2309 = vst.msk [vmem:[%s2303 + $0x14] sm:$0xf] %vm2077, %v2298
        %2310 = vst.msk [vmem:[%s2303 + $0x18] sm:$0xf] %vm2077, %v2299
        %2311 = vst.msk [vmem:[%s2303 + $0x1c] sm:$0xf] %vm2077, %v2300
        %2312 = vst.msk [vmem:[%s2303 + $0x20] sm:$0xf] %vm2077, %v2301
        %2313 = vst.msk [vmem:[%s2303 + $0x24] sm:$0xf] %vm2077, %v2302
        %v2314 = vmul.f32 %v2283, %v2034
        %v2315 = vmul.f32 %v2284, %v2035
        %v2316 = vmul.f32 %v2285, %v2036
        %v2317 = vmul.f32 %v2286, %v2037
        %v2318 = vmul.f32 %v2287, %v2038
        %v2319 = vmul.f32 %v2288, %v2039
        %v2320 = vmul.f32 %v2289, %v2040
        %v2321 = vmul.f32 %v2290, %v2041
        %v2322 = vmul.f32 %v2291, %v2042
        %v2323 = vmul.f32 %v2292, %v2043
        %v2324 = vsel %vm779, %v2314, 0.0
        %v2325 = vsel %vm779, %v2315, 0.0
        %v2326 = vadd.f32 %v2324, %v2325
        %v2327 = vsel %vm779, %v2316, 0.0
        %v2328 = vadd.f32 %v2326, %v2327
        %v2329 = vsel %vm779, %v2317, 0.0
        %v2330 = vadd.f32 %v2328, %v2329
        %v2331 = vsel %vm779, %v2318, 0.0
        %v2332 = vadd.f32 %v2330, %v2331
        %v2333 = vsel %vm779, %v2319, 0.0
        %v2334 = vadd.f32 %v2332, %v2333
        %v2335 = vsel %vm779, %v2320, 0.0
        %v2336 = vadd.f32 %v2334, %v2335
        %v2337 = vsel %vm779, %v2321, 0.0
        %v2338 = vadd.f32 %v2336, %v2337
        %v2339 = vsel %vm779, %v2322, 0.0
        %v2340 = vadd.f32 %v2338, %v2339
        %v2341 = vsel %vm779, %v2323, 0.0
        %v2342 = vadd.f32 %v2340, %v2341
        %v2343 = vrot.slane %v2342, 4
        %v2344 = vadd.f32 %v2342, %v2343
        %v2345 = vrot.slane %v2344, 2
        %v2346 = vadd.f32 %v2344, %v2345
        %v2347 = vrot.slane %v2346, 1
        %v2348 = vadd.f32 %v2346, %v2347
        %v2349 = vadd.f32 %v2236, %v2348
        %v2350 = vmul.f32 %v2314, %v2283
        %v2351 = vmul.f32 %v2315, %v2284
        %v2352 = vmul.f32 %v2316, %v2285
        %v2353 = vmul.f32 %v2317, %v2286
        %v2354 = vmul.f32 %v2318, %v2287
        %v2355 = vmul.f32 %v2319, %v2288
        %v2356 = vmul.f32 %v2320, %v2289
        %v2357 = vmul.f32 %v2321, %v2290
        %v2358 = vmul.f32 %v2322, %v2291
        %v2359 = vmul.f32 %v2323, %v2292
        %v2360 = vsel %vm779, %v2350, 0.0
        %v2361 = vsel %vm779, %v2351, 0.0
        %v2362 = vadd.f32 %v2360, %v2361
        %v2363 = vsel %vm779, %v2352, 0.0
        %v2364 = vadd.f32 %v2362, %v2363
        %v2365 = vsel %vm779, %v2353, 0.0
        %v2366 = vadd.f32 %v2364, %v2365
        %v2367 = vsel %vm779, %v2354, 0.0
        %v2368 = vadd.f32 %v2366, %v2367
        %v2369 = vsel %vm779, %v2355, 0.0
        %v2370 = vadd.f32 %v2368, %v2369
        %v2371 = vsel %vm779, %v2356, 0.0
        %v2372 = vadd.f32 %v2370, %v2371
        %v2373 = vsel %vm779, %v2357, 0.0
        %v2374 = vadd.f32 %v2372, %v2373
        %v2375 = vsel %vm779, %v2358, 0.0
        %v2376 = vadd.f32 %v2374, %v2375
        %v2377 = vsel %vm779, %v2359, 0.0
        %v2378 = vadd.f32 %v2376, %v2377
        %v2379 = vrot.slane %v2378, 4
        %v2380 = vadd.f32 %v2378, %v2379
        %v2381 = vrot.slane %v2380, 2
        %v2382 = vadd.f32 %v2380, %v2381
        %v2383 = vrot.slane %v2382, 1
        %v2384 = vadd.f32 %v2382, %v2383
        %v2385 = vadd.f32 %v2272, %v2384
        %v2386 = vld [vmem:[%s1617] sm:$0xff]
        %v2387 = vld [vmem:[%s1617 + $0x8] sm:$0xff]
        %v2388 = vld [vmem:[%s1617 + $0x10] sm:$0xff]
        %v2389 = vld [vmem:[%s1617 + $0x18] sm:$0xff]
        %v2390 = vld [vmem:[%s1617 + $0x20] sm:$0xff]
        %v2391 = vld [vmem:[%s1617 + $0x28] sm:$0xff]
        %v2392 = vld [vmem:[%s1617 + $0x30] sm:$0xff]
        %v2393 = vld [vmem:[%s1617 + $0x38] sm:$0xff]
        %v2394 = vld [vmem:[%s1617 + $0x40] sm:$0xff]
        %v2395 = vld [vmem:[%s1617 + $0x48] sm:$0xff]
        %v2396 = vadd.f32 %v2386, %v2055
        %v2397 = vadd.f32 %v2387, %v2055
        %v2398 = vadd.f32 %v2388, %v2055
        %v2399 = vadd.f32 %v2389, %v2055
        %v2400 = vadd.f32 %v2390, %v2055
        %v2401 = vadd.f32 %v2391, %v2055
        %v2402 = vadd.f32 %v2392, %v2055
        %v2403 = vadd.f32 %v2393, %v2055
        %v2404 = vadd.f32 %v2394, %v2055
        %v2405 = vadd.f32 %v2395, %v2055
        %v2406 = vpack.c.bf16 %v2396, %v2396
        %v2407 = vpack.c.bf16 %v2397, %v2397
        %v2408 = vpack.c.bf16 %v2398, %v2398
        %v2409 = vpack.c.bf16 %v2399, %v2399
        %v2410 = vpack.c.bf16 %v2400, %v2400
        %v2411 = vpack.c.bf16 %v2401, %v2401
        %v2412 = vpack.c.bf16 %v2402, %v2402
        %v2413 = vpack.c.bf16 %v2403, %v2403
        %v2414 = vpack.c.bf16 %v2404, %v2404
        %v2415 = vpack.c.bf16 %v2405, %v2405
        %s2416 = scalar_lea.vmem %s290, 120
        %2417 = vst.msk [vmem:[%s2416] sm:$0xf] %vm2077, %v2406
        %2418 = vst.msk [vmem:[%s2416 + $0x4] sm:$0xf] %vm2077, %v2407
        %2419 = vst.msk [vmem:[%s2416 + $0x8] sm:$0xf] %vm2077, %v2408
        %2420 = vst.msk [vmem:[%s2416 + $0xc] sm:$0xf] %vm2077, %v2409
        %2421 = vst.msk [vmem:[%s2416 + $0x10] sm:$0xf] %vm2077, %v2410
        %2422 = vst.msk [vmem:[%s2416 + $0x14] sm:$0xf] %vm2077, %v2411
        %2423 = vst.msk [vmem:[%s2416 + $0x18] sm:$0xf] %vm2077, %v2412
        %2424 = vst.msk [vmem:[%s2416 + $0x1c] sm:$0xf] %vm2077, %v2413
        %2425 = vst.msk [vmem:[%s2416 + $0x20] sm:$0xf] %vm2077, %v2414
        %2426 = vst.msk [vmem:[%s2416 + $0x24] sm:$0xf] %vm2077, %v2415
        %v2427 = vmul.f32 %v2396, %v2034
        %v2428 = vmul.f32 %v2397, %v2035
        %v2429 = vmul.f32 %v2398, %v2036
        %v2430 = vmul.f32 %v2399, %v2037
        %v2431 = vmul.f32 %v2400, %v2038
        %v2432 = vmul.f32 %v2401, %v2039
        %v2433 = vmul.f32 %v2402, %v2040
        %v2434 = vmul.f32 %v2403, %v2041
        %v2435 = vmul.f32 %v2404, %v2042
        %v2436 = vmul.f32 %v2405, %v2043
        %v2437 = vsel %vm779, %v2427, 0.0
        %v2438 = vsel %vm779, %v2428, 0.0
        %v2439 = vadd.f32 %v2437, %v2438
        %v2440 = vsel %vm779, %v2429, 0.0
        %v2441 = vadd.f32 %v2439, %v2440
        %v2442 = vsel %vm779, %v2430, 0.0
        %v2443 = vadd.f32 %v2441, %v2442
        %v2444 = vsel %vm779, %v2431, 0.0
        %v2445 = vadd.f32 %v2443, %v2444
        %v2446 = vsel %vm779, %v2432, 0.0
        %v2447 = vadd.f32 %v2445, %v2446
        %v2448 = vsel %vm779, %v2433, 0.0
        %v2449 = vadd.f32 %v2447, %v2448
        %v2450 = vsel %vm779, %v2434, 0.0
        %v2451 = vadd.f32 %v2449, %v2450
        %v2452 = vsel %vm779, %v2435, 0.0
        %v2453 = vadd.f32 %v2451, %v2452
        %v2454 = vsel %vm779, %v2436, 0.0
        %v2455 = vadd.f32 %v2453, %v2454
        %v2456 = vrot.slane %v2455, 4
        %v2457 = vadd.f32 %v2455, %v2456
        %v2458 = vrot.slane %v2457, 2
        %v2459 = vadd.f32 %v2457, %v2458
        %v2460 = vrot.slane %v2459, 1
        %v2461 = vadd.f32 %v2459, %v2460
        %v2462 = vadd.f32 %v2349, %v2461
        %v2463 = vmul.f32 %v2427, %v2396
        %v2464 = vmul.f32 %v2428, %v2397
        %v2465 = vmul.f32 %v2429, %v2398
        %v2466 = vmul.f32 %v2430, %v2399
        %v2467 = vmul.f32 %v2431, %v2400
        %v2468 = vmul.f32 %v2432, %v2401
        %v2469 = vmul.f32 %v2433, %v2402
        %v2470 = vmul.f32 %v2434, %v2403
        %v2471 = vmul.f32 %v2435, %v2404
        %v2472 = vmul.f32 %v2436, %v2405
        %v2473 = vsel %vm779, %v2463, 0.0
        %v2474 = vsel %vm779, %v2464, 0.0
        %v2475 = vadd.f32 %v2473, %v2474
        %v2476 = vsel %vm779, %v2465, 0.0
        %v2477 = vadd.f32 %v2475, %v2476
        %v2478 = vsel %vm779, %v2466, 0.0
        %v2479 = vadd.f32 %v2477, %v2478
        %v2480 = vsel %vm779, %v2467, 0.0
        %v2481 = vadd.f32 %v2479, %v2480
        %v2482 = vsel %vm779, %v2468, 0.0
        %v2483 = vadd.f32 %v2481, %v2482
        %v2484 = vsel %vm779, %v2469, 0.0
        %v2485 = vadd.f32 %v2483, %v2484
        %v2486 = vsel %vm779, %v2470, 0.0
        %v2487 = vadd.f32 %v2485, %v2486
        %v2488 = vsel %vm779, %v2471, 0.0
        %v2489 = vadd.f32 %v2487, %v2488
        %v2490 = vsel %vm779, %v2472, 0.0
        %v2491 = vadd.f32 %v2489, %v2490
        %v2492 = vrot.slane %v2491, 4
        %v2493 = vadd.f32 %v2491, %v2492
        %v2494 = vrot.slane %v2493, 2
        %v2495 = vadd.f32 %v2493, %v2494
        %v2496 = vrot.slane %v2495, 1
        %v2497 = vadd.f32 %v2495, %v2496
        %v2498 = vadd.f32 %v2385, %v2497
        %vm2499 = vcmask 24576
        %2500 = vst.msk [vmem:[%s298] sm:$0x1] %vm2499, %v2462
        %2501 = vst.msk [vmem:[%s298 + $0x1] sm:$0x1] %vm2499, %v2498
      $region44: #{patch_soft_unet_innermost_forward.4} parent=35 // pred_fallthru
        _
      %s2502 = smul.u32 10, %s23
      %p2503 = scmp.lt.s32.totalorder %s22, 1
      %s2504 = scalar_select %p2503, %s22, 1
      %p2505 = scmp.lt.s32.totalorder %s2502, 9
      %s2506 = scalar_select %p2505, %s2502, 9
      %s2507 = smul.addr %s2504, 40
      %s2508 = sadd.s32 %s2506, %s2507
      %s2509 = smul.addr %s2508, 4
      %s2510 = scalar_lea.vmem %s4, %s2509
      %p2511 = scmp.lt.s32.totalorder %s22, 1
      %s2512 = scalar_select %p2511, %s22, 1
      %p2513 = scmp.lt.s32.totalorder %s23, 0
      %s2514 = scalar_select %p2513, %s23, 0
      %s2515 = sadd.s32 %s2514, %s2512
      %s2516 = smul.addr %s2515, 2
      %s2517 = scalar_lea.vmem %s5, %s2516
      // Predicated region
      $region45: #{patch_soft_unet_innermost_forward.4} parent=35 // pred_check
        %p2518 = pneg %p149
      $region46: #{patch_soft_unet_innermost_forward.4} parent=35 // pred_check_branch
        %2520 = sbr.rel (%p2518) target = $region48
      $region47: #{patch_soft_unet_innermost_forward.4} parent=35 // pred_region
        %s2521 = smul.u32 10, %s23
      $region48: #{patch_soft_unet_innermost_forward.4} parent=35 // pred_fallthru
        _
      // Predicated region
      $region49: #{patch_soft_unet_innermost_forward.4} parent=35 // pred_check
        %p2522 = pneg %p177
      $region50: #{patch_soft_unet_innermost_forward.4} parent=35 // pred_check_branch
        %2524 = sbr.rel (%p2522) target = $region52
      $region51: #{patch_soft_unet_innermost_forward.4} parent=35 // pred_region
        _
      $region52: #{patch_soft_unet_innermost_forward.4} parent=35 // pred_fallthru
        _
    $region36: #{patch_soft_unet_innermost_forward.4} parent=5 // pred_fallthru
      _
    %p2525 = scmp.le.s32.totalorder 2, %s12
    // Predicated region
    $region53: #{patch_soft_unet_innermost_forward.4} parent=5 // pred_check
      %p2526 = pneg %p2525
    $region54: #{patch_soft_unet_innermost_forward.4} parent=5 // pred_check_branch
      %2528 = sbr.rel (%p2526) target = $region56
    $region55: #{patch_soft_unet_innermost_forward.4} parent=5 // pred_region
      %s2529 = ssub.s32 %s12, 2
      // Predicated region
      $region57: #{patch_soft_unet_innermost_forward.4} parent=55 // pred_check
        %p2530 = pneg %p155
      $region58: #{patch_soft_unet_innermost_forward.4} parent=55 // pred_check_branch
        %2532 = sbr.rel (%p2530) target = $region60
      $region59: #{patch_soft_unet_innermost_forward.4} parent=55 // pred_region
        %s2533 = smul.u32 10, %s26
        %p2534 = scmp.lt.s32.totalorder %s25, 1
        %s2535 = scalar_select %p2534, %s25, 1
        %p2536 = scmp.lt.s32.totalorder %s2533, 9
        %s2537 = scalar_select %p2536, %s2533, 9
        %s2538 = smul.addr %s2535, 40
        %s2539 = sadd.s32 %s2537, %s2538
        %s2540 = smul.addr %s2539, 4
        %s2541 = scalar_lea.vmem %s4, %s2540
      $region60: #{patch_soft_unet_innermost_forward.4} parent=55 // pred_fallthru
        _
      // Predicated region
      $region61: #{patch_soft_unet_innermost_forward.4} parent=55 // pred_check
        %p2542 = pneg %p183
      $region62: #{patch_soft_unet_innermost_forward.4} parent=55 // pred_check_branch
        %2544 = sbr.rel (%p2542) target = $region64
      $region63: #{patch_soft_unet_innermost_forward.4} parent=55 // pred_region
        %p2545 = scmp.lt.s32.totalorder %s25, 1
        %s2546 = scalar_select %p2545, %s25, 1
        %p2547 = scmp.lt.s32.totalorder %s26, 0
        %s2548 = scalar_select %p2547, %s26, 0
        %s2549 = sadd.s32 %s2548, %s2546
        %s2550 = smul.addr %s2549, 2
        %s2551 = scalar_lea.vmem %s5, %s2550
      $region64: #{patch_soft_unet_innermost_forward.4} parent=55 // pred_fallthru
        _
    $region56: #{patch_soft_unet_innermost_forward.4} parent=5 // pred_fallthru
      _
  $region6: #{patch_soft_unet_innermost_forward.4} parent=0 // loop_footer
    %s16 = sadd.s32 1, %s12
  $region7: #{patch_soft_unet_innermost_forward.4} parent=0 // loop_footer_branch
    %11 = sbr.rel target = $region3
  $region8: #{patch_soft_unet_innermost_forward.4} parent=0 // loop_exit
    _

</llo_original>
